<compile_context>
chip_gen: v7x
topology: tpu7x:2x2x1
jax: 0.10.0
libtpu: 0.0.40
codegen_flags: <defaults>
</compile_context>

<pallas_src>
import functools

import jax
import jax.numpy as jnp
from jax import lax
from jax.experimental import pallas as pl
from jax.experimental.pallas import tpu as pltpu


def _round_up(n, m):
    return ((n + m - 1) // m) * m


def _divisors(n):
    return [d for d in range(1, n + 1) if n % d == 0]


def _reduce_channel_block(x_ref, i, c_tile):
    """Sum & max over the channel axis of x_ref[i] ((c_tile, H*W) slab).

    Returns two (1, H*W) float32 rows.  The bulk of the work is elementwise on
    (8, H*W) slabs (full sublane+lane utilization); a single cross-sublane
    reduce folds the 8 partial rows at the end.  Tail channels (<8) are folded
    elementwise on (1, H*W) rows.
    """
    CH = 8
    nfull = c_tile // CH
    s = m = None
    if nfull >= 1:
        first = x_ref[i, 0:CH].astype(jnp.float32)                 # (8, HW)
        if nfull <= 8:
            s8, m8 = first, first
            for cc in range(1, nfull):                             # static unroll
                xc = x_ref[i, cc * CH:(cc + 1) * CH].astype(jnp.float32)
                s8 = s8 + xc
                m8 = jnp.maximum(m8, xc)
        else:
            def body(cc, carry):
                s8_, m8_ = carry
                c0 = pl.multiple_of(cc * CH, CH)
                xc = x_ref[i, pl.ds(c0, CH)].astype(jnp.float32)
                return s8_ + xc, jnp.maximum(m8_, xc)
            s8, m8 = lax.fori_loop(1, nfull, body, (first, first), unroll=4)
        s = jnp.sum(s8, axis=0, keepdims=True)                     # (1, HW)
        m = jnp.max(m8, axis=0, keepdims=True)
    for c in range(nfull * CH, c_tile):                            # <8 tail channels
        xc = x_ref[i, c:c + 1].astype(jnp.float32)                 # (1, HW)
        s = xc if s is None else s + xc
        m = xc if m is None else jnp.maximum(m, xc)
    return s, m


def _spatial_attention_kernel(x_ref, wa_ref, wm_ref, o_ref, pad_ref, *,
                              c_tile, num_c_steps, HW, W, K, pad,
                              block_b, RB, QL, NACC):
    # x_ref:   (block_b, c_tile, HW)    lane-dense flat input block
    # wa_ref:  (K*K, HW)                per-tap lane weights, avg channel
    #                                   (edge mask and 1/C already folded in)
    # wm_ref:  (K*K, HW)                per-tap lane weights, max channel
    # o_ref:   (block_b, HW)            lane-dense output block
    # pad_ref: (2*block_b, HW + 2*Gd)   guarded flat reduction maps:
    #                                   rows [0, block_b)          -> channel sums
    #                                   rows [block_b, 2*block_b)  -> channel maxes
    Gd = pad * (W + 1)
    cstep = pl.program_id(1)

    # ---- phase 1: channel reduction for this channel block -------------------
    for i in range(block_b):
        s, m = _reduce_channel_block(x_ref, i, c_tile)
        ra, rm = i, block_b + i
        if num_c_steps == 1:
            pad_ref[ra:ra + 1, Gd:Gd + HW] = s
            pad_ref[rm:rm + 1, Gd:Gd + HW] = m
        else:
            @pl.when(cstep == 0)
            def _init(s=s, m=m, ra=ra, rm=rm):
                pad_ref[ra:ra + 1, Gd:Gd + HW] = s
                pad_ref[rm:rm + 1, Gd:Gd + HW] = m

            @pl.when(cstep > 0)
            def _acc(s=s, m=m, ra=ra, rm=rm):
                pad_ref[ra:ra + 1, Gd:Gd + HW] = pad_ref[ra:ra + 1, Gd:Gd + HW] + s
                pad_ref[rm:rm + 1, Gd:Gd + HW] = jnp.maximum(
                    pad_ref[rm:rm + 1, Gd:Gd + HW], m)

    # ---- phase 2: KxK conv + sigmoid (last channel step only) ----------------
    def conv_phase():
        # Zero only the guard bands; interiors are always overwritten above.
        zg = jnp.zeros((2 * block_b, Gd), jnp.float32)
        pad_ref[:, 0:Gd] = zg
        pad_ref[:, Gd + HW:Gd + HW + Gd] = zg

        for ib0 in range(0, block_b, RB):                 # image (sublane) chunks
            rb = min(RB, block_b - ib0)
            for q0 in range(0, HW, QL):                   # lane chunks
                ql = min(QL, HW - q0)
                acc_a = [jnp.zeros((rb, ql), jnp.float32) for _ in range(NACC)]
                acc_m = [jnp.zeros((rb, ql), jnp.float32) for _ in range(NACC)]
                for kh in range(K):
                    # One guarded row-slab load per kh (per channel); the kw
                    # shifts are in-register lane slices of the loaded slab.
                    base = Gd + (kh - pad) * W - pad + q0
                    span = ql + K - 1
                    slab_a = pad_ref[ib0:ib0 + rb, base:base + span]
                    slab_m = pad_ref[block_b + ib0:block_b + ib0 + rb,
                                     base:base + span]
                    for kw in range(K):
                        t = kh * K + kw
                        j = t % NACC
                        wa = wa_ref[t:t + 1, q0:q0 + ql]
                        wm = wm_ref[t:t + 1, q0:q0 + ql]
                        acc_a[j] = acc_a[j] + wa * slab_a[:, kw:kw + ql]
                        acc_m[j] = acc_m[j] + wm * slab_m[:, kw:kw + ql]
                tot = acc_a[0] + acc_m[0]
                for j in range(1, NACC):
                    tot = tot + acc_a[j] + acc_m[j]
                o_ref[ib0:ib0 + rb, q0:q0 + ql] = (
                    jax.nn.sigmoid(tot).astype(o_ref.dtype))

    if num_c_steps == 1:
        conv_phase()
    else:
        pl.when(cstep == num_c_steps - 1)(conv_phase)


def _vmem_footprint(bb, ct, HW, Gd, K, dsz):
    """Padded VMEM bytes for one pipelined step (double-buffered blocks)."""
    lw = _round_up(HW, 128)
    xblk = 2 * bb * _round_up(ct, 8) * lw * dsz            # input blocks (x2 bufs)
    wblk = 2 * 2 * _round_up(K * K, 8) * lw * 4             # both weight-row arrays
    oblk = 2 * _round_up(bb, 8) * lw * dsz                  # output blocks (x2 bufs)
    pblk = _round_up(2 * bb, 8) * _round_up(HW + 2 * Gd, 128) * 4   # conv scratch
    return xblk + wblk + oblk + pblk


def _choose_tiling(B, C, HW, dsz, Gd, K, budget, max_block_b=32):
    def foot(bb, ct):
        return _vmem_footprint(bb, ct, HW, Gd, K, dsz)

    # Channel tile: keep the full C per step unless ~8 images worth of channel
    # slab would blow the budget; then tile C over an "arbitrary" grid axis.
    bb_t = min(B, 8)
    c_tile = C
    if foot(bb_t, C) > budget:
        cands = [d for d in _divisors(C) if d % 8 == 0 and foot(bb_t, d) <= budget]
        if not cands:
            cands = [d for d in _divisors(C) if foot(1, d) <= budget]
        # TODO(synk): add spatial (H*W) tiling for the extreme case where even a
        # single (1, H*W) channel row does not fit the VMEM budget.
        c_tile = max(cands) if cands else 1

    # Batch tile: largest sublane-friendly divisor of B that fits the budget.
    # No artificial "keep many grid steps" cap: on single-TC chips extra steps
    # only cost ~0.35us each and shrink lane/DMA efficiency.
    fits = [d for d in _divisors(B) if foot(d, c_tile) <= budget]
    pref = [d for d in fits if (d == B or d % 8 == 0) and (d <= max_block_b or d == B)]
    if pref:
        block_b = max(pref)
    elif fits:
        capped = [d for d in fits if d <= max_block_b]
        block_b = max(capped) if capped else min(fits)
    else:
        block_b = 1
    return block_b, c_tile


def spatial_attention(x, w, kernel_size=7, block_b=None, c_tile=None):
    """CBAM SpatialAttention forward.  x: (B, C, H, W), w: (1, 2, K, K)."""
    assert kernel_size in (3, 7), "kernel size must be 3 or 7"
    pad = 3 if kernel_size == 7 else 1
    K = kernel_size
    B, C, H, W = x.shape
    HW = H * W
    Gd = pad * (W + 1)                       # flat-row guard width
    dsz = jnp.dtype(x.dtype).itemsize

    # VMEM budget from the actual chip (v5e/v6e: 128 MiB, v7x: 64 MiB).
    try:
        vmem_cap = int(pltpu.get_tpu_info().vmem_capacity_bytes)
    except Exception:
        vmem_cap = 64 << 20                  # conservative (v7x-safe) fallback
    budget = max(int(vmem_cap * 3 // 4), 24 << 20)

    auto_bb, auto_ct = _choose_tiling(B, C, HW, dsz, Gd, K, budget)
    if block_b is None:
        block_b = auto_bb
    if c_tile is None:
        c_tile = auto_ct
    assert B % block_b == 0, "block_b must divide the batch"
    assert C % c_tile == 0, "c_tile must divide the channel count"
    Gb = B // block_b
    CT = C // c_tile

    # Per-tap lane weight rows over the flat (H*W) output positions.  The
    # horizontal zero-padding of the conv is folded in as a lane mask, and the
    # 1/C of the mean is folded into the avg-channel weights, so the in-kernel
    # conv is pure lane-shifted MACs on guarded flat rows.
    w2 = w.astype(jnp.float32).reshape(2, K * K)                       # (2, K*K)
    col = (jnp.arange(HW) % W)[None, :] + (jnp.arange(K * K) % K)[:, None] - pad
    mask = ((col >= 0) & (col < W)).astype(jnp.float32)                # (K*K, HW)
    wa_rows = (w2[0] * (1.0 / C))[:, None] * mask
    wm_rows = w2[1][:, None] * mask

    x3 = x.reshape(B, C, HW)      # pure metadata reshape -> lane-dense DMA rows

    RB = min(block_b, 8)                       # image rows per conv chunk
    QL = HW if HW <= 256 else 256              # lanes per conv chunk (128-aligned)
    NACC = 4 if K * K > 16 else 2              # independent accumulator chains

    kernel = functools.partial(
        _spatial_attention_kernel,
        c_tile=c_tile, num_c_steps=CT, HW=HW, W=W, K=K, pad=pad,
        block_b=block_b, RB=RB, QL=QL, NACC=NACC)

    fp = _vmem_footprint(block_b, c_tile, HW, Gd, K, dsz)
    vmem_limit = int(min(max(int(1.5 * fp) + (2 << 20), 16 << 20), budget))

    cost = pl.CostEstimate(
        flops=int(2 * B * C * HW + 4 * K * K * B * HW),
        transcendentals=int(B * HW),
        bytes_accessed=int(B * C * HW * dsz + B * HW * dsz + 2 * K * K * HW * 4))

    out_flat = pl.pallas_call(
        kernel,
        out_shape=jax.ShapeDtypeStruct((B, HW), x.dtype),
        grid_spec=pltpu.PrefetchScalarGridSpec(
            num_scalar_prefetch=0,
            grid=(Gb, CT),                      # reduction (channel) axis last
            in_specs=[
                pl.BlockSpec((block_b, c_tile, HW), lambda g, c: (g, c, 0)),
                pl.BlockSpec((K * K, HW), lambda g, c: (0, 0)),
                pl.BlockSpec((K * K, HW), lambda g, c: (0, 0)),
            ],
            out_specs=pl.BlockSpec((block_b, HW), lambda g, c: (g, 0)),
            scratch_shapes=[
                pltpu.VMEM((2 * block_b, HW + 2 * Gd), jnp.float32),
            ],
        ),
        compiler_params=pltpu.CompilerParams(
            dimension_semantics=("parallel", "arbitrary"),
            vmem_limit_bytes=vmem_limit,
        ),
        cost_estimate=cost,
    )(x3, wa_rows, wm_rows)

    # Lane-dense (B, H*W) output -> (B, 1, H, W): free metadata reshape.
    return out_flat.reshape(B, 1, H, W)


def spatial_attention_ref(x, w, kernel_size=7):
    pad = 3 if kernel_size == 7 else 1
    avg_out = jnp.mean(x, axis=1, keepdims=True)
    max_out = jnp.max(x, axis=1, keepdims=True)
    xc = jnp.concatenate([avg_out, max_out], axis=1)
    out = lax.conv_general_dilated(
        xc, w.astype(xc.dtype), window_strides=(1, 1),
        padding=[(pad, pad), (pad, pad)],
        dimension_numbers=("NCHW", "OIHW", "NCHW"))
    return jax.nn.sigmoid(out)


if __name__ == "__main__":
    key = jax.random.PRNGKey(0)
    kx, kw = jax.random.split(key)

    B, C, H, W = 2, 4, 16, 16
    K = 7

    x = jax.random.normal(kx, (B, C, H, W), dtype=jnp.float32)
    # Deterministic conv weight init (kaiming-uniform-like scale, bias-free).
    fan_in = 2 * K * K
    bound = 1.0 / (fan_in ** 0.5)
    w = jax.random.uniform(kw, (1, 2, K, K), dtype=jnp.float32,
                           minval=-bound, maxval=bound)

    out = spatial_attention(x, w, kernel_size=K)
    out = jax.block_until_ready(out)

    ref = spatial_attention_ref(x, w, kernel_size=K)
    assert out.shape == (B, 1, H, W)
    assert jnp.allclose(out, ref, atol=1e-5, rtol=1e-5), "mismatch vs reference"

    print("KERNEL_OK")
</pallas_src>

<mosaic_0001>
module attributes {stable_mosaic.version = 11 : i64} {
  func.func @_spatial_attention_kernel(%arg0: i32, %arg1: i32, %arg2: memref<2x4x256xf32, #tpu.memory_space<vmem>>, %arg3: memref<49x256xf32, #tpu.memory_space<vmem>>, %arg4: memref<49x256xf32, #tpu.memory_space<vmem>>, %arg5: memref<2x256xf32, #tpu.memory_space<vmem>>, %arg6: memref<4x358xf32, #tpu.memory_space<vmem>>) attributes {dimension_semantics = [#tpu.dimension_semantics<parallel>, #tpu.dimension_semantics<arbitrary>], iteration_bounds = array<i64: 1, 1>, scalar_prefetch = 0 : i64, scratch_operands = 1 : i64, tpu.core_type = #tpu.core_type<tc>, window_params = [{transform_indices = @transform_0, window_bounds = array<i64: 2, 4, 256>}, {pipeline_mode = #tpu.pipeline_mode<synchronous>, transform_indices = @transform_1, window_bounds = array<i64: 49, 256>}, {pipeline_mode = #tpu.pipeline_mode<synchronous>, transform_indices = @transform_2, window_bounds = array<i64: 49, 256>}, {transform_indices = @transform_3, window_bounds = array<i64: 2, 256>}]} {
    %c0 = arith.constant 0 : index
    %c0_0 = arith.constant 0 : index
    %c0_1 = arith.constant 0 : index
    %0 = vector.load %arg2[%c0, %c0_0, %c0_1] : memref<2x4x256xf32, #tpu.memory_space<vmem>>, vector<1x1x256xf32>
    %1 = vector.shape_cast %0 : vector<1x1x256xf32> to vector<1x256xf32>
    %c0_2 = arith.constant 0 : index
    %c1 = arith.constant 1 : index
    %c0_3 = arith.constant 0 : index
    %2 = vector.load %arg2[%c0_2, %c1, %c0_3] : memref<2x4x256xf32, #tpu.memory_space<vmem>>, vector<1x1x256xf32>
    %3 = vector.shape_cast %2 : vector<1x1x256xf32> to vector<1x256xf32>
    %4 = arith.addf %1, %3 : vector<1x256xf32>
    %5 = arith.maximumf %1, %3 : vector<1x256xf32>
    %c0_4 = arith.constant 0 : index
    %c2 = arith.constant 2 : index
    %c0_5 = arith.constant 0 : index
    %6 = vector.load %arg2[%c0_4, %c2, %c0_5] : memref<2x4x256xf32, #tpu.memory_space<vmem>>, vector<1x1x256xf32>
    %7 = vector.shape_cast %6 : vector<1x1x256xf32> to vector<1x256xf32>
    %8 = arith.addf %4, %7 : vector<1x256xf32>
    %9 = arith.maximumf %5, %7 : vector<1x256xf32>
    %c0_6 = arith.constant 0 : index
    %c3 = arith.constant 3 : index
    %c0_7 = arith.constant 0 : index
    %10 = vector.load %arg2[%c0_6, %c3, %c0_7] : memref<2x4x256xf32, #tpu.memory_space<vmem>>, vector<1x1x256xf32>
    %11 = vector.shape_cast %10 : vector<1x1x256xf32> to vector<1x256xf32>
    %12 = arith.addf %8, %11 : vector<1x256xf32>
    %13 = arith.maximumf %9, %11 : vector<1x256xf32>
    %c0_8 = arith.constant 0 : index
    %c51 = arith.constant 51 : index
    %14 = vector.load %arg6[%c0_8, %c51] : memref<4x358xf32, #tpu.memory_space<vmem>>, vector<1x256xf32>
    tpu.vector_store %arg6[%c0_8, %c51], %12 {strides = array<i32>} : memref<4x358xf32, #tpu.memory_space<vmem>>, vector<1x256xf32>,
    %c2_9 = arith.constant 2 : index
    %c51_10 = arith.constant 51 : index
    %15 = vector.load %arg6[%c2_9, %c51_10] : memref<4x358xf32, #tpu.memory_space<vmem>>, vector<1x256xf32>
    tpu.vector_store %arg6[%c2_9, %c51_10], %13 {strides = array<i32>} : memref<4x358xf32, #tpu.memory_space<vmem>>, vector<1x256xf32>,
    %c1_11 = arith.constant 1 : index
    %c0_12 = arith.constant 0 : index
    %c0_13 = arith.constant 0 : index
    %16 = vector.load %arg2[%c1_11, %c0_12, %c0_13] : memref<2x4x256xf32, #tpu.memory_space<vmem>>, vector<1x1x256xf32>
    %17 = vector.shape_cast %16 : vector<1x1x256xf32> to vector<1x256xf32>
    %c1_14 = arith.constant 1 : index
    %c1_15 = arith.constant 1 : index
    %c0_16 = arith.constant 0 : index
    %18 = vector.load %arg2[%c1_14, %c1_15, %c0_16] : memref<2x4x256xf32, #tpu.memory_space<vmem>>, vector<1x1x256xf32>
    %19 = vector.shape_cast %18 : vector<1x1x256xf32> to vector<1x256xf32>
    %20 = arith.addf %17, %19 : vector<1x256xf32>
    %21 = arith.maximumf %17, %19 : vector<1x256xf32>
    %c1_17 = arith.constant 1 : index
    %c2_18 = arith.constant 2 : index
    %c0_19 = arith.constant 0 : index
    %22 = vector.load %arg2[%c1_17, %c2_18, %c0_19] : memref<2x4x256xf32, #tpu.memory_space<vmem>>, vector<1x1x256xf32>
    %23 = vector.shape_cast %22 : vector<1x1x256xf32> to vector<1x256xf32>
    %24 = arith.addf %20, %23 : vector<1x256xf32>
    %25 = arith.maximumf %21, %23 : vector<1x256xf32>
    %c1_20 = arith.constant 1 : index
    %c3_21 = arith.constant 3 : index
    %c0_22 = arith.constant 0 : index
    %26 = vector.load %arg2[%c1_20, %c3_21, %c0_22] : memref<2x4x256xf32, #tpu.memory_space<vmem>>, vector<1x1x256xf32>
    %27 = vector.shape_cast %26 : vector<1x1x256xf32> to vector<1x256xf32>
    %28 = arith.addf %24, %27 : vector<1x256xf32>
    %29 = arith.maximumf %25, %27 : vector<1x256xf32>
    %c1_23 = arith.constant 1 : index
    %c51_24 = arith.constant 51 : index
    %30 = vector.load %arg6[%c1_23, %c51_24] : memref<4x358xf32, #tpu.memory_space<vmem>>, vector<1x256xf32>
    tpu.vector_store %arg6[%c1_23, %c51_24], %28 {strides = array<i32>} : memref<4x358xf32, #tpu.memory_space<vmem>>, vector<1x256xf32>,
    %c3_25 = arith.constant 3 : index
    %c51_26 = arith.constant 51 : index
    %31 = vector.load %arg6[%c3_25, %c51_26] : memref<4x358xf32, #tpu.memory_space<vmem>>, vector<1x256xf32>
    tpu.vector_store %arg6[%c3_25, %c51_26], %29 {strides = array<i32>} : memref<4x358xf32, #tpu.memory_space<vmem>>, vector<1x256xf32>,
    %cst = arith.constant 0.000000e+00 : f32
    %32 = vector.broadcast %cst : f32 to vector<4x51xf32>
    %c0_27 = arith.constant 0 : index
    %c0_28 = arith.constant 0 : index
    %33 = vector.load %arg6[%c0_27, %c0_28] : memref<4x358xf32, #tpu.memory_space<vmem>>, vector<4x51xf32>
    tpu.vector_store %arg6[%c0_27, %c0_28], %32 {strides = array<i32>} : memref<4x358xf32, #tpu.memory_space<vmem>>, vector<4x51xf32>,
    %c0_29 = arith.constant 0 : index
    %c307 = arith.constant 307 : index
    %34 = vector.load %arg6[%c0_29, %c307] : memref<4x358xf32, #tpu.memory_space<vmem>>, vector<4x51xf32>
    tpu.vector_store %arg6[%c0_29, %c307], %32 {strides = array<i32>} : memref<4x358xf32, #tpu.memory_space<vmem>>, vector<4x51xf32>,
    %cst_30 = arith.constant 0.000000e+00 : f32
    %35 = vector.broadcast %cst_30 : f32 to vector<2x256xf32>
    %cst_31 = arith.constant 0.000000e+00 : f32
    %36 = vector.broadcast %cst_31 : f32 to vector<2x256xf32>
    %cst_32 = arith.constant 0.000000e+00 : f32
    %37 = vector.broadcast %cst_32 : f32 to vector<2x256xf32>
    %cst_33 = arith.constant 0.000000e+00 : f32
    %38 = vector.broadcast %cst_33 : f32 to vector<2x256xf32>
    %cst_34 = arith.constant 0.000000e+00 : f32
    %39 = vector.broadcast %cst_34 : f32 to vector<2x256xf32>
    %cst_35 = arith.constant 0.000000e+00 : f32
    %40 = vector.broadcast %cst_35 : f32 to vector<2x256xf32>
    %cst_36 = arith.constant 0.000000e+00 : f32
    %41 = vector.broadcast %cst_36 : f32 to vector<2x256xf32>
    %cst_37 = arith.constant 0.000000e+00 : f32
    %42 = vector.broadcast %cst_37 : f32 to vector<2x256xf32>
    %c0_38 = arith.constant 0 : index
    %c0_39 = arith.constant 0 : index
    %43 = vector.load %arg6[%c0_38, %c0_39] : memref<4x358xf32, #tpu.memory_space<vmem>>, vector<2x262xf32>
    %c2_40 = arith.constant 2 : index
    %c0_41 = arith.constant 0 : index
    %44 = vector.load %arg6[%c2_40, %c0_41] : memref<4x358xf32, #tpu.memory_space<vmem>>, vector<2x262xf32>
    %c0_42 = arith.constant 0 : index
    %c0_43 = arith.constant 0 : index
    %45 = vector.load %arg3[%c0_42, %c0_43] : memref<49x256xf32, #tpu.memory_space<vmem>>, vector<1x256xf32>
    %c0_44 = arith.constant 0 : index
    %c0_45 = arith.constant 0 : index
    %46 = vector.load %arg4[%c0_44, %c0_45] : memref<49x256xf32, #tpu.memory_space<vmem>>, vector<1x256xf32>
    %47 = vector.extract_strided_slice %43 {offsets = [0, 0], sizes = [2, 256], strides = [1, 1]} : vector<2x262xf32> to vector<2x256xf32>
    %48 = vector.broadcast %45 : vector<1x256xf32> to vector<2x256xf32>
    %49 = arith.mulf %48, %47 : vector<2x256xf32>
    %50 = arith.addf %35, %49 : vector<2x256xf32>
    %51 = vector.extract_strided_slice %44 {offsets = [0, 0], sizes = [2, 256], strides = [1, 1]} : vector<2x262xf32> to vector<2x256xf32>
    %52 = vector.broadcast %46 : vector<1x256xf32> to vector<2x256xf32>
    %53 = arith.mulf %52, %51 : vector<2x256xf32>
    %54 = arith.addf %39, %53 : vector<2x256xf32>
    %c1_46 = arith.constant 1 : index
    %c0_47 = arith.constant 0 : index
    %55 = vector.load %arg3[%c1_46, %c0_47] : memref<49x256xf32, #tpu.memory_space<vmem>>, vector<1x256xf32>
    %c1_48 = arith.constant 1 : index
    %c0_49 = arith.constant 0 : index
    %56 = vector.load %arg4[%c1_48, %c0_49] : memref<49x256xf32, #tpu.memory_space<vmem>>, vector<1x256xf32>
    %57 = vector.extract_strided_slice %43 {offsets = [0, 1], sizes = [2, 256], strides = [1, 1]} : vector<2x262xf32> to vector<2x256xf32>
    %58 = vector.broadcast %55 : vector<1x256xf32> to vector<2x256xf32>
    %59 = arith.mulf %58, %57 : vector<2x256xf32>
    %60 = arith.addf %36, %59 : vector<2x256xf32>
    %61 = vector.extract_strided_slice %44 {offsets = [0, 1], sizes = [2, 256], strides = [1, 1]} : vector<2x262xf32> to vector<2x256xf32>
    %62 = vector.broadcast %56 : vector<1x256xf32> to vector<2x256xf32>
    %63 = arith.mulf %62, %61 : vector<2x256xf32>
    %64 = arith.addf %40, %63 : vector<2x256xf32>
    %c2_50 = arith.constant 2 : index
    %c0_51 = arith.constant 0 : index
    %65 = vector.load %arg3[%c2_50, %c0_51] : memref<49x256xf32, #tpu.memory_space<vmem>>, vector<1x256xf32>
    %c2_52 = arith.constant 2 : index
    %c0_53 = arith.constant 0 : index
    %66 = vector.load %arg4[%c2_52, %c0_53] : memref<49x256xf32, #tpu.memory_space<vmem>>, vector<1x256xf32>
    %67 = vector.extract_strided_slice %43 {offsets = [0, 2], sizes = [2, 256], strides = [1, 1]} : vector<2x262xf32> to vector<2x256xf32>
    %68 = vector.broadcast %65 : vector<1x256xf32> to vector<2x256xf32>
    %69 = arith.mulf %68, %67 : vector<2x256xf32>
    %70 = arith.addf %37, %69 : vector<2x256xf32>
    %71 = vector.extract_strided_slice %44 {offsets = [0, 2], sizes = [2, 256], strides = [1, 1]} : vector<2x262xf32> to vector<2x256xf32>
    %72 = vector.broadcast %66 : vector<1x256xf32> to vector<2x256xf32>
    %73 = arith.mulf %72, %71 : vector<2x256xf32>
    %74 = arith.addf %41, %73 : vector<2x256xf32>
    %c3_54 = arith.constant 3 : index
    %c0_55 = arith.constant 0 : index
    %75 = vector.load %arg3[%c3_54, %c0_55] : memref<49x256xf32, #tpu.memory_space<vmem>>, vector<1x256xf32>
    %c3_56 = arith.constant 3 : index
    %c0_57 = arith.constant 0 : index
    %76 = vector.load %arg4[%c3_56, %c0_57] : memref<49x256xf32, #tpu.memory_space<vmem>>, vector<1x256xf32>
    %77 = vector.extract_strided_slice %43 {offsets = [0, 3], sizes = [2, 256], strides = [1, 1]} : vector<2x262xf32> to vector<2x256xf32>
    %78 = vector.broadcast %75 : vector<1x256xf32> to vector<2x256xf32>
    %79 = arith.mulf %78, %77 : vector<2x256xf32>
    %80 = arith.addf %38, %79 : vector<2x256xf32>
    %81 = vector.extract_strided_slice %44 {offsets = [0, 3], sizes = [2, 256], strides = [1, 1]} : vector<2x262xf32> to vector<2x256xf32>
    %82 = vector.broadcast %76 : vector<1x256xf32> to vector<2x256xf32>
    %83 = arith.mulf %82, %81 : vector<2x256xf32>
    %84 = arith.addf %42, %83 : vector<2x256xf32>
    %c4 = arith.constant 4 : index
    %c0_58 = arith.constant 0 : index
    %85 = vector.load %arg3[%c4, %c0_58] : memref<49x256xf32, #tpu.memory_space<vmem>>, vector<1x256xf32>
    %c4_59 = arith.constant 4 : index
    %c0_60 = arith.constant 0 : index
    %86 = vector.load %arg4[%c4_59, %c0_60] : memref<49x256xf32, #tpu.memory_space<vmem>>, vector<1x256xf32>
    %87 = vector.extract_strided_slice %43 {offsets = [0, 4], sizes = [2, 256], strides = [1, 1]} : vector<2x262xf32> to vector<2x256xf32>
    %88 = vector.broadcast %85 : vector<1x256xf32> to vector<2x256xf32>
    %89 = arith.mulf %88, %87 : vector<2x256xf32>
    %90 = arith.addf %50, %89 : vector<2x256xf32>
    %91 = vector.extract_strided_slice %44 {offsets = [0, 4], sizes = [2, 256], strides = [1, 1]} : vector<2x262xf32> to vector<2x256xf32>
    %92 = vector.broadcast %86 : vector<1x256xf32> to vector<2x256xf32>
    %93 = arith.mulf %92, %91 : vector<2x256xf32>
    %94 = arith.addf %54, %93 : vector<2x256xf32>
    %c5 = arith.constant 5 : index
    %c0_61 = arith.constant 0 : index
    %95 = vector.load %arg3[%c5, %c0_61] : memref<49x256xf32, #tpu.memory_space<vmem>>, vector<1x256xf32>
    %c5_62 = arith.constant 5 : index
    %c0_63 = arith.constant 0 : index
    %96 = vector.load %arg4[%c5_62, %c0_63] : memref<49x256xf32, #tpu.memory_space<vmem>>, vector<1x256xf32>
    %97 = vector.extract_strided_slice %43 {offsets = [0, 5], sizes = [2, 256], strides = [1, 1]} : vector<2x262xf32> to vector<2x256xf32>
    %98 = vector.broadcast %95 : vector<1x256xf32> to vector<2x256xf32>
    %99 = arith.mulf %98, %97 : vector<2x256xf32>
    %100 = arith.addf %60, %99 : vector<2x256xf32>
    %101 = vector.extract_strided_slice %44 {offsets = [0, 5], sizes = [2, 256], strides = [1, 1]} : vector<2x262xf32> to vector<2x256xf32>
    %102 = vector.broadcast %96 : vector<1x256xf32> to vector<2x256xf32>
    %103 = arith.mulf %102, %101 : vector<2x256xf32>
    %104 = arith.addf %64, %103 : vector<2x256xf32>
    %c6 = arith.constant 6 : index
    %c0_64 = arith.constant 0 : index
    %105 = vector.load %arg3[%c6, %c0_64] : memref<49x256xf32, #tpu.memory_space<vmem>>, vector<1x256xf32>
    %c6_65 = arith.constant 6 : index
    %c0_66 = arith.constant 0 : index
    %106 = vector.load %arg4[%c6_65, %c0_66] : memref<49x256xf32, #tpu.memory_space<vmem>>, vector<1x256xf32>
    %107 = vector.extract_strided_slice %43 {offsets = [0, 6], sizes = [2, 256], strides = [1, 1]} : vector<2x262xf32> to vector<2x256xf32>
    %108 = vector.broadcast %105 : vector<1x256xf32> to vector<2x256xf32>
    %109 = arith.mulf %108, %107 : vector<2x256xf32>
    %110 = arith.addf %70, %109 : vector<2x256xf32>
    %111 = vector.extract_strided_slice %44 {offsets = [0, 6], sizes = [2, 256], strides = [1, 1]} : vector<2x262xf32> to vector<2x256xf32>
    %112 = vector.broadcast %106 : vector<1x256xf32> to vector<2x256xf32>
    %113 = arith.mulf %112, %111 : vector<2x256xf32>
    %114 = arith.addf %74, %113 : vector<2x256xf32>
    %c0_67 = arith.constant 0 : index
    %c16 = arith.constant 16 : index
    %115 = vector.load %arg6[%c0_67, %c16] : memref<4x358xf32, #tpu.memory_space<vmem>>, vector<2x262xf32>
    %c2_68 = arith.constant 2 : index
    %c16_69 = arith.constant 16 : index
    %116 = vector.load %arg6[%c2_68, %c16_69] : memref<4x358xf32, #tpu.memory_space<vmem>>, vector<2x262xf32>
    %c7 = arith.constant 7 : index
    %c0_70 = arith.constant 0 : index
    %117 = vector.load %arg3[%c7, %c0_70] : memref<49x256xf32, #tpu.memory_space<vmem>>, vector<1x256xf32>
    %c7_71 = arith.constant 7 : index
    %c0_72 = arith.constant 0 : index
    %118 = vector.load %arg4[%c7_71, %c0_72] : memref<49x256xf32, #tpu.memory_space<vmem>>, vector<1x256xf32>
    %119 = vector.extract_strided_slice %115 {offsets = [0, 0], sizes = [2, 256], strides = [1, 1]} : vector<2x262xf32> to vector<2x256xf32>
    %120 = vector.broadcast %117 : vector<1x256xf32> to vector<2x256xf32>
    %121 = arith.mulf %120, %119 : vector<2x256xf32>
    %122 = arith.addf %80, %121 : vector<2x256xf32>
    %123 = vector.extract_strided_slice %116 {offsets = [0, 0], sizes = [2, 256], strides = [1, 1]} : vector<2x262xf32> to vector<2x256xf32>
    %124 = vector.broadcast %118 : vector<1x256xf32> to vector<2x256xf32>
    %125 = arith.mulf %124, %123 : vector<2x256xf32>
    %126 = arith.addf %84, %125 : vector<2x256xf32>
    %c8 = arith.constant 8 : index
    %c0_73 = arith.constant 0 : index
    %127 = vector.load %arg3[%c8, %c0_73] : memref<49x256xf32, #tpu.memory_space<vmem>>, vector<1x256xf32>
    %c8_74 = arith.constant 8 : index
    %c0_75 = arith.constant 0 : index
    %128 = vector.load %arg4[%c8_74, %c0_75] : memref<49x256xf32, #tpu.memory_space<vmem>>, vector<1x256xf32>
    %129 = vector.extract_strided_slice %115 {offsets = [0, 1], sizes = [2, 256], strides = [1, 1]} : vector<2x262xf32> to vector<2x256xf32>
    %130 = vector.broadcast %127 : vector<1x256xf32> to vector<2x256xf32>
    %131 = arith.mulf %130, %129 : vector<2x256xf32>
    %132 = arith.addf %90, %131 : vector<2x256xf32>
    %133 = vector.extract_strided_slice %116 {offsets = [0, 1], sizes = [2, 256], strides = [1, 1]} : vector<2x262xf32> to vector<2x256xf32>
    %134 = vector.broadcast %128 : vector<1x256xf32> to vector<2x256xf32>
    %135 = arith.mulf %134, %133 : vector<2x256xf32>
    %136 = arith.addf %94, %135 : vector<2x256xf32>
    %c9 = arith.constant 9 : index
    %c0_76 = arith.constant 0 : index
    %137 = vector.load %arg3[%c9, %c0_76] : memref<49x256xf32, #tpu.memory_space<vmem>>, vector<1x256xf32>
    %c9_77 = arith.constant 9 : index
    %c0_78 = arith.constant 0 : index
    %138 = vector.load %arg4[%c9_77, %c0_78] : memref<49x256xf32, #tpu.memory_space<vmem>>, vector<1x256xf32>
    %139 = vector.extract_strided_slice %115 {offsets = [0, 2], sizes = [2, 256], strides = [1, 1]} : vector<2x262xf32> to vector<2x256xf32>
    %140 = vector.broadcast %137 : vector<1x256xf32> to vector<2x256xf32>
    %141 = arith.mulf %140, %139 : vector<2x256xf32>
    %142 = arith.addf %100, %141 : vector<2x256xf32>
    %143 = vector.extract_strided_slice %116 {offsets = [0, 2], sizes = [2, 256], strides = [1, 1]} : vector<2x262xf32> to vector<2x256xf32>
    %144 = vector.broadcast %138 : vector<1x256xf32> to vector<2x256xf32>
    %145 = arith.mulf %144, %143 : vector<2x256xf32>
    %146 = arith.addf %104, %145 : vector<2x256xf32>
    %c10 = arith.constant 10 : index
    %c0_79 = arith.constant 0 : index
    %147 = vector.load %arg3[%c10, %c0_79] : memref<49x256xf32, #tpu.memory_space<vmem>>, vector<1x256xf32>
    %c10_80 = arith.constant 10 : index
    %c0_81 = arith.constant 0 : index
    %148 = vector.load %arg4[%c10_80, %c0_81] : memref<49x256xf32, #tpu.memory_space<vmem>>, vector<1x256xf32>
    %149 = vector.extract_strided_slice %115 {offsets = [0, 3], sizes = [2, 256], strides = [1, 1]} : vector<2x262xf32> to vector<2x256xf32>
    %150 = vector.broadcast %147 : vector<1x256xf32> to vector<2x256xf32>
    %151 = arith.mulf %150, %149 : vector<2x256xf32>
    %152 = arith.addf %110, %151 : vector<2x256xf32>
    %153 = vector.extract_strided_slice %116 {offsets = [0, 3], sizes = [2, 256], strides = [1, 1]} : vector<2x262xf32> to vector<2x256xf32>
    %154 = vector.broadcast %148 : vector<1x256xf32> to vector<2x256xf32>
    %155 = arith.mulf %154, %153 : vector<2x256xf32>
    %156 = arith.addf %114, %155 : vector<2x256xf32>
    %c11 = arith.constant 11 : index
    %c0_82 = arith.constant 0 : index
    %157 = vector.load %arg3[%c11, %c0_82] : memref<49x256xf32, #tpu.memory_space<vmem>>, vector<1x256xf32>
    %c11_83 = arith.constant 11 : index
    %c0_84 = arith.constant 0 : index
    %158 = vector.load %arg4[%c11_83, %c0_84] : memref<49x256xf32, #tpu.memory_space<vmem>>, vector<1x256xf32>
    %159 = vector.extract_strided_slice %115 {offsets = [0, 4], sizes = [2, 256], strides = [1, 1]} : vector<2x262xf32> to vector<2x256xf32>
    %160 = vector.broadcast %157 : vector<1x256xf32> to vector<2x256xf32>
    %161 = arith.mulf %160, %159 : vector<2x256xf32>
    %162 = arith.addf %122, %161 : vector<2x256xf32>
    %163 = vector.extract_strided_slice %116 {offsets = [0, 4], sizes = [2, 256], strides = [1, 1]} : vector<2x262xf32> to vector<2x256xf32>
    %164 = vector.broadcast %158 : vector<1x256xf32> to vector<2x256xf32>
    %165 = arith.mulf %164, %163 : vector<2x256xf32>
    %166 = arith.addf %126, %165 : vector<2x256xf32>
    %c12 = arith.constant 12 : index
    %c0_85 = arith.constant 0 : index
    %167 = vector.load %arg3[%c12, %c0_85] : memref<49x256xf32, #tpu.memory_space<vmem>>, vector<1x256xf32>
    %c12_86 = arith.constant 12 : index
    %c0_87 = arith.constant 0 : index
    %168 = vector.load %arg4[%c12_86, %c0_87] : memref<49x256xf32, #tpu.memory_space<vmem>>, vector<1x256xf32>
    %169 = vector.extract_strided_slice %115 {offsets = [0, 5], sizes = [2, 256], strides = [1, 1]} : vector<2x262xf32> to vector<2x256xf32>
    %170 = vector.broadcast %167 : vector<1x256xf32> to vector<2x256xf32>
    %171 = arith.mulf %170, %169 : vector<2x256xf32>
    %172 = arith.addf %132, %171 : vector<2x256xf32>
    %173 = vector.extract_strided_slice %116 {offsets = [0, 5], sizes = [2, 256], strides = [1, 1]} : vector<2x262xf32> to vector<2x256xf32>
    %174 = vector.broadcast %168 : vector<1x256xf32> to vector<2x256xf32>
    %175 = arith.mulf %174, %173 : vector<2x256xf32>
    %176 = arith.addf %136, %175 : vector<2x256xf32>
    %c13 = arith.constant 13 : index
    %c0_88 = arith.constant 0 : index
    %177 = vector.load %arg3[%c13, %c0_88] : memref<49x256xf32, #tpu.memory_space<vmem>>, vector<1x256xf32>
    %c13_89 = arith.constant 13 : index
    %c0_90 = arith.constant 0 : index
    %178 = vector.load %arg4[%c13_89, %c0_90] : memref<49x256xf32, #tpu.memory_space<vmem>>, vector<1x256xf32>
    %179 = vector.extract_strided_slice %115 {offsets = [0, 6], sizes = [2, 256], strides = [1, 1]} : vector<2x262xf32> to vector<2x256xf32>
    %180 = vector.broadcast %177 : vector<1x256xf32> to vector<2x256xf32>
    %181 = arith.mulf %180, %179 : vector<2x256xf32>
    %182 = arith.addf %142, %181 : vector<2x256xf32>
    %183 = vector.extract_strided_slice %116 {offsets = [0, 6], sizes = [2, 256], strides = [1, 1]} : vector<2x262xf32> to vector<2x256xf32>
    %184 = vector.broadcast %178 : vector<1x256xf32> to vector<2x256xf32>
    %185 = arith.mulf %184, %183 : vector<2x256xf32>
    %186 = arith.addf %146, %185 : vector<2x256xf32>
    %c0_91 = arith.constant 0 : index
    %c32 = arith.constant 32 : index
    %187 = vector.load %arg6[%c0_91, %c32] : memref<4x358xf32, #tpu.memory_space<vmem>>, vector<2x262xf32>
    %c2_92 = arith.constant 2 : index
    %c32_93 = arith.constant 32 : index
    %188 = vector.load %arg6[%c2_92, %c32_93] : memref<4x358xf32, #tpu.memory_space<vmem>>, vector<2x262xf32>
    %c14 = arith.constant 14 : index
    %c0_94 = arith.constant 0 : index
    %189 = vector.load %arg3[%c14, %c0_94] : memref<49x256xf32, #tpu.memory_space<vmem>>, vector<1x256xf32>
    %c14_95 = arith.constant 14 : index
    %c0_96 = arith.constant 0 : index
    %190 = vector.load %arg4[%c14_95, %c0_96] : memref<49x256xf32, #tpu.memory_space<vmem>>, vector<1x256xf32>
    %191 = vector.extract_strided_slice %187 {offsets = [0, 0], sizes = [2, 256], strides = [1, 1]} : vector<2x262xf32> to vector<2x256xf32>
    %192 = vector.broadcast %189 : vector<1x256xf32> to vector<2x256xf32>
    %193 = arith.mulf %192, %191 : vector<2x256xf32>
    %194 = arith.addf %152, %193 : vector<2x256xf32>
    %195 = vector.extract_strided_slice %188 {offsets = [0, 0], sizes = [2, 256], strides = [1, 1]} : vector<2x262xf32> to vector<2x256xf32>
    %196 = vector.broadcast %190 : vector<1x256xf32> to vector<2x256xf32>
    %197 = arith.mulf %196, %195 : vector<2x256xf32>
    %198 = arith.addf %156, %197 : vector<2x256xf32>
    %c15 = arith.constant 15 : index
    %c0_97 = arith.constant 0 : index
    %199 = vector.load %arg3[%c15, %c0_97] : memref<49x256xf32, #tpu.memory_space<vmem>>, vector<1x256xf32>
    %c15_98 = arith.constant 15 : index
    %c0_99 = arith.constant 0 : index
    %200 = vector.load %arg4[%c15_98, %c0_99] : memref<49x256xf32, #tpu.memory_space<vmem>>, vector<1x256xf32>
    %201 = vector.extract_strided_slice %187 {offsets = [0, 1], sizes = [2, 256], strides = [1, 1]} : vector<2x262xf32> to vector<2x256xf32>
    %202 = vector.broadcast %199 : vector<1x256xf32> to vector<2x256xf32>
    %203 = arith.mulf %202, %201 : vector<2x256xf32>
    %204 = arith.addf %162, %203 : vector<2x256xf32>
    %205 = vector.extract_strided_slice %188 {offsets = [0, 1], sizes = [2, 256], strides = [1, 1]} : vector<2x262xf32> to vector<2x256xf32>
    %206 = vector.broadcast %200 : vector<1x256xf32> to vector<2x256xf32>
    %207 = arith.mulf %206, %205 : vector<2x256xf32>
    %208 = arith.addf %166, %207 : vector<2x256xf32>
    %c16_100 = arith.constant 16 : index
    %c0_101 = arith.constant 0 : index
    %209 = vector.load %arg3[%c16_100, %c0_101] : memref<49x256xf32, #tpu.memory_space<vmem>>, vector<1x256xf32>
    %c16_102 = arith.constant 16 : index
    %c0_103 = arith.constant 0 : index
    %210 = vector.load %arg4[%c16_102, %c0_103] : memref<49x256xf32, #tpu.memory_space<vmem>>, vector<1x256xf32>
    %211 = vector.extract_strided_slice %187 {offsets = [0, 2], sizes = [2, 256], strides = [1, 1]} : vector<2x262xf32> to vector<2x256xf32>
    %212 = vector.broadcast %209 : vector<1x256xf32> to vector<2x256xf32>
    %213 = arith.mulf %212, %211 : vector<2x256xf32>
    %214 = arith.addf %172, %213 : vector<2x256xf32>
    %215 = vector.extract_strided_slice %188 {offsets = [0, 2], sizes = [2, 256], strides = [1, 1]} : vector<2x262xf32> to vector<2x256xf32>
    %216 = vector.broadcast %210 : vector<1x256xf32> to vector<2x256xf32>
    %217 = arith.mulf %216, %215 : vector<2x256xf32>
    %218 = arith.addf %176, %217 : vector<2x256xf32>
    %c17 = arith.constant 17 : index
    %c0_104 = arith.constant 0 : index
    %219 = vector.load %arg3[%c17, %c0_104] : memref<49x256xf32, #tpu.memory_space<vmem>>, vector<1x256xf32>
    %c17_105 = arith.constant 17 : index
    %c0_106 = arith.constant 0 : index
    %220 = vector.load %arg4[%c17_105, %c0_106] : memref<49x256xf32, #tpu.memory_space<vmem>>, vector<1x256xf32>
    %221 = vector.extract_strided_slice %187 {offsets = [0, 3], sizes = [2, 256], strides = [1, 1]} : vector<2x262xf32> to vector<2x256xf32>
    %222 = vector.broadcast %219 : vector<1x256xf32> to vector<2x256xf32>
    %223 = arith.mulf %222, %221 : vector<2x256xf32>
    %224 = arith.addf %182, %223 : vector<2x256xf32>
    %225 = vector.extract_strided_slice %188 {offsets = [0, 3], sizes = [2, 256], strides = [1, 1]} : vector<2x262xf32> to vector<2x256xf32>
    %226 = vector.broadcast %220 : vector<1x256xf32> to vector<2x256xf32>
    %227 = arith.mulf %226, %225 : vector<2x256xf32>
    %228 = arith.addf %186, %227 : vector<2x256xf32>
    %c18 = arith.constant 18 : index
    %c0_107 = arith.constant 0 : index
    %229 = vector.load %arg3[%c18, %c0_107] : memref<49x256xf32, #tpu.memory_space<vmem>>, vector<1x256xf32>
    %c18_108 = arith.constant 18 : index
    %c0_109 = arith.constant 0 : index
    %230 = vector.load %arg4[%c18_108, %c0_109] : memref<49x256xf32, #tpu.memory_space<vmem>>, vector<1x256xf32>
    %231 = vector.extract_strided_slice %187 {offsets = [0, 4], sizes = [2, 256], strides = [1, 1]} : vector<2x262xf32> to vector<2x256xf32>
    %232 = vector.broadcast %229 : vector<1x256xf32> to vector<2x256xf32>
    %233 = arith.mulf %232, %231 : vector<2x256xf32>
    %234 = arith.addf %194, %233 : vector<2x256xf32>
    %235 = vector.extract_strided_slice %188 {offsets = [0, 4], sizes = [2, 256], strides = [1, 1]} : vector<2x262xf32> to vector<2x256xf32>
    %236 = vector.broadcast %230 : vector<1x256xf32> to vector<2x256xf32>
    %237 = arith.mulf %236, %235 : vector<2x256xf32>
    %238 = arith.addf %198, %237 : vector<2x256xf32>
    %c19 = arith.constant 19 : index
    %c0_110 = arith.constant 0 : index
    %239 = vector.load %arg3[%c19, %c0_110] : memref<49x256xf32, #tpu.memory_space<vmem>>, vector<1x256xf32>
    %c19_111 = arith.constant 19 : index
    %c0_112 = arith.constant 0 : index
    %240 = vector.load %arg4[%c19_111, %c0_112] : memref<49x256xf32, #tpu.memory_space<vmem>>, vector<1x256xf32>
    %241 = vector.extract_strided_slice %187 {offsets = [0, 5], sizes = [2, 256], strides = [1, 1]} : vector<2x262xf32> to vector<2x256xf32>
    %242 = vector.broadcast %239 : vector<1x256xf32> to vector<2x256xf32>
    %243 = arith.mulf %242, %241 : vector<2x256xf32>
    %244 = arith.addf %204, %243 : vector<2x256xf32>
    %245 = vector.extract_strided_slice %188 {offsets = [0, 5], sizes = [2, 256], strides = [1, 1]} : vector<2x262xf32> to vector<2x256xf32>
    %246 = vector.broadcast %240 : vector<1x256xf32> to vector<2x256xf32>
    %247 = arith.mulf %246, %245 : vector<2x256xf32>
    %248 = arith.addf %208, %247 : vector<2x256xf32>
    %c20 = arith.constant 20 : index
    %c0_113 = arith.constant 0 : index
    %249 = vector.load %arg3[%c20, %c0_113] : memref<49x256xf32, #tpu.memory_space<vmem>>, vector<1x256xf32>
    %c20_114 = arith.constant 20 : index
    %c0_115 = arith.constant 0 : index
    %250 = vector.load %arg4[%c20_114, %c0_115] : memref<49x256xf32, #tpu.memory_space<vmem>>, vector<1x256xf32>
    %251 = vector.extract_strided_slice %187 {offsets = [0, 6], sizes = [2, 256], strides = [1, 1]} : vector<2x262xf32> to vector<2x256xf32>
    %252 = vector.broadcast %249 : vector<1x256xf32> to vector<2x256xf32>
    %253 = arith.mulf %252, %251 : vector<2x256xf32>
    %254 = arith.addf %214, %253 : vector<2x256xf32>
    %255 = vector.extract_strided_slice %188 {offsets = [0, 6], sizes = [2, 256], strides = [1, 1]} : vector<2x262xf32> to vector<2x256xf32>
    %256 = vector.broadcast %250 : vector<1x256xf32> to vector<2x256xf32>
    %257 = arith.mulf %256, %255 : vector<2x256xf32>
    %258 = arith.addf %218, %257 : vector<2x256xf32>
    %c0_116 = arith.constant 0 : index
    %c48 = arith.constant 48 : index
    %259 = vector.load %arg6[%c0_116, %c48] : memref<4x358xf32, #tpu.memory_space<vmem>>, vector<2x262xf32>
    %c2_117 = arith.constant 2 : index
    %c48_118 = arith.constant 48 : index
    %260 = vector.load %arg6[%c2_117, %c48_118] : memref<4x358xf32, #tpu.memory_space<vmem>>, vector<2x262xf32>
    %c21 = arith.constant 21 : index
    %c0_119 = arith.constant 0 : index
    %261 = vector.load %arg3[%c21, %c0_119] : memref<49x256xf32, #tpu.memory_space<vmem>>, vector<1x256xf32>
    %c21_120 = arith.constant 21 : index
    %c0_121 = arith.constant 0 : index
    %262 = vector.load %arg4[%c21_120, %c0_121] : memref<49x256xf32, #tpu.memory_space<vmem>>, vector<1x256xf32>
    %263 = vector.extract_strided_slice %259 {offsets = [0, 0], sizes = [2, 256], strides = [1, 1]} : vector<2x262xf32> to vector<2x256xf32>
    %264 = vector.broadcast %261 : vector<1x256xf32> to vector<2x256xf32>
    %265 = arith.mulf %264, %263 : vector<2x256xf32>
    %266 = arith.addf %224, %265 : vector<2x256xf32>
    %267 = vector.extract_strided_slice %260 {offsets = [0, 0], sizes = [2, 256], strides = [1, 1]} : vector<2x262xf32> to vector<2x256xf32>
    %268 = vector.broadcast %262 : vector<1x256xf32> to vector<2x256xf32>
    %269 = arith.mulf %268, %267 : vector<2x256xf32>
    %270 = arith.addf %228, %269 : vector<2x256xf32>
    %c22 = arith.constant 22 : index
    %c0_122 = arith.constant 0 : index
    %271 = vector.load %arg3[%c22, %c0_122] : memref<49x256xf32, #tpu.memory_space<vmem>>, vector<1x256xf32>
    %c22_123 = arith.constant 22 : index
    %c0_124 = arith.constant 0 : index
    %272 = vector.load %arg4[%c22_123, %c0_124] : memref<49x256xf32, #tpu.memory_space<vmem>>, vector<1x256xf32>
    %273 = vector.extract_strided_slice %259 {offsets = [0, 1], sizes = [2, 256], strides = [1, 1]} : vector<2x262xf32> to vector<2x256xf32>
    %274 = vector.broadcast %271 : vector<1x256xf32> to vector<2x256xf32>
    %275 = arith.mulf %274, %273 : vector<2x256xf32>
    %276 = arith.addf %234, %275 : vector<2x256xf32>
    %277 = vector.extract_strided_slice %260 {offsets = [0, 1], sizes = [2, 256], strides = [1, 1]} : vector<2x262xf32> to vector<2x256xf32>
    %278 = vector.broadcast %272 : vector<1x256xf32> to vector<2x256xf32>
    %279 = arith.mulf %278, %277 : vector<2x256xf32>
    %280 = arith.addf %238, %279 : vector<2x256xf32>
    %c23 = arith.constant 23 : index
    %c0_125 = arith.constant 0 : index
    %281 = vector.load %arg3[%c23, %c0_125] : memref<49x256xf32, #tpu.memory_space<vmem>>, vector<1x256xf32>
    %c23_126 = arith.constant 23 : index
    %c0_127 = arith.constant 0 : index
    %282 = vector.load %arg4[%c23_126, %c0_127] : memref<49x256xf32, #tpu.memory_space<vmem>>, vector<1x256xf32>
    %283 = vector.extract_strided_slice %259 {offsets = [0, 2], sizes = [2, 256], strides = [1, 1]} : vector<2x262xf32> to vector<2x256xf32>
    %284 = vector.broadcast %281 : vector<1x256xf32> to vector<2x256xf32>
    %285 = arith.mulf %284, %283 : vector<2x256xf32>
    %286 = arith.addf %244, %285 : vector<2x256xf32>
    %287 = vector.extract_strided_slice %260 {offsets = [0, 2], sizes = [2, 256], strides = [1, 1]} : vector<2x262xf32> to vector<2x256xf32>
    %288 = vector.broadcast %282 : vector<1x256xf32> to vector<2x256xf32>
    %289 = arith.mulf %288, %287 : vector<2x256xf32>
    %290 = arith.addf %248, %289 : vector<2x256xf32>
    %c24 = arith.constant 24 : index
    %c0_128 = arith.constant 0 : index
    %291 = vector.load %arg3[%c24, %c0_128] : memref<49x256xf32, #tpu.memory_space<vmem>>, vector<1x256xf32>
    %c24_129 = arith.constant 24 : index
    %c0_130 = arith.constant 0 : index
    %292 = vector.load %arg4[%c24_129, %c0_130] : memref<49x256xf32, #tpu.memory_space<vmem>>, vector<1x256xf32>
    %293 = vector.extract_strided_slice %259 {offsets = [0, 3], sizes = [2, 256], strides = [1, 1]} : vector<2x262xf32> to vector<2x256xf32>
    %294 = vector.broadcast %291 : vector<1x256xf32> to vector<2x256xf32>
    %295 = arith.mulf %294, %293 : vector<2x256xf32>
    %296 = arith.addf %254, %295 : vector<2x256xf32>
    %297 = vector.extract_strided_slice %260 {offsets = [0, 3], sizes = [2, 256], strides = [1, 1]} : vector<2x262xf32> to vector<2x256xf32>
    %298 = vector.broadcast %292 : vector<1x256xf32> to vector<2x256xf32>
    %299 = arith.mulf %298, %297 : vector<2x256xf32>
    %300 = arith.addf %258, %299 : vector<2x256xf32>
    %c25 = arith.constant 25 : index
    %c0_131 = arith.constant 0 : index
    %301 = vector.load %arg3[%c25, %c0_131] : memref<49x256xf32, #tpu.memory_space<vmem>>, vector<1x256xf32>
    %c25_132 = arith.constant 25 : index
    %c0_133 = arith.constant 0 : index
    %302 = vector.load %arg4[%c25_132, %c0_133] : memref<49x256xf32, #tpu.memory_space<vmem>>, vector<1x256xf32>
    %303 = vector.extract_strided_slice %259 {offsets = [0, 4], sizes = [2, 256], strides = [1, 1]} : vector<2x262xf32> to vector<2x256xf32>
    %304 = vector.broadcast %301 : vector<1x256xf32> to vector<2x256xf32>
    %305 = arith.mulf %304, %303 : vector<2x256xf32>
    %306 = arith.addf %266, %305 : vector<2x256xf32>
    %307 = vector.extract_strided_slice %260 {offsets = [0, 4], sizes = [2, 256], strides = [1, 1]} : vector<2x262xf32> to vector<2x256xf32>
    %308 = vector.broadcast %302 : vector<1x256xf32> to vector<2x256xf32>
    %309 = arith.mulf %308, %307 : vector<2x256xf32>
    %310 = arith.addf %270, %309 : vector<2x256xf32>
    %c26 = arith.constant 26 : index
    %c0_134 = arith.constant 0 : index
    %311 = vector.load %arg3[%c26, %c0_134] : memref<49x256xf32, #tpu.memory_space<vmem>>, vector<1x256xf32>
    %c26_135 = arith.constant 26 : index
    %c0_136 = arith.constant 0 : index
    %312 = vector.load %arg4[%c26_135, %c0_136] : memref<49x256xf32, #tpu.memory_space<vmem>>, vector<1x256xf32>
    %313 = vector.extract_strided_slice %259 {offsets = [0, 5], sizes = [2, 256], strides = [1, 1]} : vector<2x262xf32> to vector<2x256xf32>
    %314 = vector.broadcast %311 : vector<1x256xf32> to vector<2x256xf32>
    %315 = arith.mulf %314, %313 : vector<2x256xf32>
    %316 = arith.addf %276, %315 : vector<2x256xf32>
    %317 = vector.extract_strided_slice %260 {offsets = [0, 5], sizes = [2, 256], strides = [1, 1]} : vector<2x262xf32> to vector<2x256xf32>
    %318 = vector.broadcast %312 : vector<1x256xf32> to vector<2x256xf32>
    %319 = arith.mulf %318, %317 : vector<2x256xf32>
    %320 = arith.addf %280, %319 : vector<2x256xf32>
    %c27 = arith.constant 27 : index
    %c0_137 = arith.constant 0 : index
    %321 = vector.load %arg3[%c27, %c0_137] : memref<49x256xf32, #tpu.memory_space<vmem>>, vector<1x256xf32>
    %c27_138 = arith.constant 27 : index
    %c0_139 = arith.constant 0 : index
    %322 = vector.load %arg4[%c27_138, %c0_139] : memref<49x256xf32, #tpu.memory_space<vmem>>, vector<1x256xf32>
    %323 = vector.extract_strided_slice %259 {offsets = [0, 6], sizes = [2, 256], strides = [1, 1]} : vector<2x262xf32> to vector<2x256xf32>
    %324 = vector.broadcast %321 : vector<1x256xf32> to vector<2x256xf32>
    %325 = arith.mulf %324, %323 : vector<2x256xf32>
    %326 = arith.addf %286, %325 : vector<2x256xf32>
    %327 = vector.extract_strided_slice %260 {offsets = [0, 6], sizes = [2, 256], strides = [1, 1]} : vector<2x262xf32> to vector<2x256xf32>
    %328 = vector.broadcast %322 : vector<1x256xf32> to vector<2x256xf32>
    %329 = arith.mulf %328, %327 : vector<2x256xf32>
    %330 = arith.addf %290, %329 : vector<2x256xf32>
    %c0_140 = arith.constant 0 : index
    %c64 = arith.constant 64 : index
    %331 = vector.load %arg6[%c0_140, %c64] : memref<4x358xf32, #tpu.memory_space<vmem>>, vector<2x262xf32>
    %c2_141 = arith.constant 2 : index
    %c64_142 = arith.constant 64 : index
    %332 = vector.load %arg6[%c2_141, %c64_142] : memref<4x358xf32, #tpu.memory_space<vmem>>, vector<2x262xf32>
    %c28 = arith.constant 28 : index
    %c0_143 = arith.constant 0 : index
    %333 = vector.load %arg3[%c28, %c0_143] : memref<49x256xf32, #tpu.memory_space<vmem>>, vector<1x256xf32>
    %c28_144 = arith.constant 28 : index
    %c0_145 = arith.constant 0 : index
    %334 = vector.load %arg4[%c28_144, %c0_145] : memref<49x256xf32, #tpu.memory_space<vmem>>, vector<1x256xf32>
    %335 = vector.extract_strided_slice %331 {offsets = [0, 0], sizes = [2, 256], strides = [1, 1]} : vector<2x262xf32> to vector<2x256xf32>
    %336 = vector.broadcast %333 : vector<1x256xf32> to vector<2x256xf32>
    %337 = arith.mulf %336, %335 : vector<2x256xf32>
    %338 = arith.addf %296, %337 : vector<2x256xf32>
    %339 = vector.extract_strided_slice %332 {offsets = [0, 0], sizes = [2, 256], strides = [1, 1]} : vector<2x262xf32> to vector<2x256xf32>
    %340 = vector.broadcast %334 : vector<1x256xf32> to vector<2x256xf32>
    %341 = arith.mulf %340, %339 : vector<2x256xf32>
    %342 = arith.addf %300, %341 : vector<2x256xf32>
    %c29 = arith.constant 29 : index
    %c0_146 = arith.constant 0 : index
    %343 = vector.load %arg3[%c29, %c0_146] : memref<49x256xf32, #tpu.memory_space<vmem>>, vector<1x256xf32>
    %c29_147 = arith.constant 29 : index
    %c0_148 = arith.constant 0 : index
    %344 = vector.load %arg4[%c29_147, %c0_148] : memref<49x256xf32, #tpu.memory_space<vmem>>, vector<1x256xf32>
    %345 = vector.extract_strided_slice %331 {offsets = [0, 1], sizes = [2, 256], strides = [1, 1]} : vector<2x262xf32> to vector<2x256xf32>
    %346 = vector.broadcast %343 : vector<1x256xf32> to vector<2x256xf32>
    %347 = arith.mulf %346, %345 : vector<2x256xf32>
    %348 = arith.addf %306, %347 : vector<2x256xf32>
    %349 = vector.extract_strided_slice %332 {offsets = [0, 1], sizes = [2, 256], strides = [1, 1]} : vector<2x262xf32> to vector<2x256xf32>
    %350 = vector.broadcast %344 : vector<1x256xf32> to vector<2x256xf32>
    %351 = arith.mulf %350, %349 : vector<2x256xf32>
    %352 = arith.addf %310, %351 : vector<2x256xf32>
    %c30 = arith.constant 30 : index
    %c0_149 = arith.constant 0 : index
    %353 = vector.load %arg3[%c30, %c0_149] : memref<49x256xf32, #tpu.memory_space<vmem>>, vector<1x256xf32>
    %c30_150 = arith.constant 30 : index
    %c0_151 = arith.constant 0 : index
    %354 = vector.load %arg4[%c30_150, %c0_151] : memref<49x256xf32, #tpu.memory_space<vmem>>, vector<1x256xf32>
    %355 = vector.extract_strided_slice %331 {offsets = [0, 2], sizes = [2, 256], strides = [1, 1]} : vector<2x262xf32> to vector<2x256xf32>
    %356 = vector.broadcast %353 : vector<1x256xf32> to vector<2x256xf32>
    %357 = arith.mulf %356, %355 : vector<2x256xf32>
    %358 = arith.addf %316, %357 : vector<2x256xf32>
    %359 = vector.extract_strided_slice %332 {offsets = [0, 2], sizes = [2, 256], strides = [1, 1]} : vector<2x262xf32> to vector<2x256xf32>
    %360 = vector.broadcast %354 : vector<1x256xf32> to vector<2x256xf32>
    %361 = arith.mulf %360, %359 : vector<2x256xf32>
    %362 = arith.addf %320, %361 : vector<2x256xf32>
    %c31 = arith.constant 31 : index
    %c0_152 = arith.constant 0 : index
    %363 = vector.load %arg3[%c31, %c0_152] : memref<49x256xf32, #tpu.memory_space<vmem>>, vector<1x256xf32>
    %c31_153 = arith.constant 31 : index
    %c0_154 = arith.constant 0 : index
    %364 = vector.load %arg4[%c31_153, %c0_154] : memref<49x256xf32, #tpu.memory_space<vmem>>, vector<1x256xf32>
    %365 = vector.extract_strided_slice %331 {offsets = [0, 3], sizes = [2, 256], strides = [1, 1]} : vector<2x262xf32> to vector<2x256xf32>
    %366 = vector.broadcast %363 : vector<1x256xf32> to vector<2x256xf32>
    %367 = arith.mulf %366, %365 : vector<2x256xf32>
    %368 = arith.addf %326, %367 : vector<2x256xf32>
    %369 = vector.extract_strided_slice %332 {offsets = [0, 3], sizes = [2, 256], strides = [1, 1]} : vector<2x262xf32> to vector<2x256xf32>
    %370 = vector.broadcast %364 : vector<1x256xf32> to vector<2x256xf32>
    %371 = arith.mulf %370, %369 : vector<2x256xf32>
    %372 = arith.addf %330, %371 : vector<2x256xf32>
    %c32_155 = arith.constant 32 : index
    %c0_156 = arith.constant 0 : index
    %373 = vector.load %arg3[%c32_155, %c0_156] : memref<49x256xf32, #tpu.memory_space<vmem>>, vector<1x256xf32>
    %c32_157 = arith.constant 32 : index
    %c0_158 = arith.constant 0 : index
    %374 = vector.load %arg4[%c32_157, %c0_158] : memref<49x256xf32, #tpu.memory_space<vmem>>, vector<1x256xf32>
    %375 = vector.extract_strided_slice %331 {offsets = [0, 4], sizes = [2, 256], strides = [1, 1]} : vector<2x262xf32> to vector<2x256xf32>
    %376 = vector.broadcast %373 : vector<1x256xf32> to vector<2x256xf32>
    %377 = arith.mulf %376, %375 : vector<2x256xf32>
    %378 = arith.addf %338, %377 : vector<2x256xf32>
    %379 = vector.extract_strided_slice %332 {offsets = [0, 4], sizes = [2, 256], strides = [1, 1]} : vector<2x262xf32> to vector<2x256xf32>
    %380 = vector.broadcast %374 : vector<1x256xf32> to vector<2x256xf32>
    %381 = arith.mulf %380, %379 : vector<2x256xf32>
    %382 = arith.addf %342, %381 : vector<2x256xf32>
    %c33 = arith.constant 33 : index
    %c0_159 = arith.constant 0 : index
    %383 = vector.load %arg3[%c33, %c0_159] : memref<49x256xf32, #tpu.memory_space<vmem>>, vector<1x256xf32>
    %c33_160 = arith.constant 33 : index
    %c0_161 = arith.constant 0 : index
    %384 = vector.load %arg4[%c33_160, %c0_161] : memref<49x256xf32, #tpu.memory_space<vmem>>, vector<1x256xf32>
    %385 = vector.extract_strided_slice %331 {offsets = [0, 5], sizes = [2, 256], strides = [1, 1]} : vector<2x262xf32> to vector<2x256xf32>
    %386 = vector.broadcast %383 : vector<1x256xf32> to vector<2x256xf32>
    %387 = arith.mulf %386, %385 : vector<2x256xf32>
    %388 = arith.addf %348, %387 : vector<2x256xf32>
    %389 = vector.extract_strided_slice %332 {offsets = [0, 5], sizes = [2, 256], strides = [1, 1]} : vector<2x262xf32> to vector<2x256xf32>
    %390 = vector.broadcast %384 : vector<1x256xf32> to vector<2x256xf32>
    %391 = arith.mulf %390, %389 : vector<2x256xf32>
    %392 = arith.addf %352, %391 : vector<2x256xf32>
    %c34 = arith.constant 34 : index
    %c0_162 = arith.constant 0 : index
    %393 = vector.load %arg3[%c34, %c0_162] : memref<49x256xf32, #tpu.memory_space<vmem>>, vector<1x256xf32>
    %c34_163 = arith.constant 34 : index
    %c0_164 = arith.constant 0 : index
    %394 = vector.load %arg4[%c34_163, %c0_164] : memref<49x256xf32, #tpu.memory_space<vmem>>, vector<1x256xf32>
    %395 = vector.extract_strided_slice %331 {offsets = [0, 6], sizes = [2, 256], strides = [1, 1]} : vector<2x262xf32> to vector<2x256xf32>
    %396 = vector.broadcast %393 : vector<1x256xf32> to vector<2x256xf32>
    %397 = arith.mulf %396, %395 : vector<2x256xf32>
    %398 = arith.addf %358, %397 : vector<2x256xf32>
    %399 = vector.extract_strided_slice %332 {offsets = [0, 6], sizes = [2, 256], strides = [1, 1]} : vector<2x262xf32> to vector<2x256xf32>
    %400 = vector.broadcast %394 : vector<1x256xf32> to vector<2x256xf32>
    %401 = arith.mulf %400, %399 : vector<2x256xf32>
    %402 = arith.addf %362, %401 : vector<2x256xf32>
    %c0_165 = arith.constant 0 : index
    %c80 = arith.constant 80 : index
    %403 = vector.load %arg6[%c0_165, %c80] : memref<4x358xf32, #tpu.memory_space<vmem>>, vector<2x262xf32>
    %c2_166 = arith.constant 2 : index
    %c80_167 = arith.constant 80 : index
    %404 = vector.load %arg6[%c2_166, %c80_167] : memref<4x358xf32, #tpu.memory_space<vmem>>, vector<2x262xf32>
    %c35 = arith.constant 35 : index
    %c0_168 = arith.constant 0 : index
    %405 = vector.load %arg3[%c35, %c0_168] : memref<49x256xf32, #tpu.memory_space<vmem>>, vector<1x256xf32>
    %c35_169 = arith.constant 35 : index
    %c0_170 = arith.constant 0 : index
    %406 = vector.load %arg4[%c35_169, %c0_170] : memref<49x256xf32, #tpu.memory_space<vmem>>, vector<1x256xf32>
    %407 = vector.extract_strided_slice %403 {offsets = [0, 0], sizes = [2, 256], strides = [1, 1]} : vector<2x262xf32> to vector<2x256xf32>
    %408 = vector.broadcast %405 : vector<1x256xf32> to vector<2x256xf32>
    %409 = arith.mulf %408, %407 : vector<2x256xf32>
    %410 = arith.addf %368, %409 : vector<2x256xf32>
    %411 = vector.extract_strided_slice %404 {offsets = [0, 0], sizes = [2, 256], strides = [1, 1]} : vector<2x262xf32> to vector<2x256xf32>
    %412 = vector.broadcast %406 : vector<1x256xf32> to vector<2x256xf32>
    %413 = arith.mulf %412, %411 : vector<2x256xf32>
    %414 = arith.addf %372, %413 : vector<2x256xf32>
    %c36 = arith.constant 36 : index
    %c0_171 = arith.constant 0 : index
    %415 = vector.load %arg3[%c36, %c0_171] : memref<49x256xf32, #tpu.memory_space<vmem>>, vector<1x256xf32>
    %c36_172 = arith.constant 36 : index
    %c0_173 = arith.constant 0 : index
    %416 = vector.load %arg4[%c36_172, %c0_173] : memref<49x256xf32, #tpu.memory_space<vmem>>, vector<1x256xf32>
    %417 = vector.extract_strided_slice %403 {offsets = [0, 1], sizes = [2, 256], strides = [1, 1]} : vector<2x262xf32> to vector<2x256xf32>
    %418 = vector.broadcast %415 : vector<1x256xf32> to vector<2x256xf32>
    %419 = arith.mulf %418, %417 : vector<2x256xf32>
    %420 = arith.addf %378, %419 : vector<2x256xf32>
    %421 = vector.extract_strided_slice %404 {offsets = [0, 1], sizes = [2, 256], strides = [1, 1]} : vector<2x262xf32> to vector<2x256xf32>
    %422 = vector.broadcast %416 : vector<1x256xf32> to vector<2x256xf32>
    %423 = arith.mulf %422, %421 : vector<2x256xf32>
    %424 = arith.addf %382, %423 : vector<2x256xf32>
    %c37 = arith.constant 37 : index
    %c0_174 = arith.constant 0 : index
    %425 = vector.load %arg3[%c37, %c0_174] : memref<49x256xf32, #tpu.memory_space<vmem>>, vector<1x256xf32>
    %c37_175 = arith.constant 37 : index
    %c0_176 = arith.constant 0 : index
    %426 = vector.load %arg4[%c37_175, %c0_176] : memref<49x256xf32, #tpu.memory_space<vmem>>, vector<1x256xf32>
    %427 = vector.extract_strided_slice %403 {offsets = [0, 2], sizes = [2, 256], strides = [1, 1]} : vector<2x262xf32> to vector<2x256xf32>
    %428 = vector.broadcast %425 : vector<1x256xf32> to vector<2x256xf32>
    %429 = arith.mulf %428, %427 : vector<2x256xf32>
    %430 = arith.addf %388, %429 : vector<2x256xf32>
    %431 = vector.extract_strided_slice %404 {offsets = [0, 2], sizes = [2, 256], strides = [1, 1]} : vector<2x262xf32> to vector<2x256xf32>
    %432 = vector.broadcast %426 : vector<1x256xf32> to vector<2x256xf32>
    %433 = arith.mulf %432, %431 : vector<2x256xf32>
    %434 = arith.addf %392, %433 : vector<2x256xf32>
    %c38 = arith.constant 38 : index
    %c0_177 = arith.constant 0 : index
    %435 = vector.load %arg3[%c38, %c0_177] : memref<49x256xf32, #tpu.memory_space<vmem>>, vector<1x256xf32>
    %c38_178 = arith.constant 38 : index
    %c0_179 = arith.constant 0 : index
    %436 = vector.load %arg4[%c38_178, %c0_179] : memref<49x256xf32, #tpu.memory_space<vmem>>, vector<1x256xf32>
    %437 = vector.extract_strided_slice %403 {offsets = [0, 3], sizes = [2, 256], strides = [1, 1]} : vector<2x262xf32> to vector<2x256xf32>
    %438 = vector.broadcast %435 : vector<1x256xf32> to vector<2x256xf32>
    %439 = arith.mulf %438, %437 : vector<2x256xf32>
    %440 = arith.addf %398, %439 : vector<2x256xf32>
    %441 = vector.extract_strided_slice %404 {offsets = [0, 3], sizes = [2, 256], strides = [1, 1]} : vector<2x262xf32> to vector<2x256xf32>
    %442 = vector.broadcast %436 : vector<1x256xf32> to vector<2x256xf32>
    %443 = arith.mulf %442, %441 : vector<2x256xf32>
    %444 = arith.addf %402, %443 : vector<2x256xf32>
    %c39 = arith.constant 39 : index
    %c0_180 = arith.constant 0 : index
    %445 = vector.load %arg3[%c39, %c0_180] : memref<49x256xf32, #tpu.memory_space<vmem>>, vector<1x256xf32>
    %c39_181 = arith.constant 39 : index
    %c0_182 = arith.constant 0 : index
    %446 = vector.load %arg4[%c39_181, %c0_182] : memref<49x256xf32, #tpu.memory_space<vmem>>, vector<1x256xf32>
    %447 = vector.extract_strided_slice %403 {offsets = [0, 4], sizes = [2, 256], strides = [1, 1]} : vector<2x262xf32> to vector<2x256xf32>
    %448 = vector.broadcast %445 : vector<1x256xf32> to vector<2x256xf32>
    %449 = arith.mulf %448, %447 : vector<2x256xf32>
    %450 = arith.addf %410, %449 : vector<2x256xf32>
    %451 = vector.extract_strided_slice %404 {offsets = [0, 4], sizes = [2, 256], strides = [1, 1]} : vector<2x262xf32> to vector<2x256xf32>
    %452 = vector.broadcast %446 : vector<1x256xf32> to vector<2x256xf32>
    %453 = arith.mulf %452, %451 : vector<2x256xf32>
    %454 = arith.addf %414, %453 : vector<2x256xf32>
    %c40 = arith.constant 40 : index
    %c0_183 = arith.constant 0 : index
    %455 = vector.load %arg3[%c40, %c0_183] : memref<49x256xf32, #tpu.memory_space<vmem>>, vector<1x256xf32>
    %c40_184 = arith.constant 40 : index
    %c0_185 = arith.constant 0 : index
    %456 = vector.load %arg4[%c40_184, %c0_185] : memref<49x256xf32, #tpu.memory_space<vmem>>, vector<1x256xf32>
    %457 = vector.extract_strided_slice %403 {offsets = [0, 5], sizes = [2, 256], strides = [1, 1]} : vector<2x262xf32> to vector<2x256xf32>
    %458 = vector.broadcast %455 : vector<1x256xf32> to vector<2x256xf32>
    %459 = arith.mulf %458, %457 : vector<2x256xf32>
    %460 = arith.addf %420, %459 : vector<2x256xf32>
    %461 = vector.extract_strided_slice %404 {offsets = [0, 5], sizes = [2, 256], strides = [1, 1]} : vector<2x262xf32> to vector<2x256xf32>
    %462 = vector.broadcast %456 : vector<1x256xf32> to vector<2x256xf32>
    %463 = arith.mulf %462, %461 : vector<2x256xf32>
    %464 = arith.addf %424, %463 : vector<2x256xf32>
    %c41 = arith.constant 41 : index
    %c0_186 = arith.constant 0 : index
    %465 = vector.load %arg3[%c41, %c0_186] : memref<49x256xf32, #tpu.memory_space<vmem>>, vector<1x256xf32>
    %c41_187 = arith.constant 41 : index
    %c0_188 = arith.constant 0 : index
    %466 = vector.load %arg4[%c41_187, %c0_188] : memref<49x256xf32, #tpu.memory_space<vmem>>, vector<1x256xf32>
    %467 = vector.extract_strided_slice %403 {offsets = [0, 6], sizes = [2, 256], strides = [1, 1]} : vector<2x262xf32> to vector<2x256xf32>
    %468 = vector.broadcast %465 : vector<1x256xf32> to vector<2x256xf32>
    %469 = arith.mulf %468, %467 : vector<2x256xf32>
    %470 = arith.addf %430, %469 : vector<2x256xf32>
    %471 = vector.extract_strided_slice %404 {offsets = [0, 6], sizes = [2, 256], strides = [1, 1]} : vector<2x262xf32> to vector<2x256xf32>
    %472 = vector.broadcast %466 : vector<1x256xf32> to vector<2x256xf32>
    %473 = arith.mulf %472, %471 : vector<2x256xf32>
    %474 = arith.addf %434, %473 : vector<2x256xf32>
    %c0_189 = arith.constant 0 : index
    %c96 = arith.constant 96 : index
    %475 = vector.load %arg6[%c0_189, %c96] : memref<4x358xf32, #tpu.memory_space<vmem>>, vector<2x262xf32>
    %c2_190 = arith.constant 2 : index
    %c96_191 = arith.constant 96 : index
    %476 = vector.load %arg6[%c2_190, %c96_191] : memref<4x358xf32, #tpu.memory_space<vmem>>, vector<2x262xf32>
    %c42 = arith.constant 42 : index
    %c0_192 = arith.constant 0 : index
    %477 = vector.load %arg3[%c42, %c0_192] : memref<49x256xf32, #tpu.memory_space<vmem>>, vector<1x256xf32>
    %c42_193 = arith.constant 42 : index
    %c0_194 = arith.constant 0 : index
    %478 = vector.load %arg4[%c42_193, %c0_194] : memref<49x256xf32, #tpu.memory_space<vmem>>, vector<1x256xf32>
    %479 = vector.extract_strided_slice %475 {offsets = [0, 0], sizes = [2, 256], strides = [1, 1]} : vector<2x262xf32> to vector<2x256xf32>
    %480 = vector.broadcast %477 : vector<1x256xf32> to vector<2x256xf32>
    %481 = arith.mulf %480, %479 : vector<2x256xf32>
    %482 = arith.addf %440, %481 : vector<2x256xf32>
    %483 = vector.extract_strided_slice %476 {offsets = [0, 0], sizes = [2, 256], strides = [1, 1]} : vector<2x262xf32> to vector<2x256xf32>
    %484 = vector.broadcast %478 : vector<1x256xf32> to vector<2x256xf32>
    %485 = arith.mulf %484, %483 : vector<2x256xf32>
    %486 = arith.addf %444, %485 : vector<2x256xf32>
    %c43 = arith.constant 43 : index
    %c0_195 = arith.constant 0 : index
    %487 = vector.load %arg3[%c43, %c0_195] : memref<49x256xf32, #tpu.memory_space<vmem>>, vector<1x256xf32>
    %c43_196 = arith.constant 43 : index
    %c0_197 = arith.constant 0 : index
    %488 = vector.load %arg4[%c43_196, %c0_197] : memref<49x256xf32, #tpu.memory_space<vmem>>, vector<1x256xf32>
    %489 = vector.extract_strided_slice %475 {offsets = [0, 1], sizes = [2, 256], strides = [1, 1]} : vector<2x262xf32> to vector<2x256xf32>
    %490 = vector.broadcast %487 : vector<1x256xf32> to vector<2x256xf32>
    %491 = arith.mulf %490, %489 : vector<2x256xf32>
    %492 = arith.addf %450, %491 : vector<2x256xf32>
    %493 = vector.extract_strided_slice %476 {offsets = [0, 1], sizes = [2, 256], strides = [1, 1]} : vector<2x262xf32> to vector<2x256xf32>
    %494 = vector.broadcast %488 : vector<1x256xf32> to vector<2x256xf32>
    %495 = arith.mulf %494, %493 : vector<2x256xf32>
    %496 = arith.addf %454, %495 : vector<2x256xf32>
    %c44 = arith.constant 44 : index
    %c0_198 = arith.constant 0 : index
    %497 = vector.load %arg3[%c44, %c0_198] : memref<49x256xf32, #tpu.memory_space<vmem>>, vector<1x256xf32>
    %c44_199 = arith.constant 44 : index
    %c0_200 = arith.constant 0 : index
    %498 = vector.load %arg4[%c44_199, %c0_200] : memref<49x256xf32, #tpu.memory_space<vmem>>, vector<1x256xf32>
    %499 = vector.extract_strided_slice %475 {offsets = [0, 2], sizes = [2, 256], strides = [1, 1]} : vector<2x262xf32> to vector<2x256xf32>
    %500 = vector.broadcast %497 : vector<1x256xf32> to vector<2x256xf32>
    %501 = arith.mulf %500, %499 : vector<2x256xf32>
    %502 = arith.addf %460, %501 : vector<2x256xf32>
    %503 = vector.extract_strided_slice %476 {offsets = [0, 2], sizes = [2, 256], strides = [1, 1]} : vector<2x262xf32> to vector<2x256xf32>
    %504 = vector.broadcast %498 : vector<1x256xf32> to vector<2x256xf32>
    %505 = arith.mulf %504, %503 : vector<2x256xf32>
    %506 = arith.addf %464, %505 : vector<2x256xf32>
    %c45 = arith.constant 45 : index
    %c0_201 = arith.constant 0 : index
    %507 = vector.load %arg3[%c45, %c0_201] : memref<49x256xf32, #tpu.memory_space<vmem>>, vector<1x256xf32>
    %c45_202 = arith.constant 45 : index
    %c0_203 = arith.constant 0 : index
    %508 = vector.load %arg4[%c45_202, %c0_203] : memref<49x256xf32, #tpu.memory_space<vmem>>, vector<1x256xf32>
    %509 = vector.extract_strided_slice %475 {offsets = [0, 3], sizes = [2, 256], strides = [1, 1]} : vector<2x262xf32> to vector<2x256xf32>
    %510 = vector.broadcast %507 : vector<1x256xf32> to vector<2x256xf32>
    %511 = arith.mulf %510, %509 : vector<2x256xf32>
    %512 = arith.addf %470, %511 : vector<2x256xf32>
    %513 = vector.extract_strided_slice %476 {offsets = [0, 3], sizes = [2, 256], strides = [1, 1]} : vector<2x262xf32> to vector<2x256xf32>
    %514 = vector.broadcast %508 : vector<1x256xf32> to vector<2x256xf32>
    %515 = arith.mulf %514, %513 : vector<2x256xf32>
    %516 = arith.addf %474, %515 : vector<2x256xf32>
    %c46 = arith.constant 46 : index
    %c0_204 = arith.constant 0 : index
    %517 = vector.load %arg3[%c46, %c0_204] : memref<49x256xf32, #tpu.memory_space<vmem>>, vector<1x256xf32>
    %c46_205 = arith.constant 46 : index
    %c0_206 = arith.constant 0 : index
    %518 = vector.load %arg4[%c46_205, %c0_206] : memref<49x256xf32, #tpu.memory_space<vmem>>, vector<1x256xf32>
    %519 = vector.extract_strided_slice %475 {offsets = [0, 4], sizes = [2, 256], strides = [1, 1]} : vector<2x262xf32> to vector<2x256xf32>
    %520 = vector.broadcast %517 : vector<1x256xf32> to vector<2x256xf32>
    %521 = arith.mulf %520, %519 : vector<2x256xf32>
    %522 = arith.addf %482, %521 : vector<2x256xf32>
    %523 = vector.extract_strided_slice %476 {offsets = [0, 4], sizes = [2, 256], strides = [1, 1]} : vector<2x262xf32> to vector<2x256xf32>
    %524 = vector.broadcast %518 : vector<1x256xf32> to vector<2x256xf32>
    %525 = arith.mulf %524, %523 : vector<2x256xf32>
    %526 = arith.addf %486, %525 : vector<2x256xf32>
    %c47 = arith.constant 47 : index
    %c0_207 = arith.constant 0 : index
    %527 = vector.load %arg3[%c47, %c0_207] : memref<49x256xf32, #tpu.memory_space<vmem>>, vector<1x256xf32>
    %c47_208 = arith.constant 47 : index
    %c0_209 = arith.constant 0 : index
    %528 = vector.load %arg4[%c47_208, %c0_209] : memref<49x256xf32, #tpu.memory_space<vmem>>, vector<1x256xf32>
    %529 = vector.extract_strided_slice %475 {offsets = [0, 5], sizes = [2, 256], strides = [1, 1]} : vector<2x262xf32> to vector<2x256xf32>
    %530 = vector.broadcast %527 : vector<1x256xf32> to vector<2x256xf32>
    %531 = arith.mulf %530, %529 : vector<2x256xf32>
    %532 = arith.addf %492, %531 : vector<2x256xf32>
    %533 = vector.extract_strided_slice %476 {offsets = [0, 5], sizes = [2, 256], strides = [1, 1]} : vector<2x262xf32> to vector<2x256xf32>
    %534 = vector.broadcast %528 : vector<1x256xf32> to vector<2x256xf32>
    %535 = arith.mulf %534, %533 : vector<2x256xf32>
    %536 = arith.addf %496, %535 : vector<2x256xf32>
    %c48_210 = arith.constant 48 : index
    %c0_211 = arith.constant 0 : index
    %537 = vector.load %arg3[%c48_210, %c0_211] : memref<49x256xf32, #tpu.memory_space<vmem>>, vector<1x256xf32>
    %c48_212 = arith.constant 48 : index
    %c0_213 = arith.constant 0 : index
    %538 = vector.load %arg4[%c48_212, %c0_213] : memref<49x256xf32, #tpu.memory_space<vmem>>, vector<1x256xf32>
    %539 = vector.extract_strided_slice %475 {offsets = [0, 6], sizes = [2, 256], strides = [1, 1]} : vector<2x262xf32> to vector<2x256xf32>
    %540 = vector.broadcast %537 : vector<1x256xf32> to vector<2x256xf32>
    %541 = arith.mulf %540, %539 : vector<2x256xf32>
    %542 = arith.addf %502, %541 : vector<2x256xf32>
    %543 = vector.extract_strided_slice %476 {offsets = [0, 6], sizes = [2, 256], strides = [1, 1]} : vector<2x262xf32> to vector<2x256xf32>
    %544 = vector.broadcast %538 : vector<1x256xf32> to vector<2x256xf32>
    %545 = arith.mulf %544, %543 : vector<2x256xf32>
    %546 = arith.addf %506, %545 : vector<2x256xf32>
    %547 = arith.addf %542, %546 : vector<2x256xf32>
    %548 = arith.addf %547, %512 : vector<2x256xf32>
    %549 = arith.addf %548, %516 : vector<2x256xf32>
    %550 = arith.addf %549, %522 : vector<2x256xf32>
    %551 = arith.addf %550, %526 : vector<2x256xf32>
    %552 = arith.addf %551, %532 : vector<2x256xf32>
    %553 = arith.addf %552, %536 : vector<2x256xf32>
    %554 = arith.negf %553 : vector<2x256xf32>
    %555 = math.exp %554 : vector<2x256xf32>
    %cst_214 = arith.constant 1.000000e+00 : f32
    %556 = vector.broadcast %cst_214 : f32 to vector<2x256xf32>
    %557 = arith.addf %556, %555 : vector<2x256xf32>
    %558 = arith.divf %556, %557 : vector<2x256xf32>
    %c0_215 = arith.constant 0 : index
    %c0_216 = arith.constant 0 : index
    %559 = vector.load %arg5[%c0_215, %c0_216] : memref<2x256xf32, #tpu.memory_space<vmem>>, vector<2x256xf32>
    tpu.vector_store %arg5[%c0_215, %c0_216], %558 {strides = array<i32>} : memref<2x256xf32, #tpu.memory_space<vmem>>, vector<2x256xf32>,
    return
  }
  func.func @transform_0(%arg0: i32, %arg1: i32) -> (i32, i32, i32) {
    %c0_i32 = arith.constant 0 : i32
    %c0_i32_0 = arith.constant 0 : i32
    return %arg0, %arg1, %c0_i32 : i32, i32, i32
  }
  func.func @transform_1(%arg0: i32, %arg1: i32) -> (i32, i32) {
    %c0_i32 = arith.constant 0 : i32
    %c0_i32_0 = arith.constant 0 : i32
    %c0_i32_1 = arith.constant 0 : i32
    return %c0_i32, %c0_i32_0 : i32, i32
  }
  func.func @transform_2(%arg0: i32, %arg1: i32) -> (i32, i32) {
    %c0_i32 = arith.constant 0 : i32
    %c0_i32_0 = arith.constant 0 : i32
    %c0_i32_1 = arith.constant 0 : i32
    return %c0_i32, %c0_i32_0 : i32, i32
  }
  func.func @transform_3(%arg0: i32, %arg1: i32) -> (i32, i32) {
    %c0_i32 = arith.constant 0 : i32
    %c0_i32_0 = arith.constant 0 : i32
    return %arg0, %c0_i32 : i32, i32
  }
}

</mosaic_0001>

<llo_original>
// kernel: tpu_custom_call.1
$region0: #{tpu_custom_call.1}
  #allocation0 [shape = 'u32[]', space=smem, size = 0x4, offset = 0x4, fixed_abs, tag = 'smem constant byte address 0x4 - core index']
  #allocation1 [shape = 'u32[144,128]{1,0:T(1,128)}', space=vmem, size = 0x12000, scoped, tag = 'internal scratch']
  #allocation2 [shape = 'f32[4,358]{1,0:T(4,128)}', space=vmem, size = 0x1800, scoped, tag = 'scratch operand']
  %s0 = inlined_call_operand.hbm [shape: f32[2,4,256], index: 0, kind: input, shape index: {}]
  %s1 = inlined_call_operand.hbm [shape: f32[49,256], index: 1, kind: input, shape index: {}]
  %s2 = inlined_call_operand.hbm [shape: f32[49,256], index: 2, kind: input, shape index: {}]
  %s3 = inlined_call_operand.hbm [shape: f32[2,256], index: 3, kind: output, shape index: {}]
  %s4 = sld [smem:[#allocation0]]
  $region34: #{tpu_custom_call.1} parent=0
    _
  %s6 = ssub.s32 1, %s4
  %s7 = scalar_select 0, %s6, %s4
  $region1: #{tpu_custom_call.1} parent=0
    #allocation3 [shape = 'u8[8192]{0}', space=vmem, size = 0x2000, scoped, tag = 'input window, operand 0, single buffered']
    #allocation4 [shape = 's32[1]{0}', space=sflag, size = 0x4, scoped, tag = 'scoped memory for tpu_custom_call.1']
    #allocation5 [shape = 's32[1]{0}', space=sflag, size = 0x4, scoped, tag = 'scoped memory for tpu_custom_call.1']
    #allocation6 [shape = 'u8[57344]{0}', space=vmem, size = 0xe000, scoped, tag = 'input window, operand 1, single buffered']
    #allocation7 [shape = 's32[1]{0}', space=sflag, size = 0x4, scoped, tag = 'scoped memory for tpu_custom_call.1']
    #allocation8 [shape = 'u8[57344]{0}', space=vmem, size = 0xe000, scoped, tag = 'input window, operand 2, single buffered']
    #allocation9 [shape = 'u8[2048]{0}', space=vmem, size = 0x800, scoped, tag = 'output window, operand 0, single buffered']
    %8 = vsyncpa [#allocation4], 0
    %9 = vsyncpa [#allocation7], 0
    %10 = vsyncpa [#allocation5], 0
    // Predicated region
    $region2: #{tpu_custom_call.1} parent=1 // pred_check
      _
    $region3: #{tpu_custom_call.1} parent=1 // pred_check_branch
      %12 = sbr.rel (0) target = $region5
    $region4: #{tpu_custom_call.1} parent=1 // pred_region
      %s14 = ssub.s32 256, 256
      %15 = vsyncadd [#allocation4], %s14
      %s16 = sshll.u32 [#allocation3], 4
      %s17 = int_to_ptr.vmem [resolvable:$true] %s16
      %22 = dma.hbm_to_vmem [thread:$0]  %s0, 256, %s17, [#allocation4], 128, 128, 8
    $region5: #{tpu_custom_call.1} parent=1 // pred_fallthru
      _
    // Predicated region
    $region6: #{tpu_custom_call.1} parent=1 // pred_check
      _
    $region7: #{tpu_custom_call.1} parent=1 // pred_check_branch
      %24 = sbr.rel (0) target = $region9
    $region8: #{tpu_custom_call.1} parent=1 // pred_region
      %s26 = ssub.s32 1792, 1792
      %27 = vsyncadd [#allocation7], %s26
      %s28 = sshll.u32 [#allocation6], 4
      %s29 = int_to_ptr.vmem [resolvable:$true] %s28
      %34 = dma.hbm_to_vmem [thread:$0]  %s1, 1792, %s29, [#allocation7], 256, 256, 16
    $region9: #{tpu_custom_call.1} parent=1 // pred_fallthru
      _
    // Predicated region
    $region10: #{tpu_custom_call.1} parent=1 // pred_check
      _
    $region11: #{tpu_custom_call.1} parent=1 // pred_check_branch
      %36 = sbr.rel (0) target = $region13
    $region12: #{tpu_custom_call.1} parent=1 // pred_region
      %s38 = ssub.s32 1792, 1792
      %39 = vsyncadd [#allocation7], %s38
      %s40 = sshll.u32 [#allocation8], 4
      %s41 = int_to_ptr.vmem [resolvable:$true] %s40
      %46 = dma.hbm_to_vmem [thread:$0]  %s2, 1792, %s41, [#allocation7], 256, 256, 16
    $region13: #{tpu_custom_call.1} parent=1 // pred_fallthru
      _
    // Predicated region
    $region14: #{tpu_custom_call.1} parent=1 // pred_check
      _
    $region15: #{tpu_custom_call.1} parent=1 // pred_check_branch
      %48 = sbr.rel (0) target = $region17
    $region16: #{tpu_custom_call.1} parent=1 // pred_region
      %49 = dma.done [#allocation4], 256
    $region17: #{tpu_custom_call.1} parent=1 // pred_fallthru
      _
    // Predicated region
    $region18: #{tpu_custom_call.1} parent=1 // pred_check
      _
    $region19: #{tpu_custom_call.1} parent=1 // pred_check_branch
      %51 = sbr.rel (0) target = $region21
    $region20: #{tpu_custom_call.1} parent=1 // pred_region
      %52 = dma.done [#allocation7], 1792
    $region21: #{tpu_custom_call.1} parent=1 // pred_fallthru
      _
    // Predicated region
    $region22: #{tpu_custom_call.1} parent=1 // pred_check
      _
    $region23: #{tpu_custom_call.1} parent=1 // pred_check_branch
      %54 = sbr.rel (0) target = $region25
    $region24: #{tpu_custom_call.1} parent=1 // pred_region
      %55 = dma.done [#allocation7], 1792
    $region25: #{tpu_custom_call.1} parent=1 // pred_fallthru
      _
    %v56 = vld [vmem:[#allocation3] ss:$4 sm:$0x3]
    %s57 = scalar_lea.vmem [#allocation3], 1
    %v58 = vld [vmem:[%s57] ss:$4 sm:$0x3]
    %v59 = vadd.f32 %v56, %v58
    %v60 = vmax.f32 %v56, %v58
    %s61 = scalar_lea.vmem [#allocation3], 2
    %v62 = vld [vmem:[%s61] ss:$4 sm:$0x3]
    %v63 = vadd.f32 %v59, %v62
    %v64 = vmax.f32 %v60, %v62
    %s65 = scalar_lea.vmem [#allocation3], 3
    %v66 = vld [vmem:[%s65] ss:$4 sm:$0x3]
    %v67 = vadd.f32 %v63, %v66
    %v68 = vmax.f32 %v64, %v66
    %70 = vrot.lane.b32.xlu0 %v67, 51
    %v71 = vpop.permute.xlu0 %70
    %v72 = vrot.slane %v71, 7
    %vm73 = vcmask 416768
    %v74 = vsel %vm73, %v72, %v71
    %v76 = vlaneseq
    %vm77 = vcmp.ge.s32.totalorder %v76, 51
    %vm78 = vcmp.lt.s32.totalorder %v76, 307
    %vm79 = vmand %vm77, %vm78
    %80 = vst.msk [vmem:[#allocation2] ss:$4 sm:$0x7] %vm79, %v74
    %82 = vrot.lane.b32.xlu0 %v68, 51
    %v83 = vpop.permute.xlu0 %82
    %v84 = vrot.slane %v83, 7
    %v85 = vsel %vm73, %v84, %v83
    %s87 = scalar_lea.vmem [#allocation2], 2
    %88 = vst.msk [vmem:[%s87] ss:$4 sm:$0x7] %vm79, %v85
    %s89 = scalar_lea.vmem [#allocation3], 8
    %v90 = vld [vmem:[%s89] ss:$4 sm:$0x3]
    %s91 = scalar_lea.vmem %s89, 1 [#allocation3]
    %v92 = vld [vmem:[%s91] ss:$4 sm:$0x3]
    %v93 = vadd.f32 %v90, %v92
    %v94 = vmax.f32 %v90, %v92
    %s95 = scalar_lea.vmem %s89, 2 [#allocation3]
    %v96 = vld [vmem:[%s95] ss:$4 sm:$0x3]
    %v97 = vadd.f32 %v93, %v96
    %v98 = vmax.f32 %v94, %v96
    %s99 = scalar_lea.vmem %s89, 3 [#allocation3]
    %v100 = vld [vmem:[%s99] ss:$4 sm:$0x3]
    %v101 = vadd.f32 %v97, %v100
    %v102 = vmax.f32 %v98, %v100
    %104 = vrot.lane.b32.xlu0 %v101, 51
    %v105 = vpop.permute.xlu0 %104
    %v106 = vrot.slane %v105, 7
    %v107 = vsel %vm73, %v106, %v105
    %s109 = scalar_lea.vmem [#allocation2], 1
    %110 = vst.msk [vmem:[%s109] ss:$4 sm:$0x7] %vm79, %v107
    %112 = vrot.lane.b32.xlu0 %v102, 51
    %v113 = vpop.permute.xlu0 %112
    %v114 = vrot.slane %v113, 7
    %v115 = vsel %vm73, %v114, %v113
    %s117 = scalar_lea.vmem [#allocation2], 3
    %118 = vst.msk [vmem:[%s117] ss:$4 sm:$0x7] %vm79, %v115
    %vm119 = vcmask 412672
    %120 = vst.msk [vmem:[#allocation2] sm:$0xf] %vm119, 0.0
    %vm121 = vcmask 830872
    %122 = vst.msk [vmem:[#allocation2 + $0x8] sm:$0xf] %vm121, 0.0
    %v123 = vld [vmem:[#allocation2] sm:$0x33]
    %v124 = vld [vmem:[#allocation2 + $0x8] sm:$0x3]
    %v125 = vld [vmem:[#allocation2] sm:$0xcc]
    %v126 = vld [vmem:[#allocation2 + $0x8] sm:$0xc]
    %v127 = vld [vmem:[#allocation6] ss:$8 sm:$0x3]
    %v128 = vld [vmem:[#allocation8] ss:$8 sm:$0x3]
    %v130 = vlaneseq
    %v131 = vshrl.u32 %v130, 7
    %v132 = vsub.s32 0, %v131
    %v133 = vrot.slane %v127, %v132
    %v134 = vlaneseq
    %v135 = vshrl.u32 %v134, 7
    %v136 = vsub.s32 1, %v135
    %v137 = vrot.slane %v127, %v136
    %v141 = vcombine.high %v123, %v123
    %v143 = vmul.f32 %v133, %v123
    %v144 = vmul.f32 %v137, %v141
    %v145 = vadd.f32 %v143, 0.0
    %v146 = vadd.f32 %v144, 0.0
    %v148 = vlaneseq
    %v149 = vshrl.u32 %v148, 7
    %v150 = vsub.s32 0, %v149
    %v151 = vrot.slane %v128, %v150
    %v152 = vlaneseq
    %v153 = vshrl.u32 %v152, 7
    %v154 = vsub.s32 1, %v153
    %v155 = vrot.slane %v128, %v154
    %v159 = vcombine.high %v125, %v125
    %v160 = vrot.slane %v125, 2
    %v161 = vrot.slane %v159, 2
    %v164 = vmul.f32 %v151, %v160
    %v165 = vmul.f32 %v155, %v161
    %v166 = vadd.f32 %v164, 0.0
    %v167 = vadd.f32 %v165, 0.0
    %s168 = scalar_lea.vmem [#allocation6], 1
    %v169 = vld [vmem:[%s168] ss:$8 sm:$0x3]
    %s170 = scalar_lea.vmem [#allocation8], 1
    %v171 = vld [vmem:[%s170] ss:$8 sm:$0x3]
    %v173 = vlaneseq
    %v174 = vshrl.u32 %v173, 7
    %v175 = vsub.s32 0, %v174
    %v176 = vrot.slane %v169, %v175
    %v177 = vlaneseq
    %v178 = vshrl.u32 %v177, 7
    %v179 = vsub.s32 1, %v178
    %v180 = vrot.slane %v169, %v179
    %184 = vrot.lane.b32.xlu0 %v123, 127
    %v185 = vpop.permute.xlu0 %184
    %186 = vrot.lane.b32.xlu0 %v141, 127
    %v187 = vpop.permute.xlu0 %186
    %188 = vrot.lane.b32.xlu0 %v124, 127
    %v189 = vpop.permute.xlu0 %188
    %vm190 = vcmask 1039360
    %v191 = vsel %vm190, %v185, %v187
    %v192 = vsel %vm190, %v187, %v189
    %v195 = vmul.f32 %v176, %v191
    %v196 = vmul.f32 %v180, %v192
    %v197 = vadd.f32 %v195, 0.0
    %v198 = vadd.f32 %v196, 0.0
    %v200 = vlaneseq
    %v201 = vshrl.u32 %v200, 7
    %v202 = vsub.s32 0, %v201
    %v203 = vrot.slane %v171, %v202
    %v204 = vlaneseq
    %v205 = vshrl.u32 %v204, 7
    %v206 = vsub.s32 1, %v205
    %v207 = vrot.slane %v171, %v206
    %v211 = vrot.slane %v126, 2
    %212 = vrot.lane.b32.xlu0 %v160, 127
    %v213 = vpop.permute.xlu0 %212
    %214 = vrot.lane.b32.xlu0 %v161, 127
    %v215 = vpop.permute.xlu0 %214
    %216 = vrot.lane.b32.xlu0 %v211, 127
    %v217 = vpop.permute.xlu0 %216
    %v218 = vsel %vm190, %v213, %v215
    %v219 = vsel %vm190, %v215, %v217
    %v222 = vmul.f32 %v203, %v218
    %v223 = vmul.f32 %v207, %v219
    %v224 = vadd.f32 %v222, 0.0
    %v225 = vadd.f32 %v223, 0.0
    %s226 = scalar_lea.vmem [#allocation6], 2
    %v227 = vld [vmem:[%s226] ss:$8 sm:$0x3]
    %s228 = scalar_lea.vmem [#allocation8], 2
    %v229 = vld [vmem:[%s228] ss:$8 sm:$0x3]
    %v231 = vlaneseq
    %v232 = vshrl.u32 %v231, 7
    %v233 = vsub.s32 0, %v232
    %v234 = vrot.slane %v227, %v233
    %v235 = vlaneseq
    %v236 = vshrl.u32 %v235, 7
    %v237 = vsub.s32 1, %v236
    %v238 = vrot.slane %v227, %v237
    %241 = vrot.lane.b32.xlu0 %v123, 126
    %v242 = vpop.permute.xlu0 %241
    %243 = vrot.lane.b32.xlu0 %v141, 126
    %v244 = vpop.permute.xlu0 %243
    %245 = vrot.lane.b32.xlu0 %v124, 126
    %v246 = vpop.permute.xlu0 %245
    %vm247 = vcmask 1031168
    %v248 = vsel %vm247, %v242, %v244
    %v249 = vsel %vm247, %v244, %v246
    %v252 = vmul.f32 %v234, %v248
    %v253 = vmul.f32 %v238, %v249
    %v254 = vadd.f32 %v252, 0.0
    %v255 = vadd.f32 %v253, 0.0
    %v257 = vlaneseq
    %v258 = vshrl.u32 %v257, 7
    %v259 = vsub.s32 0, %v258
    %v260 = vrot.slane %v229, %v259
    %v261 = vlaneseq
    %v262 = vshrl.u32 %v261, 7
    %v263 = vsub.s32 1, %v262
    %v264 = vrot.slane %v229, %v263
    %267 = vrot.lane.b32.xlu0 %v160, 126
    %v268 = vpop.permute.xlu0 %267
    %269 = vrot.lane.b32.xlu0 %v161, 126
    %v270 = vpop.permute.xlu0 %269
    %271 = vrot.lane.b32.xlu0 %v211, 126
    %v272 = vpop.permute.xlu0 %271
    %v273 = vsel %vm247, %v268, %v270
    %v274 = vsel %vm247, %v270, %v272
    %v277 = vmul.f32 %v260, %v273
    %v278 = vmul.f32 %v264, %v274
    %v279 = vadd.f32 %v277, 0.0
    %v280 = vadd.f32 %v278, 0.0
    %s281 = scalar_lea.vmem [#allocation6], 3
    %v282 = vld [vmem:[%s281] ss:$8 sm:$0x3]
    %s283 = scalar_lea.vmem [#allocation8], 3
    %v284 = vld [vmem:[%s283] ss:$8 sm:$0x3]
    %v286 = vlaneseq
    %v287 = vshrl.u32 %v286, 7
    %v288 = vsub.s32 0, %v287
    %v289 = vrot.slane %v282, %v288
    %v290 = vlaneseq
    %v291 = vshrl.u32 %v290, 7
    %v292 = vsub.s32 1, %v291
    %v293 = vrot.slane %v282, %v292
    %296 = vrot.lane.b32.xlu0 %v123, 125
    %v297 = vpop.permute.xlu0 %296
    %298 = vrot.lane.b32.xlu0 %v141, 125
    %v299 = vpop.permute.xlu0 %298
    %300 = vrot.lane.b32.xlu0 %v124, 125
    %v301 = vpop.permute.xlu0 %300
    %vm302 = vcmask 1022976
    %v303 = vsel %vm302, %v297, %v299
    %v304 = vsel %vm302, %v299, %v301
    %v307 = vmul.f32 %v289, %v303
    %v308 = vmul.f32 %v293, %v304
    %v309 = vadd.f32 %v307, 0.0
    %v310 = vadd.f32 %v308, 0.0
    %v312 = vlaneseq
    %v313 = vshrl.u32 %v312, 7
    %v314 = vsub.s32 0, %v313
    %v315 = vrot.slane %v284, %v314
    %v316 = vlaneseq
    %v317 = vshrl.u32 %v316, 7
    %v318 = vsub.s32 1, %v317
    %v319 = vrot.slane %v284, %v318
    %322 = vrot.lane.b32.xlu0 %v160, 125
    %v323 = vpop.permute.xlu0 %322
    %324 = vrot.lane.b32.xlu0 %v161, 125
    %v325 = vpop.permute.xlu0 %324
    %326 = vrot.lane.b32.xlu0 %v211, 125
    %v327 = vpop.permute.xlu0 %326
    %v328 = vsel %vm302, %v323, %v325
    %v329 = vsel %vm302, %v325, %v327
    %v332 = vmul.f32 %v315, %v328
    %v333 = vmul.f32 %v319, %v329
    %v334 = vadd.f32 %v332, 0.0
    %v335 = vadd.f32 %v333, 0.0
    %s336 = scalar_lea.vmem [#allocation6], 4
    %v337 = vld [vmem:[%s336] ss:$8 sm:$0x3]
    %s338 = scalar_lea.vmem [#allocation8], 4
    %v339 = vld [vmem:[%s338] ss:$8 sm:$0x3]
    %v341 = vlaneseq
    %v342 = vshrl.u32 %v341, 7
    %v343 = vsub.s32 0, %v342
    %v344 = vrot.slane %v337, %v343
    %v345 = vlaneseq
    %v346 = vshrl.u32 %v345, 7
    %v347 = vsub.s32 1, %v346
    %v348 = vrot.slane %v337, %v347
    %351 = vrot.lane.b32.xlu0 %v123, 124
    %v352 = vpop.permute.xlu0 %351
    %353 = vrot.lane.b32.xlu0 %v141, 124
    %v354 = vpop.permute.xlu0 %353
    %355 = vrot.lane.b32.xlu0 %v124, 124
    %v356 = vpop.permute.xlu0 %355
    %vm357 = vcmask 1014784
    %v358 = vsel %vm357, %v352, %v354
    %v359 = vsel %vm357, %v354, %v356
    %v362 = vmul.f32 %v344, %v358
    %v363 = vmul.f32 %v348, %v359
    %v364 = vadd.f32 %v145, %v362
    %v365 = vadd.f32 %v146, %v363
    %v367 = vlaneseq
    %v368 = vshrl.u32 %v367, 7
    %v369 = vsub.s32 0, %v368
    %v370 = vrot.slane %v339, %v369
    %v371 = vlaneseq
    %v372 = vshrl.u32 %v371, 7
    %v373 = vsub.s32 1, %v372
    %v374 = vrot.slane %v339, %v373
    %377 = vrot.lane.b32.xlu0 %v160, 124
    %v378 = vpop.permute.xlu0 %377
    %379 = vrot.lane.b32.xlu0 %v161, 124
    %v380 = vpop.permute.xlu0 %379
    %381 = vrot.lane.b32.xlu0 %v211, 124
    %v382 = vpop.permute.xlu0 %381
    %v383 = vsel %vm357, %v378, %v380
    %v384 = vsel %vm357, %v380, %v382
    %v387 = vmul.f32 %v370, %v383
    %v388 = vmul.f32 %v374, %v384
    %v389 = vadd.f32 %v166, %v387
    %v390 = vadd.f32 %v167, %v388
    %s391 = scalar_lea.vmem [#allocation6], 5
    %v392 = vld [vmem:[%s391] ss:$8 sm:$0x3]
    %s393 = scalar_lea.vmem [#allocation8], 5
    %v394 = vld [vmem:[%s393] ss:$8 sm:$0x3]
    %v396 = vlaneseq
    %v397 = vshrl.u32 %v396, 7
    %v398 = vsub.s32 0, %v397
    %v399 = vrot.slane %v392, %v398
    %v400 = vlaneseq
    %v401 = vshrl.u32 %v400, 7
    %v402 = vsub.s32 1, %v401
    %v403 = vrot.slane %v392, %v402
    %406 = vrot.lane.b32.xlu0 %v123, 123
    %v407 = vpop.permute.xlu0 %406
    %408 = vrot.lane.b32.xlu0 %v141, 123
    %v409 = vpop.permute.xlu0 %408
    %410 = vrot.lane.b32.xlu0 %v124, 123
    %v411 = vpop.permute.xlu0 %410
    %vm412 = vcmask 1006592
    %v413 = vsel %vm412, %v407, %v409
    %v414 = vsel %vm412, %v409, %v411
    %v417 = vmul.f32 %v399, %v413
    %v418 = vmul.f32 %v403, %v414
    %v419 = vadd.f32 %v197, %v417
    %v420 = vadd.f32 %v198, %v418
    %v422 = vlaneseq
    %v423 = vshrl.u32 %v422, 7
    %v424 = vsub.s32 0, %v423
    %v425 = vrot.slane %v394, %v424
    %v426 = vlaneseq
    %v427 = vshrl.u32 %v426, 7
    %v428 = vsub.s32 1, %v427
    %v429 = vrot.slane %v394, %v428
    %432 = vrot.lane.b32.xlu0 %v160, 123
    %v433 = vpop.permute.xlu0 %432
    %434 = vrot.lane.b32.xlu0 %v161, 123
    %v435 = vpop.permute.xlu0 %434
    %436 = vrot.lane.b32.xlu0 %v211, 123
    %v437 = vpop.permute.xlu0 %436
    %v438 = vsel %vm412, %v433, %v435
    %v439 = vsel %vm412, %v435, %v437
    %v442 = vmul.f32 %v425, %v438
    %v443 = vmul.f32 %v429, %v439
    %v444 = vadd.f32 %v224, %v442
    %v445 = vadd.f32 %v225, %v443
    %s446 = scalar_lea.vmem [#allocation6], 6
    %v447 = vld [vmem:[%s446] ss:$8 sm:$0x3]
    %s448 = scalar_lea.vmem [#allocation8], 6
    %v449 = vld [vmem:[%s448] ss:$8 sm:$0x3]
    %v451 = vlaneseq
    %v452 = vshrl.u32 %v451, 7
    %v453 = vsub.s32 0, %v452
    %v454 = vrot.slane %v447, %v453
    %v455 = vlaneseq
    %v456 = vshrl.u32 %v455, 7
    %v457 = vsub.s32 1, %v456
    %v458 = vrot.slane %v447, %v457
    %461 = vrot.lane.b32.xlu0 %v123, 122
    %v462 = vpop.permute.xlu0 %461
    %463 = vrot.lane.b32.xlu0 %v141, 122
    %v464 = vpop.permute.xlu0 %463
    %465 = vrot.lane.b32.xlu0 %v124, 122
    %v466 = vpop.permute.xlu0 %465
    %vm467 = vcmask 998400
    %v468 = vsel %vm467, %v462, %v464
    %v469 = vsel %vm467, %v464, %v466
    %v472 = vmul.f32 %v454, %v468
    %v473 = vmul.f32 %v458, %v469
    %v474 = vadd.f32 %v254, %v472
    %v475 = vadd.f32 %v255, %v473
    %v477 = vlaneseq
    %v478 = vshrl.u32 %v477, 7
    %v479 = vsub.s32 0, %v478
    %v480 = vrot.slane %v449, %v479
    %v481 = vlaneseq
    %v482 = vshrl.u32 %v481, 7
    %v483 = vsub.s32 1, %v482
    %v484 = vrot.slane %v449, %v483
    %487 = vrot.lane.b32.xlu0 %v160, 122
    %v488 = vpop.permute.xlu0 %487
    %489 = vrot.lane.b32.xlu0 %v161, 122
    %v490 = vpop.permute.xlu0 %489
    %491 = vrot.lane.b32.xlu0 %v211, 122
    %v492 = vpop.permute.xlu0 %491
    %v493 = vsel %vm467, %v488, %v490
    %v494 = vsel %vm467, %v490, %v492
    %v497 = vmul.f32 %v480, %v493
    %v498 = vmul.f32 %v484, %v494
    %v499 = vadd.f32 %v279, %v497
    %v500 = vadd.f32 %v280, %v498
    %s501 = scalar_lea.vmem [#allocation6], 7
    %v502 = vld [vmem:[%s501] ss:$8 sm:$0x3]
    %s503 = scalar_lea.vmem [#allocation8], 7
    %v504 = vld [vmem:[%s503] ss:$8 sm:$0x3]
    %v506 = vlaneseq
    %v507 = vshrl.u32 %v506, 7
    %v508 = vsub.s32 0, %v507
    %v509 = vrot.slane %v502, %v508
    %v510 = vlaneseq
    %v511 = vshrl.u32 %v510, 7
    %v512 = vsub.s32 1, %v511
    %v513 = vrot.slane %v502, %v512
    %516 = vrot.lane.b32.xlu0 %v123, 112
    %v517 = vpop.permute.xlu0 %516
    %518 = vrot.lane.b32.xlu0 %v141, 112
    %v519 = vpop.permute.xlu0 %518
    %520 = vrot.lane.b32.xlu0 %v124, 112
    %v521 = vpop.permute.xlu0 %520
    %vm522 = vcmask 916480
    %v523 = vsel %vm522, %v517, %v519
    %v524 = vsel %vm522, %v519, %v521
    %v527 = vmul.f32 %v509, %v523
    %v528 = vmul.f32 %v513, %v524
    %v529 = vadd.f32 %v309, %v527
    %v530 = vadd.f32 %v310, %v528
    %v532 = vlaneseq
    %v533 = vshrl.u32 %v532, 7
    %v534 = vsub.s32 0, %v533
    %v535 = vrot.slane %v504, %v534
    %v536 = vlaneseq
    %v537 = vshrl.u32 %v536, 7
    %v538 = vsub.s32 1, %v537
    %v539 = vrot.slane %v504, %v538
    %542 = vrot.lane.b32.xlu0 %v160, 112
    %v543 = vpop.permute.xlu0 %542
    %544 = vrot.lane.b32.xlu0 %v161, 112
    %v545 = vpop.permute.xlu0 %544
    %546 = vrot.lane.b32.xlu0 %v211, 112
    %v547 = vpop.permute.xlu0 %546
    %v548 = vsel %vm522, %v543, %v545
    %v549 = vsel %vm522, %v545, %v547
    %v552 = vmul.f32 %v535, %v548
    %v553 = vmul.f32 %v539, %v549
    %v554 = vadd.f32 %v334, %v552
    %v555 = vadd.f32 %v335, %v553
    %s556 = scalar_lea.vmem [#allocation6], 16
    %v557 = vld [vmem:[%s556] ss:$8 sm:$0x3]
    %s558 = scalar_lea.vmem [#allocation8], 16
    %v559 = vld [vmem:[%s558] ss:$8 sm:$0x3]
    %v561 = vlaneseq
    %v562 = vshrl.u32 %v561, 7
    %v563 = vsub.s32 0, %v562
    %v564 = vrot.slane %v557, %v563
    %v565 = vlaneseq
    %v566 = vshrl.u32 %v565, 7
    %v567 = vsub.s32 1, %v566
    %v568 = vrot.slane %v557, %v567
    %571 = vrot.lane.b32.xlu0 %v123, 111
    %v572 = vpop.permute.xlu0 %571
    %573 = vrot.lane.b32.xlu0 %v141, 111
    %v574 = vpop.permute.xlu0 %573
    %575 = vrot.lane.b32.xlu0 %v124, 111
    %v576 = vpop.permute.xlu0 %575
    %vm577 = vcmask 908288
    %v578 = vsel %vm577, %v572, %v574
    %v579 = vsel %vm577, %v574, %v576
    %v582 = vmul.f32 %v564, %v578
    %v583 = vmul.f32 %v568, %v579
    %v584 = vadd.f32 %v364, %v582
    %v585 = vadd.f32 %v365, %v583
    %v587 = vlaneseq
    %v588 = vshrl.u32 %v587, 7
    %v589 = vsub.s32 0, %v588
    %v590 = vrot.slane %v559, %v589
    %v591 = vlaneseq
    %v592 = vshrl.u32 %v591, 7
    %v593 = vsub.s32 1, %v592
    %v594 = vrot.slane %v559, %v593
    %597 = vrot.lane.b32.xlu0 %v160, 111
    %v598 = vpop.permute.xlu0 %597
    %599 = vrot.lane.b32.xlu0 %v161, 111
    %v600 = vpop.permute.xlu0 %599
    %601 = vrot.lane.b32.xlu0 %v211, 111
    %v602 = vpop.permute.xlu0 %601
    %v603 = vsel %vm577, %v598, %v600
    %v604 = vsel %vm577, %v600, %v602
    %v607 = vmul.f32 %v590, %v603
    %v608 = vmul.f32 %v594, %v604
    %v609 = vadd.f32 %v389, %v607
    %v610 = vadd.f32 %v390, %v608
    %s611 = scalar_lea.vmem [#allocation6], 17
    %v612 = vld [vmem:[%s611] ss:$8 sm:$0x3]
    %s613 = scalar_lea.vmem [#allocation8], 17
    %v614 = vld [vmem:[%s613] ss:$8 sm:$0x3]
    %v616 = vlaneseq
    %v617 = vshrl.u32 %v616, 7
    %v618 = vsub.s32 0, %v617
    %v619 = vrot.slane %v612, %v618
    %v620 = vlaneseq
    %v621 = vshrl.u32 %v620, 7
    %v622 = vsub.s32 1, %v621
    %v623 = vrot.slane %v612, %v622
    %626 = vrot.lane.b32.xlu0 %v123, 110
    %v627 = vpop.permute.xlu0 %626
    %628 = vrot.lane.b32.xlu0 %v141, 110
    %v629 = vpop.permute.xlu0 %628
    %630 = vrot.lane.b32.xlu0 %v124, 110
    %v631 = vpop.permute.xlu0 %630
    %vm632 = vcmask 900096
    %v633 = vsel %vm632, %v627, %v629
    %v634 = vsel %vm632, %v629, %v631
    %v637 = vmul.f32 %v619, %v633
    %v638 = vmul.f32 %v623, %v634
    %v639 = vadd.f32 %v419, %v637
    %v640 = vadd.f32 %v420, %v638
    %v642 = vlaneseq
    %v643 = vshrl.u32 %v642, 7
    %v644 = vsub.s32 0, %v643
    %v645 = vrot.slane %v614, %v644
    %v646 = vlaneseq
    %v647 = vshrl.u32 %v646, 7
    %v648 = vsub.s32 1, %v647
    %v649 = vrot.slane %v614, %v648
    %652 = vrot.lane.b32.xlu0 %v160, 110
    %v653 = vpop.permute.xlu0 %652
    %654 = vrot.lane.b32.xlu0 %v161, 110
    %v655 = vpop.permute.xlu0 %654
    %656 = vrot.lane.b32.xlu0 %v211, 110
    %v657 = vpop.permute.xlu0 %656
    %v658 = vsel %vm632, %v653, %v655
    %v659 = vsel %vm632, %v655, %v657
    %v662 = vmul.f32 %v645, %v658
    %v663 = vmul.f32 %v649, %v659
    %v664 = vadd.f32 %v444, %v662
    %v665 = vadd.f32 %v445, %v663
    %s666 = scalar_lea.vmem [#allocation6], 18
    %v667 = vld [vmem:[%s666] ss:$8 sm:$0x3]
    %s668 = scalar_lea.vmem [#allocation8], 18
    %v669 = vld [vmem:[%s668] ss:$8 sm:$0x3]
    %v671 = vlaneseq
    %v672 = vshrl.u32 %v671, 7
    %v673 = vsub.s32 0, %v672
    %v674 = vrot.slane %v667, %v673
    %v675 = vlaneseq
    %v676 = vshrl.u32 %v675, 7
    %v677 = vsub.s32 1, %v676
    %v678 = vrot.slane %v667, %v677
    %681 = vrot.lane.b32.xlu0 %v123, 109
    %v682 = vpop.permute.xlu0 %681
    %683 = vrot.lane.b32.xlu0 %v141, 109
    %v684 = vpop.permute.xlu0 %683
    %685 = vrot.lane.b32.xlu0 %v124, 109
    %v686 = vpop.permute.xlu0 %685
    %vm687 = vcmask 891904
    %v688 = vsel %vm687, %v682, %v684
    %v689 = vsel %vm687, %v684, %v686
    %v692 = vmul.f32 %v674, %v688
    %v693 = vmul.f32 %v678, %v689
    %v694 = vadd.f32 %v474, %v692
    %v695 = vadd.f32 %v475, %v693
    %v697 = vlaneseq
    %v698 = vshrl.u32 %v697, 7
    %v699 = vsub.s32 0, %v698
    %v700 = vrot.slane %v669, %v699
    %v701 = vlaneseq
    %v702 = vshrl.u32 %v701, 7
    %v703 = vsub.s32 1, %v702
    %v704 = vrot.slane %v669, %v703
    %707 = vrot.lane.b32.xlu0 %v160, 109
    %v708 = vpop.permute.xlu0 %707
    %709 = vrot.lane.b32.xlu0 %v161, 109
    %v710 = vpop.permute.xlu0 %709
    %711 = vrot.lane.b32.xlu0 %v211, 109
    %v712 = vpop.permute.xlu0 %711
    %v713 = vsel %vm687, %v708, %v710
    %v714 = vsel %vm687, %v710, %v712
    %v717 = vmul.f32 %v700, %v713
    %v718 = vmul.f32 %v704, %v714
    %v719 = vadd.f32 %v499, %v717
    %v720 = vadd.f32 %v500, %v718
    %s721 = scalar_lea.vmem [#allocation6], 19
    %v722 = vld [vmem:[%s721] ss:$8 sm:$0x3]
    %s723 = scalar_lea.vmem [#allocation8], 19
    %v724 = vld [vmem:[%s723] ss:$8 sm:$0x3]
    %v726 = vlaneseq
    %v727 = vshrl.u32 %v726, 7
    %v728 = vsub.s32 0, %v727
    %v729 = vrot.slane %v722, %v728
    %v730 = vlaneseq
    %v731 = vshrl.u32 %v730, 7
    %v732 = vsub.s32 1, %v731
    %v733 = vrot.slane %v722, %v732
    %736 = vrot.lane.b32.xlu0 %v123, 108
    %v737 = vpop.permute.xlu0 %736
    %738 = vrot.lane.b32.xlu0 %v141, 108
    %v739 = vpop.permute.xlu0 %738
    %740 = vrot.lane.b32.xlu0 %v124, 108
    %v741 = vpop.permute.xlu0 %740
    %vm742 = vcmask 883712
    %v743 = vsel %vm742, %v737, %v739
    %v744 = vsel %vm742, %v739, %v741
    %v747 = vmul.f32 %v729, %v743
    %v748 = vmul.f32 %v733, %v744
    %v749 = vadd.f32 %v529, %v747
    %v750 = vadd.f32 %v530, %v748
    %v752 = vlaneseq
    %v753 = vshrl.u32 %v752, 7
    %v754 = vsub.s32 0, %v753
    %v755 = vrot.slane %v724, %v754
    %v756 = vlaneseq
    %v757 = vshrl.u32 %v756, 7
    %v758 = vsub.s32 1, %v757
    %v759 = vrot.slane %v724, %v758
    %762 = vrot.lane.b32.xlu0 %v160, 108
    %v763 = vpop.permute.xlu0 %762
    %764 = vrot.lane.b32.xlu0 %v161, 108
    %v765 = vpop.permute.xlu0 %764
    %766 = vrot.lane.b32.xlu0 %v211, 108
    %v767 = vpop.permute.xlu0 %766
    %v768 = vsel %vm742, %v763, %v765
    %v769 = vsel %vm742, %v765, %v767
    %v772 = vmul.f32 %v755, %v768
    %v773 = vmul.f32 %v759, %v769
    %v774 = vadd.f32 %v554, %v772
    %v775 = vadd.f32 %v555, %v773
    %s776 = scalar_lea.vmem [#allocation6], 20
    %v777 = vld [vmem:[%s776] ss:$8 sm:$0x3]
    %s778 = scalar_lea.vmem [#allocation8], 20
    %v779 = vld [vmem:[%s778] ss:$8 sm:$0x3]
    %v781 = vlaneseq
    %v782 = vshrl.u32 %v781, 7
    %v783 = vsub.s32 0, %v782
    %v784 = vrot.slane %v777, %v783
    %v785 = vlaneseq
    %v786 = vshrl.u32 %v785, 7
    %v787 = vsub.s32 1, %v786
    %v788 = vrot.slane %v777, %v787
    %791 = vrot.lane.b32.xlu0 %v123, 107
    %v792 = vpop.permute.xlu0 %791
    %793 = vrot.lane.b32.xlu0 %v141, 107
    %v794 = vpop.permute.xlu0 %793
    %795 = vrot.lane.b32.xlu0 %v124, 107
    %v796 = vpop.permute.xlu0 %795
    %vm797 = vcmask 875520
    %v798 = vsel %vm797, %v792, %v794
    %v799 = vsel %vm797, %v794, %v796
    %v802 = vmul.f32 %v784, %v798
    %v803 = vmul.f32 %v788, %v799
    %v804 = vadd.f32 %v584, %v802
    %v805 = vadd.f32 %v585, %v803
    %v807 = vlaneseq
    %v808 = vshrl.u32 %v807, 7
    %v809 = vsub.s32 0, %v808
    %v810 = vrot.slane %v779, %v809
    %v811 = vlaneseq
    %v812 = vshrl.u32 %v811, 7
    %v813 = vsub.s32 1, %v812
    %v814 = vrot.slane %v779, %v813
    %817 = vrot.lane.b32.xlu0 %v160, 107
    %v818 = vpop.permute.xlu0 %817
    %819 = vrot.lane.b32.xlu0 %v161, 107
    %v820 = vpop.permute.xlu0 %819
    %821 = vrot.lane.b32.xlu0 %v211, 107
    %v822 = vpop.permute.xlu0 %821
    %v823 = vsel %vm797, %v818, %v820
    %v824 = vsel %vm797, %v820, %v822
    %v827 = vmul.f32 %v810, %v823
    %v828 = vmul.f32 %v814, %v824
    %v829 = vadd.f32 %v609, %v827
    %v830 = vadd.f32 %v610, %v828
    %s831 = scalar_lea.vmem [#allocation6], 21
    %v832 = vld [vmem:[%s831] ss:$8 sm:$0x3]
    %s833 = scalar_lea.vmem [#allocation8], 21
    %v834 = vld [vmem:[%s833] ss:$8 sm:$0x3]
    %v836 = vlaneseq
    %v837 = vshrl.u32 %v836, 7
    %v838 = vsub.s32 0, %v837
    %v839 = vrot.slane %v832, %v838
    %v840 = vlaneseq
    %v841 = vshrl.u32 %v840, 7
    %v842 = vsub.s32 1, %v841
    %v843 = vrot.slane %v832, %v842
    %846 = vrot.lane.b32.xlu0 %v123, 106
    %v847 = vpop.permute.xlu0 %846
    %848 = vrot.lane.b32.xlu0 %v141, 106
    %v849 = vpop.permute.xlu0 %848
    %850 = vrot.lane.b32.xlu0 %v124, 106
    %v851 = vpop.permute.xlu0 %850
    %vm852 = vcmask 867328
    %v853 = vsel %vm852, %v847, %v849
    %v854 = vsel %vm852, %v849, %v851
    %v857 = vmul.f32 %v839, %v853
    %v858 = vmul.f32 %v843, %v854
    %v859 = vadd.f32 %v639, %v857
    %v860 = vadd.f32 %v640, %v858
    %v862 = vlaneseq
    %v863 = vshrl.u32 %v862, 7
    %v864 = vsub.s32 0, %v863
    %v865 = vrot.slane %v834, %v864
    %v866 = vlaneseq
    %v867 = vshrl.u32 %v866, 7
    %v868 = vsub.s32 1, %v867
    %v869 = vrot.slane %v834, %v868
    %872 = vrot.lane.b32.xlu0 %v160, 106
    %v873 = vpop.permute.xlu0 %872
    %874 = vrot.lane.b32.xlu0 %v161, 106
    %v875 = vpop.permute.xlu0 %874
    %876 = vrot.lane.b32.xlu0 %v211, 106
    %v877 = vpop.permute.xlu0 %876
    %v878 = vsel %vm852, %v873, %v875
    %v879 = vsel %vm852, %v875, %v877
    %v882 = vmul.f32 %v865, %v878
    %v883 = vmul.f32 %v869, %v879
    %v884 = vadd.f32 %v664, %v882
    %v885 = vadd.f32 %v665, %v883
    %s886 = scalar_lea.vmem [#allocation6], 22
    %v887 = vld [vmem:[%s886] ss:$8 sm:$0x3]
    %s888 = scalar_lea.vmem [#allocation8], 22
    %v889 = vld [vmem:[%s888] ss:$8 sm:$0x3]
    %v891 = vlaneseq
    %v892 = vshrl.u32 %v891, 7
    %v893 = vsub.s32 0, %v892
    %v894 = vrot.slane %v887, %v893
    %v895 = vlaneseq
    %v896 = vshrl.u32 %v895, 7
    %v897 = vsub.s32 1, %v896
    %v898 = vrot.slane %v887, %v897
    %901 = vrot.lane.b32.xlu0 %v123, 96
    %v902 = vpop.permute.xlu0 %901
    %903 = vrot.lane.b32.xlu0 %v141, 96
    %v904 = vpop.permute.xlu0 %903
    %905 = vrot.lane.b32.xlu0 %v124, 96
    %v906 = vpop.permute.xlu0 %905
    %vm907 = vcmask 785408
    %v908 = vsel %vm907, %v902, %v904
    %v909 = vsel %vm907, %v904, %v906
    %v912 = vmul.f32 %v894, %v908
    %v913 = vmul.f32 %v898, %v909
    %v914 = vadd.f32 %v694, %v912
    %v915 = vadd.f32 %v695, %v913
    %v917 = vlaneseq
    %v918 = vshrl.u32 %v917, 7
    %v919 = vsub.s32 0, %v918
    %v920 = vrot.slane %v889, %v919
    %v921 = vlaneseq
    %v922 = vshrl.u32 %v921, 7
    %v923 = vsub.s32 1, %v922
    %v924 = vrot.slane %v889, %v923
    %927 = vrot.lane.b32.xlu0 %v160, 96
    %v928 = vpop.permute.xlu0 %927
    %929 = vrot.lane.b32.xlu0 %v161, 96
    %v930 = vpop.permute.xlu0 %929
    %931 = vrot.lane.b32.xlu0 %v211, 96
    %v932 = vpop.permute.xlu0 %931
    %v933 = vsel %vm907, %v928, %v930
    %v934 = vsel %vm907, %v930, %v932
    %v937 = vmul.f32 %v920, %v933
    %v938 = vmul.f32 %v924, %v934
    %v939 = vadd.f32 %v719, %v937
    %v940 = vadd.f32 %v720, %v938
    %s941 = scalar_lea.vmem [#allocation6], 23
    %v942 = vld [vmem:[%s941] ss:$8 sm:$0x3]
    %s943 = scalar_lea.vmem [#allocation8], 23
    %v944 = vld [vmem:[%s943] ss:$8 sm:$0x3]
    %v946 = vlaneseq
    %v947 = vshrl.u32 %v946, 7
    %v948 = vsub.s32 0, %v947
    %v949 = vrot.slane %v942, %v948
    %v950 = vlaneseq
    %v951 = vshrl.u32 %v950, 7
    %v952 = vsub.s32 1, %v951
    %v953 = vrot.slane %v942, %v952
    %956 = vrot.lane.b32.xlu0 %v123, 95
    %v957 = vpop.permute.xlu0 %956
    %958 = vrot.lane.b32.xlu0 %v141, 95
    %v959 = vpop.permute.xlu0 %958
    %960 = vrot.lane.b32.xlu0 %v124, 95
    %v961 = vpop.permute.xlu0 %960
    %vm962 = vcmask 777216
    %v963 = vsel %vm962, %v957, %v959
    %v964 = vsel %vm962, %v959, %v961
    %v967 = vmul.f32 %v949, %v963
    %v968 = vmul.f32 %v953, %v964
    %v969 = vadd.f32 %v749, %v967
    %v970 = vadd.f32 %v750, %v968
    %v972 = vlaneseq
    %v973 = vshrl.u32 %v972, 7
    %v974 = vsub.s32 0, %v973
    %v975 = vrot.slane %v944, %v974
    %v976 = vlaneseq
    %v977 = vshrl.u32 %v976, 7
    %v978 = vsub.s32 1, %v977
    %v979 = vrot.slane %v944, %v978
    %982 = vrot.lane.b32.xlu0 %v160, 95
    %v983 = vpop.permute.xlu0 %982
    %984 = vrot.lane.b32.xlu0 %v161, 95
    %v985 = vpop.permute.xlu0 %984
    %986 = vrot.lane.b32.xlu0 %v211, 95
    %v987 = vpop.permute.xlu0 %986
    %v988 = vsel %vm962, %v983, %v985
    %v989 = vsel %vm962, %v985, %v987
    %v992 = vmul.f32 %v975, %v988
    %v993 = vmul.f32 %v979, %v989
    %v994 = vadd.f32 %v774, %v992
    %v995 = vadd.f32 %v775, %v993
    %s996 = scalar_lea.vmem [#allocation6], 32
    %v997 = vld [vmem:[%s996] ss:$8 sm:$0x3]
    %s998 = scalar_lea.vmem [#allocation8], 32
    %v999 = vld [vmem:[%s998] ss:$8 sm:$0x3]
    %v1001 = vlaneseq
    %v1002 = vshrl.u32 %v1001, 7
    %v1003 = vsub.s32 0, %v1002
    %v1004 = vrot.slane %v997, %v1003
    %v1005 = vlaneseq
    %v1006 = vshrl.u32 %v1005, 7
    %v1007 = vsub.s32 1, %v1006
    %v1008 = vrot.slane %v997, %v1007
    %1011 = vrot.lane.b32.xlu0 %v123, 94
    %v1012 = vpop.permute.xlu0 %1011
    %1013 = vrot.lane.b32.xlu0 %v141, 94
    %v1014 = vpop.permute.xlu0 %1013
    %1015 = vrot.lane.b32.xlu0 %v124, 94
    %v1016 = vpop.permute.xlu0 %1015
    %vm1017 = vcmask 769024
    %v1018 = vsel %vm1017, %v1012, %v1014
    %v1019 = vsel %vm1017, %v1014, %v1016
    %v1022 = vmul.f32 %v1004, %v1018
    %v1023 = vmul.f32 %v1008, %v1019
    %v1024 = vadd.f32 %v804, %v1022
    %v1025 = vadd.f32 %v805, %v1023
    %v1027 = vlaneseq
    %v1028 = vshrl.u32 %v1027, 7
    %v1029 = vsub.s32 0, %v1028
    %v1030 = vrot.slane %v999, %v1029
    %v1031 = vlaneseq
    %v1032 = vshrl.u32 %v1031, 7
    %v1033 = vsub.s32 1, %v1032
    %v1034 = vrot.slane %v999, %v1033
    %1037 = vrot.lane.b32.xlu0 %v160, 94
    %v1038 = vpop.permute.xlu0 %1037
    %1039 = vrot.lane.b32.xlu0 %v161, 94
    %v1040 = vpop.permute.xlu0 %1039
    %1041 = vrot.lane.b32.xlu0 %v211, 94
    %v1042 = vpop.permute.xlu0 %1041
    %v1043 = vsel %vm1017, %v1038, %v1040
    %v1044 = vsel %vm1017, %v1040, %v1042
    %v1047 = vmul.f32 %v1030, %v1043
    %v1048 = vmul.f32 %v1034, %v1044
    %v1049 = vadd.f32 %v829, %v1047
    %v1050 = vadd.f32 %v830, %v1048
    %s1051 = scalar_lea.vmem [#allocation6], 33
    %v1052 = vld [vmem:[%s1051] ss:$8 sm:$0x3]
    %s1053 = scalar_lea.vmem [#allocation8], 33
    %v1054 = vld [vmem:[%s1053] ss:$8 sm:$0x3]
    %v1056 = vlaneseq
    %v1057 = vshrl.u32 %v1056, 7
    %v1058 = vsub.s32 0, %v1057
    %v1059 = vrot.slane %v1052, %v1058
    %v1060 = vlaneseq
    %v1061 = vshrl.u32 %v1060, 7
    %v1062 = vsub.s32 1, %v1061
    %v1063 = vrot.slane %v1052, %v1062
    %1066 = vrot.lane.b32.xlu0 %v123, 93
    %v1067 = vpop.permute.xlu0 %1066
    %1068 = vrot.lane.b32.xlu0 %v141, 93
    %v1069 = vpop.permute.xlu0 %1068
    %1070 = vrot.lane.b32.xlu0 %v124, 93
    %v1071 = vpop.permute.xlu0 %1070
    %vm1072 = vcmask 760832
    %v1073 = vsel %vm1072, %v1067, %v1069
    %v1074 = vsel %vm1072, %v1069, %v1071
    %v1077 = vmul.f32 %v1059, %v1073
    %v1078 = vmul.f32 %v1063, %v1074
    %v1079 = vadd.f32 %v859, %v1077
    %v1080 = vadd.f32 %v860, %v1078
    %v1082 = vlaneseq
    %v1083 = vshrl.u32 %v1082, 7
    %v1084 = vsub.s32 0, %v1083
    %v1085 = vrot.slane %v1054, %v1084
    %v1086 = vlaneseq
    %v1087 = vshrl.u32 %v1086, 7
    %v1088 = vsub.s32 1, %v1087
    %v1089 = vrot.slane %v1054, %v1088
    %1092 = vrot.lane.b32.xlu0 %v160, 93
    %v1093 = vpop.permute.xlu0 %1092
    %1094 = vrot.lane.b32.xlu0 %v161, 93
    %v1095 = vpop.permute.xlu0 %1094
    %1096 = vrot.lane.b32.xlu0 %v211, 93
    %v1097 = vpop.permute.xlu0 %1096
    %v1098 = vsel %vm1072, %v1093, %v1095
    %v1099 = vsel %vm1072, %v1095, %v1097
    %v1102 = vmul.f32 %v1085, %v1098
    %v1103 = vmul.f32 %v1089, %v1099
    %v1104 = vadd.f32 %v884, %v1102
    %v1105 = vadd.f32 %v885, %v1103
    %s1106 = scalar_lea.vmem [#allocation6], 34
    %v1107 = vld [vmem:[%s1106] ss:$8 sm:$0x3]
    %s1108 = scalar_lea.vmem [#allocation8], 34
    %v1109 = vld [vmem:[%s1108] ss:$8 sm:$0x3]
    %v1111 = vlaneseq
    %v1112 = vshrl.u32 %v1111, 7
    %v1113 = vsub.s32 0, %v1112
    %v1114 = vrot.slane %v1107, %v1113
    %v1115 = vlaneseq
    %v1116 = vshrl.u32 %v1115, 7
    %v1117 = vsub.s32 1, %v1116
    %v1118 = vrot.slane %v1107, %v1117
    %1121 = vrot.lane.b32.xlu0 %v123, 92
    %v1122 = vpop.permute.xlu0 %1121
    %1123 = vrot.lane.b32.xlu0 %v141, 92
    %v1124 = vpop.permute.xlu0 %1123
    %1125 = vrot.lane.b32.xlu0 %v124, 92
    %v1126 = vpop.permute.xlu0 %1125
    %vm1127 = vcmask 752640
    %v1128 = vsel %vm1127, %v1122, %v1124
    %v1129 = vsel %vm1127, %v1124, %v1126
    %v1132 = vmul.f32 %v1114, %v1128
    %v1133 = vmul.f32 %v1118, %v1129
    %v1134 = vadd.f32 %v914, %v1132
    %v1135 = vadd.f32 %v915, %v1133
    %v1137 = vlaneseq
    %v1138 = vshrl.u32 %v1137, 7
    %v1139 = vsub.s32 0, %v1138
    %v1140 = vrot.slane %v1109, %v1139
    %v1141 = vlaneseq
    %v1142 = vshrl.u32 %v1141, 7
    %v1143 = vsub.s32 1, %v1142
    %v1144 = vrot.slane %v1109, %v1143
    %1147 = vrot.lane.b32.xlu0 %v160, 92
    %v1148 = vpop.permute.xlu0 %1147
    %1149 = vrot.lane.b32.xlu0 %v161, 92
    %v1150 = vpop.permute.xlu0 %1149
    %1151 = vrot.lane.b32.xlu0 %v211, 92
    %v1152 = vpop.permute.xlu0 %1151
    %v1153 = vsel %vm1127, %v1148, %v1150
    %v1154 = vsel %vm1127, %v1150, %v1152
    %v1157 = vmul.f32 %v1140, %v1153
    %v1158 = vmul.f32 %v1144, %v1154
    %v1159 = vadd.f32 %v939, %v1157
    %v1160 = vadd.f32 %v940, %v1158
    %s1161 = scalar_lea.vmem [#allocation6], 35
    %v1162 = vld [vmem:[%s1161] ss:$8 sm:$0x3]
    %s1163 = scalar_lea.vmem [#allocation8], 35
    %v1164 = vld [vmem:[%s1163] ss:$8 sm:$0x3]
    %v1166 = vlaneseq
    %v1167 = vshrl.u32 %v1166, 7
    %v1168 = vsub.s32 0, %v1167
    %v1169 = vrot.slane %v1162, %v1168
    %v1170 = vlaneseq
    %v1171 = vshrl.u32 %v1170, 7
    %v1172 = vsub.s32 1, %v1171
    %v1173 = vrot.slane %v1162, %v1172
    %1176 = vrot.lane.b32.xlu0 %v123, 91
    %v1177 = vpop.permute.xlu0 %1176
    %1178 = vrot.lane.b32.xlu0 %v141, 91
    %v1179 = vpop.permute.xlu0 %1178
    %1180 = vrot.lane.b32.xlu0 %v124, 91
    %v1181 = vpop.permute.xlu0 %1180
    %vm1182 = vcmask 744448
    %v1183 = vsel %vm1182, %v1177, %v1179
    %v1184 = vsel %vm1182, %v1179, %v1181
    %v1187 = vmul.f32 %v1169, %v1183
    %v1188 = vmul.f32 %v1173, %v1184
    %v1189 = vadd.f32 %v969, %v1187
    %v1190 = vadd.f32 %v970, %v1188
    %v1192 = vlaneseq
    %v1193 = vshrl.u32 %v1192, 7
    %v1194 = vsub.s32 0, %v1193
    %v1195 = vrot.slane %v1164, %v1194
    %v1196 = vlaneseq
    %v1197 = vshrl.u32 %v1196, 7
    %v1198 = vsub.s32 1, %v1197
    %v1199 = vrot.slane %v1164, %v1198
    %1202 = vrot.lane.b32.xlu0 %v160, 91
    %v1203 = vpop.permute.xlu0 %1202
    %1204 = vrot.lane.b32.xlu0 %v161, 91
    %v1205 = vpop.permute.xlu0 %1204
    %1206 = vrot.lane.b32.xlu0 %v211, 91
    %v1207 = vpop.permute.xlu0 %1206
    %v1208 = vsel %vm1182, %v1203, %v1205
    %v1209 = vsel %vm1182, %v1205, %v1207
    %v1212 = vmul.f32 %v1195, %v1208
    %v1213 = vmul.f32 %v1199, %v1209
    %v1214 = vadd.f32 %v994, %v1212
    %v1215 = vadd.f32 %v995, %v1213
    %s1216 = scalar_lea.vmem [#allocation6], 36
    %v1217 = vld [vmem:[%s1216] ss:$8 sm:$0x3]
    %s1218 = scalar_lea.vmem [#allocation8], 36
    %v1219 = vld [vmem:[%s1218] ss:$8 sm:$0x3]
    %v1221 = vlaneseq
    %v1222 = vshrl.u32 %v1221, 7
    %v1223 = vsub.s32 0, %v1222
    %v1224 = vrot.slane %v1217, %v1223
    %v1225 = vlaneseq
    %v1226 = vshrl.u32 %v1225, 7
    %v1227 = vsub.s32 1, %v1226
    %v1228 = vrot.slane %v1217, %v1227
    %1231 = vrot.lane.b32.xlu0 %v123, 90
    %v1232 = vpop.permute.xlu0 %1231
    %1233 = vrot.lane.b32.xlu0 %v141, 90
    %v1234 = vpop.permute.xlu0 %1233
    %1235 = vrot.lane.b32.xlu0 %v124, 90
    %v1236 = vpop.permute.xlu0 %1235
    %vm1237 = vcmask 736256
    %v1238 = vsel %vm1237, %v1232, %v1234
    %v1239 = vsel %vm1237, %v1234, %v1236
    %v1242 = vmul.f32 %v1224, %v1238
    %v1243 = vmul.f32 %v1228, %v1239
    %v1244 = vadd.f32 %v1024, %v1242
    %v1245 = vadd.f32 %v1025, %v1243
    %v1247 = vlaneseq
    %v1248 = vshrl.u32 %v1247, 7
    %v1249 = vsub.s32 0, %v1248
    %v1250 = vrot.slane %v1219, %v1249
    %v1251 = vlaneseq
    %v1252 = vshrl.u32 %v1251, 7
    %v1253 = vsub.s32 1, %v1252
    %v1254 = vrot.slane %v1219, %v1253
    %1257 = vrot.lane.b32.xlu0 %v160, 90
    %v1258 = vpop.permute.xlu0 %1257
    %1259 = vrot.lane.b32.xlu0 %v161, 90
    %v1260 = vpop.permute.xlu0 %1259
    %1261 = vrot.lane.b32.xlu0 %v211, 90
    %v1262 = vpop.permute.xlu0 %1261
    %v1263 = vsel %vm1237, %v1258, %v1260
    %v1264 = vsel %vm1237, %v1260, %v1262
    %v1267 = vmul.f32 %v1250, %v1263
    %v1268 = vmul.f32 %v1254, %v1264
    %v1269 = vadd.f32 %v1049, %v1267
    %v1270 = vadd.f32 %v1050, %v1268
    %s1271 = scalar_lea.vmem [#allocation6], 37
    %v1272 = vld [vmem:[%s1271] ss:$8 sm:$0x3]
    %s1273 = scalar_lea.vmem [#allocation8], 37
    %v1274 = vld [vmem:[%s1273] ss:$8 sm:$0x3]
    %v1276 = vlaneseq
    %v1277 = vshrl.u32 %v1276, 7
    %v1278 = vsub.s32 0, %v1277
    %v1279 = vrot.slane %v1272, %v1278
    %v1280 = vlaneseq
    %v1281 = vshrl.u32 %v1280, 7
    %v1282 = vsub.s32 1, %v1281
    %v1283 = vrot.slane %v1272, %v1282
    %1286 = vrot.lane.b32.xlu0 %v123, 80
    %v1287 = vpop.permute.xlu0 %1286
    %1288 = vrot.lane.b32.xlu0 %v141, 80
    %v1289 = vpop.permute.xlu0 %1288
    %1290 = vrot.lane.b32.xlu0 %v124, 80
    %v1291 = vpop.permute.xlu0 %1290
    %vm1292 = vcmask 654336
    %v1293 = vsel %vm1292, %v1287, %v1289
    %v1294 = vsel %vm1292, %v1289, %v1291
    %v1297 = vmul.f32 %v1279, %v1293
    %v1298 = vmul.f32 %v1283, %v1294
    %v1299 = vadd.f32 %v1079, %v1297
    %v1300 = vadd.f32 %v1080, %v1298
    %v1302 = vlaneseq
    %v1303 = vshrl.u32 %v1302, 7
    %v1304 = vsub.s32 0, %v1303
    %v1305 = vrot.slane %v1274, %v1304
    %v1306 = vlaneseq
    %v1307 = vshrl.u32 %v1306, 7
    %v1308 = vsub.s32 1, %v1307
    %v1309 = vrot.slane %v1274, %v1308
    %1312 = vrot.lane.b32.xlu0 %v160, 80
    %v1313 = vpop.permute.xlu0 %1312
    %1314 = vrot.lane.b32.xlu0 %v161, 80
    %v1315 = vpop.permute.xlu0 %1314
    %1316 = vrot.lane.b32.xlu0 %v211, 80
    %v1317 = vpop.permute.xlu0 %1316
    %v1318 = vsel %vm1292, %v1313, %v1315
    %v1319 = vsel %vm1292, %v1315, %v1317
    %v1322 = vmul.f32 %v1305, %v1318
    %v1323 = vmul.f32 %v1309, %v1319
    %v1324 = vadd.f32 %v1104, %v1322
    %v1325 = vadd.f32 %v1105, %v1323
    %s1326 = scalar_lea.vmem [#allocation6], 38
    %v1327 = vld [vmem:[%s1326] ss:$8 sm:$0x3]
    %s1328 = scalar_lea.vmem [#allocation8], 38
    %v1329 = vld [vmem:[%s1328] ss:$8 sm:$0x3]
    %v1331 = vlaneseq
    %v1332 = vshrl.u32 %v1331, 7
    %v1333 = vsub.s32 0, %v1332
    %v1334 = vrot.slane %v1327, %v1333
    %v1335 = vlaneseq
    %v1336 = vshrl.u32 %v1335, 7
    %v1337 = vsub.s32 1, %v1336
    %v1338 = vrot.slane %v1327, %v1337
    %1341 = vrot.lane.b32.xlu0 %v123, 79
    %v1342 = vpop.permute.xlu0 %1341
    %1343 = vrot.lane.b32.xlu0 %v141, 79
    %v1344 = vpop.permute.xlu0 %1343
    %1345 = vrot.lane.b32.xlu0 %v124, 79
    %v1346 = vpop.permute.xlu0 %1345
    %vm1347 = vcmask 646144
    %v1348 = vsel %vm1347, %v1342, %v1344
    %v1349 = vsel %vm1347, %v1344, %v1346
    %v1352 = vmul.f32 %v1334, %v1348
    %v1353 = vmul.f32 %v1338, %v1349
    %v1354 = vadd.f32 %v1134, %v1352
    %v1355 = vadd.f32 %v1135, %v1353
    %v1357 = vlaneseq
    %v1358 = vshrl.u32 %v1357, 7
    %v1359 = vsub.s32 0, %v1358
    %v1360 = vrot.slane %v1329, %v1359
    %v1361 = vlaneseq
    %v1362 = vshrl.u32 %v1361, 7
    %v1363 = vsub.s32 1, %v1362
    %v1364 = vrot.slane %v1329, %v1363
    %1367 = vrot.lane.b32.xlu0 %v160, 79
    %v1368 = vpop.permute.xlu0 %1367
    %1369 = vrot.lane.b32.xlu0 %v161, 79
    %v1370 = vpop.permute.xlu0 %1369
    %1371 = vrot.lane.b32.xlu0 %v211, 79
    %v1372 = vpop.permute.xlu0 %1371
    %v1373 = vsel %vm1347, %v1368, %v1370
    %v1374 = vsel %vm1347, %v1370, %v1372
    %v1377 = vmul.f32 %v1360, %v1373
    %v1378 = vmul.f32 %v1364, %v1374
    %v1379 = vadd.f32 %v1159, %v1377
    %v1380 = vadd.f32 %v1160, %v1378
    %s1381 = scalar_lea.vmem [#allocation6], 39
    %v1382 = vld [vmem:[%s1381] ss:$8 sm:$0x3]
    %s1383 = scalar_lea.vmem [#allocation8], 39
    %v1384 = vld [vmem:[%s1383] ss:$8 sm:$0x3]
    %v1386 = vlaneseq
    %v1387 = vshrl.u32 %v1386, 7
    %v1388 = vsub.s32 0, %v1387
    %v1389 = vrot.slane %v1382, %v1388
    %v1390 = vlaneseq
    %v1391 = vshrl.u32 %v1390, 7
    %v1392 = vsub.s32 1, %v1391
    %v1393 = vrot.slane %v1382, %v1392
    %1396 = vrot.lane.b32.xlu0 %v123, 78
    %v1397 = vpop.permute.xlu0 %1396
    %1398 = vrot.lane.b32.xlu0 %v141, 78
    %v1399 = vpop.permute.xlu0 %1398
    %1400 = vrot.lane.b32.xlu0 %v124, 78
    %v1401 = vpop.permute.xlu0 %1400
    %vm1402 = vcmask 637952
    %v1403 = vsel %vm1402, %v1397, %v1399
    %v1404 = vsel %vm1402, %v1399, %v1401
    %v1407 = vmul.f32 %v1389, %v1403
    %v1408 = vmul.f32 %v1393, %v1404
    %v1409 = vadd.f32 %v1189, %v1407
    %v1410 = vadd.f32 %v1190, %v1408
    %v1412 = vlaneseq
    %v1413 = vshrl.u32 %v1412, 7
    %v1414 = vsub.s32 0, %v1413
    %v1415 = vrot.slane %v1384, %v1414
    %v1416 = vlaneseq
    %v1417 = vshrl.u32 %v1416, 7
    %v1418 = vsub.s32 1, %v1417
    %v1419 = vrot.slane %v1384, %v1418
    %1422 = vrot.lane.b32.xlu0 %v160, 78
    %v1423 = vpop.permute.xlu0 %1422
    %1424 = vrot.lane.b32.xlu0 %v161, 78
    %v1425 = vpop.permute.xlu0 %1424
    %1426 = vrot.lane.b32.xlu0 %v211, 78
    %v1427 = vpop.permute.xlu0 %1426
    %v1428 = vsel %vm1402, %v1423, %v1425
    %v1429 = vsel %vm1402, %v1425, %v1427
    %v1432 = vmul.f32 %v1415, %v1428
    %v1433 = vmul.f32 %v1419, %v1429
    %v1434 = vadd.f32 %v1214, %v1432
    %v1435 = vadd.f32 %v1215, %v1433
    %s1436 = scalar_lea.vmem [#allocation6], 48
    %v1437 = vld [vmem:[%s1436] ss:$8 sm:$0x3]
    %s1438 = scalar_lea.vmem [#allocation8], 48
    %v1439 = vld [vmem:[%s1438] ss:$8 sm:$0x3]
    %v1441 = vlaneseq
    %v1442 = vshrl.u32 %v1441, 7
    %v1443 = vsub.s32 0, %v1442
    %v1444 = vrot.slane %v1437, %v1443
    %v1445 = vlaneseq
    %v1446 = vshrl.u32 %v1445, 7
    %v1447 = vsub.s32 1, %v1446
    %v1448 = vrot.slane %v1437, %v1447
    %1451 = vrot.lane.b32.xlu0 %v123, 77
    %v1452 = vpop.permute.xlu0 %1451
    %1453 = vrot.lane.b32.xlu0 %v141, 77
    %v1454 = vpop.permute.xlu0 %1453
    %1455 = vrot.lane.b32.xlu0 %v124, 77
    %v1456 = vpop.permute.xlu0 %1455
    %vm1457 = vcmask 629760
    %v1458 = vsel %vm1457, %v1452, %v1454
    %v1459 = vsel %vm1457, %v1454, %v1456
    %v1462 = vmul.f32 %v1444, %v1458
    %v1463 = vmul.f32 %v1448, %v1459
    %v1464 = vadd.f32 %v1244, %v1462
    %v1465 = vadd.f32 %v1245, %v1463
    %v1467 = vlaneseq
    %v1468 = vshrl.u32 %v1467, 7
    %v1469 = vsub.s32 0, %v1468
    %v1470 = vrot.slane %v1439, %v1469
    %v1471 = vlaneseq
    %v1472 = vshrl.u32 %v1471, 7
    %v1473 = vsub.s32 1, %v1472
    %v1474 = vrot.slane %v1439, %v1473
    %1477 = vrot.lane.b32.xlu0 %v160, 77
    %v1478 = vpop.permute.xlu0 %1477
    %1479 = vrot.lane.b32.xlu0 %v161, 77
    %v1480 = vpop.permute.xlu0 %1479
    %1481 = vrot.lane.b32.xlu0 %v211, 77
    %v1482 = vpop.permute.xlu0 %1481
    %v1483 = vsel %vm1457, %v1478, %v1480
    %v1484 = vsel %vm1457, %v1480, %v1482
    %v1487 = vmul.f32 %v1470, %v1483
    %v1488 = vmul.f32 %v1474, %v1484
    %v1489 = vadd.f32 %v1269, %v1487
    %v1490 = vadd.f32 %v1270, %v1488
    %s1491 = scalar_lea.vmem [#allocation6], 49
    %v1492 = vld [vmem:[%s1491] ss:$8 sm:$0x3]
    %s1493 = scalar_lea.vmem [#allocation8], 49
    %v1494 = vld [vmem:[%s1493] ss:$8 sm:$0x3]
    %v1496 = vlaneseq
    %v1497 = vshrl.u32 %v1496, 7
    %v1498 = vsub.s32 0, %v1497
    %v1499 = vrot.slane %v1492, %v1498
    %v1500 = vlaneseq
    %v1501 = vshrl.u32 %v1500, 7
    %v1502 = vsub.s32 1, %v1501
    %v1503 = vrot.slane %v1492, %v1502
    %1506 = vrot.lane.b32.xlu0 %v123, 76
    %v1507 = vpop.permute.xlu0 %1506
    %1508 = vrot.lane.b32.xlu0 %v141, 76
    %v1509 = vpop.permute.xlu0 %1508
    %1510 = vrot.lane.b32.xlu0 %v124, 76
    %v1511 = vpop.permute.xlu0 %1510
    %vm1512 = vcmask 621568
    %v1513 = vsel %vm1512, %v1507, %v1509
    %v1514 = vsel %vm1512, %v1509, %v1511
    %v1517 = vmul.f32 %v1499, %v1513
    %v1518 = vmul.f32 %v1503, %v1514
    %v1519 = vadd.f32 %v1299, %v1517
    %v1520 = vadd.f32 %v1300, %v1518
    %v1522 = vlaneseq
    %v1523 = vshrl.u32 %v1522, 7
    %v1524 = vsub.s32 0, %v1523
    %v1525 = vrot.slane %v1494, %v1524
    %v1526 = vlaneseq
    %v1527 = vshrl.u32 %v1526, 7
    %v1528 = vsub.s32 1, %v1527
    %v1529 = vrot.slane %v1494, %v1528
    %1532 = vrot.lane.b32.xlu0 %v160, 76
    %v1533 = vpop.permute.xlu0 %1532
    %1534 = vrot.lane.b32.xlu0 %v161, 76
    %v1535 = vpop.permute.xlu0 %1534
    %1536 = vrot.lane.b32.xlu0 %v211, 76
    %v1537 = vpop.permute.xlu0 %1536
    %v1538 = vsel %vm1512, %v1533, %v1535
    %v1539 = vsel %vm1512, %v1535, %v1537
    %v1542 = vmul.f32 %v1525, %v1538
    %v1543 = vmul.f32 %v1529, %v1539
    %v1544 = vadd.f32 %v1324, %v1542
    %v1545 = vadd.f32 %v1325, %v1543
    %s1546 = scalar_lea.vmem [#allocation6], 50
    %v1547 = vld [vmem:[%s1546] ss:$8 sm:$0x3]
    %s1548 = scalar_lea.vmem [#allocation8], 50
    %v1549 = vld [vmem:[%s1548] ss:$8 sm:$0x3]
    %v1551 = vlaneseq
    %v1552 = vshrl.u32 %v1551, 7
    %v1553 = vsub.s32 0, %v1552
    %v1554 = vrot.slane %v1547, %v1553
    %v1555 = vlaneseq
    %v1556 = vshrl.u32 %v1555, 7
    %v1557 = vsub.s32 1, %v1556
    %v1558 = vrot.slane %v1547, %v1557
    %1561 = vrot.lane.b32.xlu0 %v123, 75
    %v1562 = vpop.permute.xlu0 %1561
    %1563 = vrot.lane.b32.xlu0 %v141, 75
    %v1564 = vpop.permute.xlu0 %1563
    %1565 = vrot.lane.b32.xlu0 %v124, 75
    %v1566 = vpop.permute.xlu0 %1565
    %vm1567 = vcmask 613376
    %v1568 = vsel %vm1567, %v1562, %v1564
    %v1569 = vsel %vm1567, %v1564, %v1566
    %v1572 = vmul.f32 %v1554, %v1568
    %v1573 = vmul.f32 %v1558, %v1569
    %v1574 = vadd.f32 %v1354, %v1572
    %v1575 = vadd.f32 %v1355, %v1573
    %v1577 = vlaneseq
    %v1578 = vshrl.u32 %v1577, 7
    %v1579 = vsub.s32 0, %v1578
    %v1580 = vrot.slane %v1549, %v1579
    %v1581 = vlaneseq
    %v1582 = vshrl.u32 %v1581, 7
    %v1583 = vsub.s32 1, %v1582
    %v1584 = vrot.slane %v1549, %v1583
    %1587 = vrot.lane.b32.xlu0 %v160, 75
    %v1588 = vpop.permute.xlu0 %1587
    %1589 = vrot.lane.b32.xlu0 %v161, 75
    %v1590 = vpop.permute.xlu0 %1589
    %1591 = vrot.lane.b32.xlu0 %v211, 75
    %v1592 = vpop.permute.xlu0 %1591
    %v1593 = vsel %vm1567, %v1588, %v1590
    %v1594 = vsel %vm1567, %v1590, %v1592
    %v1597 = vmul.f32 %v1580, %v1593
    %v1598 = vmul.f32 %v1584, %v1594
    %v1599 = vadd.f32 %v1379, %v1597
    %v1600 = vadd.f32 %v1380, %v1598
    %s1601 = scalar_lea.vmem [#allocation6], 51
    %v1602 = vld [vmem:[%s1601] ss:$8 sm:$0x3]
    %s1603 = scalar_lea.vmem [#allocation8], 51
    %v1604 = vld [vmem:[%s1603] ss:$8 sm:$0x3]
    %v1606 = vlaneseq
    %v1607 = vshrl.u32 %v1606, 7
    %v1608 = vsub.s32 0, %v1607
    %v1609 = vrot.slane %v1602, %v1608
    %v1610 = vlaneseq
    %v1611 = vshrl.u32 %v1610, 7
    %v1612 = vsub.s32 1, %v1611
    %v1613 = vrot.slane %v1602, %v1612
    %1616 = vrot.lane.b32.xlu0 %v123, 74
    %v1617 = vpop.permute.xlu0 %1616
    %1618 = vrot.lane.b32.xlu0 %v141, 74
    %v1619 = vpop.permute.xlu0 %1618
    %1620 = vrot.lane.b32.xlu0 %v124, 74
    %v1621 = vpop.permute.xlu0 %1620
    %vm1622 = vcmask 605184
    %v1623 = vsel %vm1622, %v1617, %v1619
    %v1624 = vsel %vm1622, %v1619, %v1621
    %v1627 = vmul.f32 %v1609, %v1623
    %v1628 = vmul.f32 %v1613, %v1624
    %v1629 = vadd.f32 %v1409, %v1627
    %v1630 = vadd.f32 %v1410, %v1628
    %v1632 = vlaneseq
    %v1633 = vshrl.u32 %v1632, 7
    %v1634 = vsub.s32 0, %v1633
    %v1635 = vrot.slane %v1604, %v1634
    %v1636 = vlaneseq
    %v1637 = vshrl.u32 %v1636, 7
    %v1638 = vsub.s32 1, %v1637
    %v1639 = vrot.slane %v1604, %v1638
    %1642 = vrot.lane.b32.xlu0 %v160, 74
    %v1643 = vpop.permute.xlu0 %1642
    %1644 = vrot.lane.b32.xlu0 %v161, 74
    %v1645 = vpop.permute.xlu0 %1644
    %1646 = vrot.lane.b32.xlu0 %v211, 74
    %v1647 = vpop.permute.xlu0 %1646
    %v1648 = vsel %vm1622, %v1643, %v1645
    %v1649 = vsel %vm1622, %v1645, %v1647
    %v1652 = vmul.f32 %v1635, %v1648
    %v1653 = vmul.f32 %v1639, %v1649
    %v1654 = vadd.f32 %v1434, %v1652
    %v1655 = vadd.f32 %v1435, %v1653
    %s1656 = scalar_lea.vmem [#allocation6], 52
    %v1657 = vld [vmem:[%s1656] ss:$8 sm:$0x3]
    %s1658 = scalar_lea.vmem [#allocation8], 52
    %v1659 = vld [vmem:[%s1658] ss:$8 sm:$0x3]
    %v1661 = vlaneseq
    %v1662 = vshrl.u32 %v1661, 7
    %v1663 = vsub.s32 0, %v1662
    %v1664 = vrot.slane %v1657, %v1663
    %v1665 = vlaneseq
    %v1666 = vshrl.u32 %v1665, 7
    %v1667 = vsub.s32 1, %v1666
    %v1668 = vrot.slane %v1657, %v1667
    %1671 = vrot.lane.b32.xlu0 %v123, 64
    %v1672 = vpop.permute.xlu0 %1671
    %1673 = vrot.lane.b32.xlu0 %v141, 64
    %v1674 = vpop.permute.xlu0 %1673
    %1675 = vrot.lane.b32.xlu0 %v124, 64
    %v1676 = vpop.permute.xlu0 %1675
    %vm1677 = vcmask 523264
    %v1678 = vsel %vm1677, %v1672, %v1674
    %v1679 = vsel %vm1677, %v1674, %v1676
    %v1682 = vmul.f32 %v1664, %v1678
    %v1683 = vmul.f32 %v1668, %v1679
    %v1684 = vadd.f32 %v1464, %v1682
    %v1685 = vadd.f32 %v1465, %v1683
    %v1687 = vlaneseq
    %v1688 = vshrl.u32 %v1687, 7
    %v1689 = vsub.s32 0, %v1688
    %v1690 = vrot.slane %v1659, %v1689
    %v1691 = vlaneseq
    %v1692 = vshrl.u32 %v1691, 7
    %v1693 = vsub.s32 1, %v1692
    %v1694 = vrot.slane %v1659, %v1693
    %1697 = vrot.lane.b32.xlu0 %v160, 64
    %v1698 = vpop.permute.xlu0 %1697
    %1699 = vrot.lane.b32.xlu0 %v161, 64
    %v1700 = vpop.permute.xlu0 %1699
    %1701 = vrot.lane.b32.xlu0 %v211, 64
    %v1702 = vpop.permute.xlu0 %1701
    %v1703 = vsel %vm1677, %v1698, %v1700
    %v1704 = vsel %vm1677, %v1700, %v1702
    %v1707 = vmul.f32 %v1690, %v1703
    %v1708 = vmul.f32 %v1694, %v1704
    %v1709 = vadd.f32 %v1489, %v1707
    %v1710 = vadd.f32 %v1490, %v1708
    %s1711 = scalar_lea.vmem [#allocation6], 53
    %v1712 = vld [vmem:[%s1711] ss:$8 sm:$0x3]
    %s1713 = scalar_lea.vmem [#allocation8], 53
    %v1714 = vld [vmem:[%s1713] ss:$8 sm:$0x3]
    %v1716 = vlaneseq
    %v1717 = vshrl.u32 %v1716, 7
    %v1718 = vsub.s32 0, %v1717
    %v1719 = vrot.slane %v1712, %v1718
    %v1720 = vlaneseq
    %v1721 = vshrl.u32 %v1720, 7
    %v1722 = vsub.s32 1, %v1721
    %v1723 = vrot.slane %v1712, %v1722
    %1726 = vrot.lane.b32.xlu0 %v123, 63
    %v1727 = vpop.permute.xlu0 %1726
    %1728 = vrot.lane.b32.xlu0 %v141, 63
    %v1729 = vpop.permute.xlu0 %1728
    %1730 = vrot.lane.b32.xlu0 %v124, 63
    %v1731 = vpop.permute.xlu0 %1730
    %vm1732 = vcmask 515072
    %v1733 = vsel %vm1732, %v1727, %v1729
    %v1734 = vsel %vm1732, %v1729, %v1731
    %v1737 = vmul.f32 %v1719, %v1733
    %v1738 = vmul.f32 %v1723, %v1734
    %v1739 = vadd.f32 %v1519, %v1737
    %v1740 = vadd.f32 %v1520, %v1738
    %v1742 = vlaneseq
    %v1743 = vshrl.u32 %v1742, 7
    %v1744 = vsub.s32 0, %v1743
    %v1745 = vrot.slane %v1714, %v1744
    %v1746 = vlaneseq
    %v1747 = vshrl.u32 %v1746, 7
    %v1748 = vsub.s32 1, %v1747
    %v1749 = vrot.slane %v1714, %v1748
    %1752 = vrot.lane.b32.xlu0 %v160, 63
    %v1753 = vpop.permute.xlu0 %1752
    %1754 = vrot.lane.b32.xlu0 %v161, 63
    %v1755 = vpop.permute.xlu0 %1754
    %1756 = vrot.lane.b32.xlu0 %v211, 63
    %v1757 = vpop.permute.xlu0 %1756
    %v1758 = vsel %vm1732, %v1753, %v1755
    %v1759 = vsel %vm1732, %v1755, %v1757
    %v1762 = vmul.f32 %v1745, %v1758
    %v1763 = vmul.f32 %v1749, %v1759
    %v1764 = vadd.f32 %v1544, %v1762
    %v1765 = vadd.f32 %v1545, %v1763
    %s1766 = scalar_lea.vmem [#allocation6], 54
    %v1767 = vld [vmem:[%s1766] ss:$8 sm:$0x3]
    %s1768 = scalar_lea.vmem [#allocation8], 54
    %v1769 = vld [vmem:[%s1768] ss:$8 sm:$0x3]
    %v1771 = vlaneseq
    %v1772 = vshrl.u32 %v1771, 7
    %v1773 = vsub.s32 0, %v1772
    %v1774 = vrot.slane %v1767, %v1773
    %v1775 = vlaneseq
    %v1776 = vshrl.u32 %v1775, 7
    %v1777 = vsub.s32 1, %v1776
    %v1778 = vrot.slane %v1767, %v1777
    %1781 = vrot.lane.b32.xlu0 %v123, 62
    %v1782 = vpop.permute.xlu0 %1781
    %1783 = vrot.lane.b32.xlu0 %v141, 62
    %v1784 = vpop.permute.xlu0 %1783
    %1785 = vrot.lane.b32.xlu0 %v124, 62
    %v1786 = vpop.permute.xlu0 %1785
    %vm1787 = vcmask 506880
    %v1788 = vsel %vm1787, %v1782, %v1784
    %v1789 = vsel %vm1787, %v1784, %v1786
    %v1792 = vmul.f32 %v1774, %v1788
    %v1793 = vmul.f32 %v1778, %v1789
    %v1794 = vadd.f32 %v1574, %v1792
    %v1795 = vadd.f32 %v1575, %v1793
    %v1797 = vlaneseq
    %v1798 = vshrl.u32 %v1797, 7
    %v1799 = vsub.s32 0, %v1798
    %v1800 = vrot.slane %v1769, %v1799
    %v1801 = vlaneseq
    %v1802 = vshrl.u32 %v1801, 7
    %v1803 = vsub.s32 1, %v1802
    %v1804 = vrot.slane %v1769, %v1803
    %1807 = vrot.lane.b32.xlu0 %v160, 62
    %v1808 = vpop.permute.xlu0 %1807
    %1809 = vrot.lane.b32.xlu0 %v161, 62
    %v1810 = vpop.permute.xlu0 %1809
    %1811 = vrot.lane.b32.xlu0 %v211, 62
    %v1812 = vpop.permute.xlu0 %1811
    %v1813 = vsel %vm1787, %v1808, %v1810
    %v1814 = vsel %vm1787, %v1810, %v1812
    %v1817 = vmul.f32 %v1800, %v1813
    %v1818 = vmul.f32 %v1804, %v1814
    %v1819 = vadd.f32 %v1599, %v1817
    %v1820 = vadd.f32 %v1600, %v1818
    %s1821 = scalar_lea.vmem [#allocation6], 55
    %v1822 = vld [vmem:[%s1821] ss:$8 sm:$0x3]
    %s1823 = scalar_lea.vmem [#allocation8], 55
    %v1824 = vld [vmem:[%s1823] ss:$8 sm:$0x3]
    %v1826 = vlaneseq
    %v1827 = vshrl.u32 %v1826, 7
    %v1828 = vsub.s32 0, %v1827
    %v1829 = vrot.slane %v1822, %v1828
    %v1830 = vlaneseq
    %v1831 = vshrl.u32 %v1830, 7
    %v1832 = vsub.s32 1, %v1831
    %v1833 = vrot.slane %v1822, %v1832
    %1836 = vrot.lane.b32.xlu0 %v123, 61
    %v1837 = vpop.permute.xlu0 %1836
    %1838 = vrot.lane.b32.xlu0 %v141, 61
    %v1839 = vpop.permute.xlu0 %1838
    %1840 = vrot.lane.b32.xlu0 %v124, 61
    %v1841 = vpop.permute.xlu0 %1840
    %vm1842 = vcmask 498688
    %v1843 = vsel %vm1842, %v1837, %v1839
    %v1844 = vsel %vm1842, %v1839, %v1841
    %v1847 = vmul.f32 %v1829, %v1843
    %v1848 = vmul.f32 %v1833, %v1844
    %v1849 = vadd.f32 %v1629, %v1847
    %v1850 = vadd.f32 %v1630, %v1848
    %v1852 = vlaneseq
    %v1853 = vshrl.u32 %v1852, 7
    %v1854 = vsub.s32 0, %v1853
    %v1855 = vrot.slane %v1824, %v1854
    %v1856 = vlaneseq
    %v1857 = vshrl.u32 %v1856, 7
    %v1858 = vsub.s32 1, %v1857
    %v1859 = vrot.slane %v1824, %v1858
    %1862 = vrot.lane.b32.xlu0 %v160, 61
    %v1863 = vpop.permute.xlu0 %1862
    %1864 = vrot.lane.b32.xlu0 %v161, 61
    %v1865 = vpop.permute.xlu0 %1864
    %1866 = vrot.lane.b32.xlu0 %v211, 61
    %v1867 = vpop.permute.xlu0 %1866
    %v1868 = vsel %vm1842, %v1863, %v1865
    %v1869 = vsel %vm1842, %v1865, %v1867
    %v1872 = vmul.f32 %v1855, %v1868
    %v1873 = vmul.f32 %v1859, %v1869
    %v1874 = vadd.f32 %v1654, %v1872
    %v1875 = vadd.f32 %v1655, %v1873
    %s1876 = scalar_lea.vmem [#allocation6], 64
    %v1877 = vld [vmem:[%s1876] ss:$8 sm:$0x3]
    %s1878 = scalar_lea.vmem [#allocation8], 64
    %v1879 = vld [vmem:[%s1878] ss:$8 sm:$0x3]
    %v1881 = vlaneseq
    %v1882 = vshrl.u32 %v1881, 7
    %v1883 = vsub.s32 0, %v1882
    %v1884 = vrot.slane %v1877, %v1883
    %v1885 = vlaneseq
    %v1886 = vshrl.u32 %v1885, 7
    %v1887 = vsub.s32 1, %v1886
    %v1888 = vrot.slane %v1877, %v1887
    %1891 = vrot.lane.b32.xlu0 %v123, 60
    %v1892 = vpop.permute.xlu0 %1891
    %1893 = vrot.lane.b32.xlu0 %v141, 60
    %v1894 = vpop.permute.xlu0 %1893
    %1895 = vrot.lane.b32.xlu0 %v124, 60
    %v1896 = vpop.permute.xlu0 %1895
    %vm1897 = vcmask 490496
    %v1898 = vsel %vm1897, %v1892, %v1894
    %v1899 = vsel %vm1897, %v1894, %v1896
    %v1902 = vmul.f32 %v1884, %v1898
    %v1903 = vmul.f32 %v1888, %v1899
    %v1904 = vadd.f32 %v1684, %v1902
    %v1905 = vadd.f32 %v1685, %v1903
    %v1907 = vlaneseq
    %v1908 = vshrl.u32 %v1907, 7
    %v1909 = vsub.s32 0, %v1908
    %v1910 = vrot.slane %v1879, %v1909
    %v1911 = vlaneseq
    %v1912 = vshrl.u32 %v1911, 7
    %v1913 = vsub.s32 1, %v1912
    %v1914 = vrot.slane %v1879, %v1913
    %1917 = vrot.lane.b32.xlu0 %v160, 60
    %v1918 = vpop.permute.xlu0 %1917
    %1919 = vrot.lane.b32.xlu0 %v161, 60
    %v1920 = vpop.permute.xlu0 %1919
    %1921 = vrot.lane.b32.xlu0 %v211, 60
    %v1922 = vpop.permute.xlu0 %1921
    %v1923 = vsel %vm1897, %v1918, %v1920
    %v1924 = vsel %vm1897, %v1920, %v1922
    %v1927 = vmul.f32 %v1910, %v1923
    %v1928 = vmul.f32 %v1914, %v1924
    %v1929 = vadd.f32 %v1709, %v1927
    %v1930 = vadd.f32 %v1710, %v1928
    %s1931 = scalar_lea.vmem [#allocation6], 65
    %v1932 = vld [vmem:[%s1931] ss:$8 sm:$0x3]
    %s1933 = scalar_lea.vmem [#allocation8], 65
    %v1934 = vld [vmem:[%s1933] ss:$8 sm:$0x3]
    %v1936 = vlaneseq
    %v1937 = vshrl.u32 %v1936, 7
    %v1938 = vsub.s32 0, %v1937
    %v1939 = vrot.slane %v1932, %v1938
    %v1940 = vlaneseq
    %v1941 = vshrl.u32 %v1940, 7
    %v1942 = vsub.s32 1, %v1941
    %v1943 = vrot.slane %v1932, %v1942
    %1946 = vrot.lane.b32.xlu0 %v123, 59
    %v1947 = vpop.permute.xlu0 %1946
    %1948 = vrot.lane.b32.xlu0 %v141, 59
    %v1949 = vpop.permute.xlu0 %1948
    %1950 = vrot.lane.b32.xlu0 %v124, 59
    %v1951 = vpop.permute.xlu0 %1950
    %vm1952 = vcmask 482304
    %v1953 = vsel %vm1952, %v1947, %v1949
    %v1954 = vsel %vm1952, %v1949, %v1951
    %v1957 = vmul.f32 %v1939, %v1953
    %v1958 = vmul.f32 %v1943, %v1954
    %v1959 = vadd.f32 %v1739, %v1957
    %v1960 = vadd.f32 %v1740, %v1958
    %v1962 = vlaneseq
    %v1963 = vshrl.u32 %v1962, 7
    %v1964 = vsub.s32 0, %v1963
    %v1965 = vrot.slane %v1934, %v1964
    %v1966 = vlaneseq
    %v1967 = vshrl.u32 %v1966, 7
    %v1968 = vsub.s32 1, %v1967
    %v1969 = vrot.slane %v1934, %v1968
    %1972 = vrot.lane.b32.xlu0 %v160, 59
    %v1973 = vpop.permute.xlu0 %1972
    %1974 = vrot.lane.b32.xlu0 %v161, 59
    %v1975 = vpop.permute.xlu0 %1974
    %1976 = vrot.lane.b32.xlu0 %v211, 59
    %v1977 = vpop.permute.xlu0 %1976
    %v1978 = vsel %vm1952, %v1973, %v1975
    %v1979 = vsel %vm1952, %v1975, %v1977
    %v1982 = vmul.f32 %v1965, %v1978
    %v1983 = vmul.f32 %v1969, %v1979
    %v1984 = vadd.f32 %v1764, %v1982
    %v1985 = vadd.f32 %v1765, %v1983
    %s1986 = scalar_lea.vmem [#allocation6], 66
    %v1987 = vld [vmem:[%s1986] ss:$8 sm:$0x3]
    %s1988 = scalar_lea.vmem [#allocation8], 66
    %v1989 = vld [vmem:[%s1988] ss:$8 sm:$0x3]
    %v1991 = vlaneseq
    %v1992 = vshrl.u32 %v1991, 7
    %v1993 = vsub.s32 0, %v1992
    %v1994 = vrot.slane %v1987, %v1993
    %v1995 = vlaneseq
    %v1996 = vshrl.u32 %v1995, 7
    %v1997 = vsub.s32 1, %v1996
    %v1998 = vrot.slane %v1987, %v1997
    %2001 = vrot.lane.b32.xlu0 %v123, 58
    %v2002 = vpop.permute.xlu0 %2001
    %2003 = vrot.lane.b32.xlu0 %v141, 58
    %v2004 = vpop.permute.xlu0 %2003
    %2005 = vrot.lane.b32.xlu0 %v124, 58
    %v2006 = vpop.permute.xlu0 %2005
    %vm2007 = vcmask 474112
    %v2008 = vsel %vm2007, %v2002, %v2004
    %v2009 = vsel %vm2007, %v2004, %v2006
    %v2012 = vmul.f32 %v1994, %v2008
    %v2013 = vmul.f32 %v1998, %v2009
    %v2014 = vadd.f32 %v1794, %v2012
    %v2015 = vadd.f32 %v1795, %v2013
    %v2017 = vlaneseq
    %v2018 = vshrl.u32 %v2017, 7
    %v2019 = vsub.s32 0, %v2018
    %v2020 = vrot.slane %v1989, %v2019
    %v2021 = vlaneseq
    %v2022 = vshrl.u32 %v2021, 7
    %v2023 = vsub.s32 1, %v2022
    %v2024 = vrot.slane %v1989, %v2023
    %2027 = vrot.lane.b32.xlu0 %v160, 58
    %v2028 = vpop.permute.xlu0 %2027
    %2029 = vrot.lane.b32.xlu0 %v161, 58
    %v2030 = vpop.permute.xlu0 %2029
    %2031 = vrot.lane.b32.xlu0 %v211, 58
    %v2032 = vpop.permute.xlu0 %2031
    %v2033 = vsel %vm2007, %v2028, %v2030
    %v2034 = vsel %vm2007, %v2030, %v2032
    %v2037 = vmul.f32 %v2020, %v2033
    %v2038 = vmul.f32 %v2024, %v2034
    %v2039 = vadd.f32 %v1819, %v2037
    %v2040 = vadd.f32 %v1820, %v2038
    %s2041 = scalar_lea.vmem [#allocation6], 67
    %v2042 = vld [vmem:[%s2041] ss:$8 sm:$0x3]
    %s2043 = scalar_lea.vmem [#allocation8], 67
    %v2044 = vld [vmem:[%s2043] ss:$8 sm:$0x3]
    %v2046 = vlaneseq
    %v2047 = vshrl.u32 %v2046, 7
    %v2048 = vsub.s32 0, %v2047
    %v2049 = vrot.slane %v2042, %v2048
    %v2050 = vlaneseq
    %v2051 = vshrl.u32 %v2050, 7
    %v2052 = vsub.s32 1, %v2051
    %v2053 = vrot.slane %v2042, %v2052
    %2056 = vrot.lane.b32.xlu0 %v123, 48
    %v2057 = vpop.permute.xlu0 %2056
    %2058 = vrot.lane.b32.xlu0 %v141, 48
    %v2059 = vpop.permute.xlu0 %2058
    %2060 = vrot.lane.b32.xlu0 %v124, 48
    %v2061 = vpop.permute.xlu0 %2060
    %vm2062 = vcmask 392192
    %v2063 = vsel %vm2062, %v2057, %v2059
    %v2064 = vsel %vm2062, %v2059, %v2061
    %v2067 = vmul.f32 %v2049, %v2063
    %v2068 = vmul.f32 %v2053, %v2064
    %v2069 = vadd.f32 %v1849, %v2067
    %v2070 = vadd.f32 %v1850, %v2068
    %v2072 = vlaneseq
    %v2073 = vshrl.u32 %v2072, 7
    %v2074 = vsub.s32 0, %v2073
    %v2075 = vrot.slane %v2044, %v2074
    %v2076 = vlaneseq
    %v2077 = vshrl.u32 %v2076, 7
    %v2078 = vsub.s32 1, %v2077
    %v2079 = vrot.slane %v2044, %v2078
    %2082 = vrot.lane.b32.xlu0 %v160, 48
    %v2083 = vpop.permute.xlu0 %2082
    %2084 = vrot.lane.b32.xlu0 %v161, 48
    %v2085 = vpop.permute.xlu0 %2084
    %2086 = vrot.lane.b32.xlu0 %v211, 48
    %v2087 = vpop.permute.xlu0 %2086
    %v2088 = vsel %vm2062, %v2083, %v2085
    %v2089 = vsel %vm2062, %v2085, %v2087
    %v2092 = vmul.f32 %v2075, %v2088
    %v2093 = vmul.f32 %v2079, %v2089
    %v2094 = vadd.f32 %v1874, %v2092
    %v2095 = vadd.f32 %v1875, %v2093
    %s2096 = scalar_lea.vmem [#allocation6], 68
    %v2097 = vld [vmem:[%s2096] ss:$8 sm:$0x3]
    %s2098 = scalar_lea.vmem [#allocation8], 68
    %v2099 = vld [vmem:[%s2098] ss:$8 sm:$0x3]
    %v2101 = vlaneseq
    %v2102 = vshrl.u32 %v2101, 7
    %v2103 = vsub.s32 0, %v2102
    %v2104 = vrot.slane %v2097, %v2103
    %v2105 = vlaneseq
    %v2106 = vshrl.u32 %v2105, 7
    %v2107 = vsub.s32 1, %v2106
    %v2108 = vrot.slane %v2097, %v2107
    %2111 = vrot.lane.b32.xlu0 %v123, 47
    %v2112 = vpop.permute.xlu0 %2111
    %2113 = vrot.lane.b32.xlu0 %v141, 47
    %v2114 = vpop.permute.xlu0 %2113
    %2115 = vrot.lane.b32.xlu0 %v124, 47
    %v2116 = vpop.permute.xlu0 %2115
    %vm2117 = vcmask 384000
    %v2118 = vsel %vm2117, %v2112, %v2114
    %v2119 = vsel %vm2117, %v2114, %v2116
    %v2122 = vmul.f32 %v2104, %v2118
    %v2123 = vmul.f32 %v2108, %v2119
    %v2124 = vadd.f32 %v1904, %v2122
    %v2125 = vadd.f32 %v1905, %v2123
    %v2127 = vlaneseq
    %v2128 = vshrl.u32 %v2127, 7
    %v2129 = vsub.s32 0, %v2128
    %v2130 = vrot.slane %v2099, %v2129
    %v2131 = vlaneseq
    %v2132 = vshrl.u32 %v2131, 7
    %v2133 = vsub.s32 1, %v2132
    %v2134 = vrot.slane %v2099, %v2133
    %2137 = vrot.lane.b32.xlu0 %v160, 47
    %v2138 = vpop.permute.xlu0 %2137
    %2139 = vrot.lane.b32.xlu0 %v161, 47
    %v2140 = vpop.permute.xlu0 %2139
    %2141 = vrot.lane.b32.xlu0 %v211, 47
    %v2142 = vpop.permute.xlu0 %2141
    %v2143 = vsel %vm2117, %v2138, %v2140
    %v2144 = vsel %vm2117, %v2140, %v2142
    %v2147 = vmul.f32 %v2130, %v2143
    %v2148 = vmul.f32 %v2134, %v2144
    %v2149 = vadd.f32 %v1929, %v2147
    %v2150 = vadd.f32 %v1930, %v2148
    %s2151 = scalar_lea.vmem [#allocation6], 69
    %v2152 = vld [vmem:[%s2151] ss:$8 sm:$0x3]
    %s2153 = scalar_lea.vmem [#allocation8], 69
    %v2154 = vld [vmem:[%s2153] ss:$8 sm:$0x3]
    %v2156 = vlaneseq
    %v2157 = vshrl.u32 %v2156, 7
    %v2158 = vsub.s32 0, %v2157
    %v2159 = vrot.slane %v2152, %v2158
    %v2160 = vlaneseq
    %v2161 = vshrl.u32 %v2160, 7
    %v2162 = vsub.s32 1, %v2161
    %v2163 = vrot.slane %v2152, %v2162
    %2166 = vrot.lane.b32.xlu0 %v123, 46
    %v2167 = vpop.permute.xlu0 %2166
    %2168 = vrot.lane.b32.xlu0 %v141, 46
    %v2169 = vpop.permute.xlu0 %2168
    %2170 = vrot.lane.b32.xlu0 %v124, 46
    %v2171 = vpop.permute.xlu0 %2170
    %vm2172 = vcmask 375808
    %v2173 = vsel %vm2172, %v2167, %v2169
    %v2174 = vsel %vm2172, %v2169, %v2171
    %v2177 = vmul.f32 %v2159, %v2173
    %v2178 = vmul.f32 %v2163, %v2174
    %v2179 = vadd.f32 %v1959, %v2177
    %v2180 = vadd.f32 %v1960, %v2178
    %v2182 = vlaneseq
    %v2183 = vshrl.u32 %v2182, 7
    %v2184 = vsub.s32 0, %v2183
    %v2185 = vrot.slane %v2154, %v2184
    %v2186 = vlaneseq
    %v2187 = vshrl.u32 %v2186, 7
    %v2188 = vsub.s32 1, %v2187
    %v2189 = vrot.slane %v2154, %v2188
    %2192 = vrot.lane.b32.xlu0 %v160, 46
    %v2193 = vpop.permute.xlu0 %2192
    %2194 = vrot.lane.b32.xlu0 %v161, 46
    %v2195 = vpop.permute.xlu0 %2194
    %2196 = vrot.lane.b32.xlu0 %v211, 46
    %v2197 = vpop.permute.xlu0 %2196
    %v2198 = vsel %vm2172, %v2193, %v2195
    %v2199 = vsel %vm2172, %v2195, %v2197
    %v2202 = vmul.f32 %v2185, %v2198
    %v2203 = vmul.f32 %v2189, %v2199
    %v2204 = vadd.f32 %v1984, %v2202
    %v2205 = vadd.f32 %v1985, %v2203
    %s2206 = scalar_lea.vmem [#allocation6], 70
    %v2207 = vld [vmem:[%s2206] ss:$8 sm:$0x3]
    %s2208 = scalar_lea.vmem [#allocation8], 70
    %v2209 = vld [vmem:[%s2208] ss:$8 sm:$0x3]
    %v2211 = vlaneseq
    %v2212 = vshrl.u32 %v2211, 7
    %v2213 = vsub.s32 0, %v2212
    %v2214 = vrot.slane %v2207, %v2213
    %v2215 = vlaneseq
    %v2216 = vshrl.u32 %v2215, 7
    %v2217 = vsub.s32 1, %v2216
    %v2218 = vrot.slane %v2207, %v2217
    %2221 = vrot.lane.b32.xlu0 %v123, 45
    %v2222 = vpop.permute.xlu0 %2221
    %2223 = vrot.lane.b32.xlu0 %v141, 45
    %v2224 = vpop.permute.xlu0 %2223
    %2225 = vrot.lane.b32.xlu0 %v124, 45
    %v2226 = vpop.permute.xlu0 %2225
    %vm2227 = vcmask 367616
    %v2228 = vsel %vm2227, %v2222, %v2224
    %v2229 = vsel %vm2227, %v2224, %v2226
    %v2232 = vmul.f32 %v2214, %v2228
    %v2233 = vmul.f32 %v2218, %v2229
    %v2234 = vadd.f32 %v2014, %v2232
    %v2235 = vadd.f32 %v2015, %v2233
    %v2237 = vlaneseq
    %v2238 = vshrl.u32 %v2237, 7
    %v2239 = vsub.s32 0, %v2238
    %v2240 = vrot.slane %v2209, %v2239
    %v2241 = vlaneseq
    %v2242 = vshrl.u32 %v2241, 7
    %v2243 = vsub.s32 1, %v2242
    %v2244 = vrot.slane %v2209, %v2243
    %2247 = vrot.lane.b32.xlu0 %v160, 45
    %v2248 = vpop.permute.xlu0 %2247
    %2249 = vrot.lane.b32.xlu0 %v161, 45
    %v2250 = vpop.permute.xlu0 %2249
    %2251 = vrot.lane.b32.xlu0 %v211, 45
    %v2252 = vpop.permute.xlu0 %2251
    %v2253 = vsel %vm2227, %v2248, %v2250
    %v2254 = vsel %vm2227, %v2250, %v2252
    %v2257 = vmul.f32 %v2240, %v2253
    %v2258 = vmul.f32 %v2244, %v2254
    %v2259 = vadd.f32 %v2039, %v2257
    %v2260 = vadd.f32 %v2040, %v2258
    %s2261 = scalar_lea.vmem [#allocation6], 71
    %v2262 = vld [vmem:[%s2261] ss:$8 sm:$0x3]
    %s2263 = scalar_lea.vmem [#allocation8], 71
    %v2264 = vld [vmem:[%s2263] ss:$8 sm:$0x3]
    %v2266 = vlaneseq
    %v2267 = vshrl.u32 %v2266, 7
    %v2268 = vsub.s32 0, %v2267
    %v2269 = vrot.slane %v2262, %v2268
    %v2270 = vlaneseq
    %v2271 = vshrl.u32 %v2270, 7
    %v2272 = vsub.s32 1, %v2271
    %v2273 = vrot.slane %v2262, %v2272
    %2276 = vrot.lane.b32.xlu0 %v123, 44
    %v2277 = vpop.permute.xlu0 %2276
    %2278 = vrot.lane.b32.xlu0 %v141, 44
    %v2279 = vpop.permute.xlu0 %2278
    %2280 = vrot.lane.b32.xlu0 %v124, 44
    %v2281 = vpop.permute.xlu0 %2280
    %vm2282 = vcmask 359424
    %v2283 = vsel %vm2282, %v2277, %v2279
    %v2284 = vsel %vm2282, %v2279, %v2281
    %v2287 = vmul.f32 %v2269, %v2283
    %v2288 = vmul.f32 %v2273, %v2284
    %v2289 = vadd.f32 %v2069, %v2287
    %v2290 = vadd.f32 %v2070, %v2288
    %v2292 = vlaneseq
    %v2293 = vshrl.u32 %v2292, 7
    %v2294 = vsub.s32 0, %v2293
    %v2295 = vrot.slane %v2264, %v2294
    %v2296 = vlaneseq
    %v2297 = vshrl.u32 %v2296, 7
    %v2298 = vsub.s32 1, %v2297
    %v2299 = vrot.slane %v2264, %v2298
    %2302 = vrot.lane.b32.xlu0 %v160, 44
    %v2303 = vpop.permute.xlu0 %2302
    %2304 = vrot.lane.b32.xlu0 %v161, 44
    %v2305 = vpop.permute.xlu0 %2304
    %2306 = vrot.lane.b32.xlu0 %v211, 44
    %v2307 = vpop.permute.xlu0 %2306
    %v2308 = vsel %vm2282, %v2303, %v2305
    %v2309 = vsel %vm2282, %v2305, %v2307
    %v2312 = vmul.f32 %v2295, %v2308
    %v2313 = vmul.f32 %v2299, %v2309
    %v2314 = vadd.f32 %v2094, %v2312
    %v2315 = vadd.f32 %v2095, %v2313
    %s2316 = scalar_lea.vmem [#allocation6], 80
    %v2317 = vld [vmem:[%s2316] ss:$8 sm:$0x3]
    %s2318 = scalar_lea.vmem [#allocation8], 80
    %v2319 = vld [vmem:[%s2318] ss:$8 sm:$0x3]
    %v2321 = vlaneseq
    %v2322 = vshrl.u32 %v2321, 7
    %v2323 = vsub.s32 0, %v2322
    %v2324 = vrot.slane %v2317, %v2323
    %v2325 = vlaneseq
    %v2326 = vshrl.u32 %v2325, 7
    %v2327 = vsub.s32 1, %v2326
    %v2328 = vrot.slane %v2317, %v2327
    %2331 = vrot.lane.b32.xlu0 %v123, 43
    %v2332 = vpop.permute.xlu0 %2331
    %2333 = vrot.lane.b32.xlu0 %v141, 43
    %v2334 = vpop.permute.xlu0 %2333
    %2335 = vrot.lane.b32.xlu0 %v124, 43
    %v2336 = vpop.permute.xlu0 %2335
    %vm2337 = vcmask 351232
    %v2338 = vsel %vm2337, %v2332, %v2334
    %v2339 = vsel %vm2337, %v2334, %v2336
    %v2342 = vmul.f32 %v2324, %v2338
    %v2343 = vmul.f32 %v2328, %v2339
    %v2344 = vadd.f32 %v2124, %v2342
    %v2345 = vadd.f32 %v2125, %v2343
    %v2347 = vlaneseq
    %v2348 = vshrl.u32 %v2347, 7
    %v2349 = vsub.s32 0, %v2348
    %v2350 = vrot.slane %v2319, %v2349
    %v2351 = vlaneseq
    %v2352 = vshrl.u32 %v2351, 7
    %v2353 = vsub.s32 1, %v2352
    %v2354 = vrot.slane %v2319, %v2353
    %2357 = vrot.lane.b32.xlu0 %v160, 43
    %v2358 = vpop.permute.xlu0 %2357
    %2359 = vrot.lane.b32.xlu0 %v161, 43
    %v2360 = vpop.permute.xlu0 %2359
    %2361 = vrot.lane.b32.xlu0 %v211, 43
    %v2362 = vpop.permute.xlu0 %2361
    %v2363 = vsel %vm2337, %v2358, %v2360
    %v2364 = vsel %vm2337, %v2360, %v2362
    %v2367 = vmul.f32 %v2350, %v2363
    %v2368 = vmul.f32 %v2354, %v2364
    %v2369 = vadd.f32 %v2149, %v2367
    %v2370 = vadd.f32 %v2150, %v2368
    %s2371 = scalar_lea.vmem [#allocation6], 81
    %v2372 = vld [vmem:[%s2371] ss:$8 sm:$0x3]
    %s2373 = scalar_lea.vmem [#allocation8], 81
    %v2374 = vld [vmem:[%s2373] ss:$8 sm:$0x3]
    %v2376 = vlaneseq
    %v2377 = vshrl.u32 %v2376, 7
    %v2378 = vsub.s32 0, %v2377
    %v2379 = vrot.slane %v2372, %v2378
    %v2380 = vlaneseq
    %v2381 = vshrl.u32 %v2380, 7
    %v2382 = vsub.s32 1, %v2381
    %v2383 = vrot.slane %v2372, %v2382
    %2386 = vrot.lane.b32.xlu0 %v123, 42
    %v2387 = vpop.permute.xlu0 %2386
    %2388 = vrot.lane.b32.xlu0 %v141, 42
    %v2389 = vpop.permute.xlu0 %2388
    %2390 = vrot.lane.b32.xlu0 %v124, 42
    %v2391 = vpop.permute.xlu0 %2390
    %vm2392 = vcmask 343040
    %v2393 = vsel %vm2392, %v2387, %v2389
    %v2394 = vsel %vm2392, %v2389, %v2391
    %v2397 = vmul.f32 %v2379, %v2393
    %v2398 = vmul.f32 %v2383, %v2394
    %v2399 = vadd.f32 %v2179, %v2397
    %v2400 = vadd.f32 %v2180, %v2398
    %v2402 = vlaneseq
    %v2403 = vshrl.u32 %v2402, 7
    %v2404 = vsub.s32 0, %v2403
    %v2405 = vrot.slane %v2374, %v2404
    %v2406 = vlaneseq
    %v2407 = vshrl.u32 %v2406, 7
    %v2408 = vsub.s32 1, %v2407
    %v2409 = vrot.slane %v2374, %v2408
    %2412 = vrot.lane.b32.xlu0 %v160, 42
    %v2413 = vpop.permute.xlu0 %2412
    %2414 = vrot.lane.b32.xlu0 %v161, 42
    %v2415 = vpop.permute.xlu0 %2414
    %2416 = vrot.lane.b32.xlu0 %v211, 42
    %v2417 = vpop.permute.xlu0 %2416
    %v2418 = vsel %vm2392, %v2413, %v2415
    %v2419 = vsel %vm2392, %v2415, %v2417
    %v2422 = vmul.f32 %v2405, %v2418
    %v2423 = vmul.f32 %v2409, %v2419
    %v2424 = vadd.f32 %v2204, %v2422
    %v2425 = vadd.f32 %v2205, %v2423
    %s2426 = scalar_lea.vmem [#allocation6], 82
    %v2427 = vld [vmem:[%s2426] ss:$8 sm:$0x3]
    %s2428 = scalar_lea.vmem [#allocation8], 82
    %v2429 = vld [vmem:[%s2428] ss:$8 sm:$0x3]
    %v2431 = vlaneseq
    %v2432 = vshrl.u32 %v2431, 7
    %v2433 = vsub.s32 0, %v2432
    %v2434 = vrot.slane %v2427, %v2433
    %v2435 = vlaneseq
    %v2436 = vshrl.u32 %v2435, 7
    %v2437 = vsub.s32 1, %v2436
    %v2438 = vrot.slane %v2427, %v2437
    %2441 = vrot.lane.b32.xlu0 %v123, 32
    %v2442 = vpop.permute.xlu0 %2441
    %2443 = vrot.lane.b32.xlu0 %v141, 32
    %v2444 = vpop.permute.xlu0 %2443
    %2445 = vrot.lane.b32.xlu0 %v124, 32
    %v2446 = vpop.permute.xlu0 %2445
    %vm2447 = vcmask 261120
    %v2448 = vsel %vm2447, %v2442, %v2444
    %v2449 = vsel %vm2447, %v2444, %v2446
    %v2452 = vmul.f32 %v2434, %v2448
    %v2453 = vmul.f32 %v2438, %v2449
    %v2454 = vadd.f32 %v2234, %v2452
    %v2455 = vadd.f32 %v2235, %v2453
    %v2457 = vlaneseq
    %v2458 = vshrl.u32 %v2457, 7
    %v2459 = vsub.s32 0, %v2458
    %v2460 = vrot.slane %v2429, %v2459
    %v2461 = vlaneseq
    %v2462 = vshrl.u32 %v2461, 7
    %v2463 = vsub.s32 1, %v2462
    %v2464 = vrot.slane %v2429, %v2463
    %2467 = vrot.lane.b32.xlu0 %v160, 32
    %v2468 = vpop.permute.xlu0 %2467
    %2469 = vrot.lane.b32.xlu0 %v161, 32
    %v2470 = vpop.permute.xlu0 %2469
    %2471 = vrot.lane.b32.xlu0 %v211, 32
    %v2472 = vpop.permute.xlu0 %2471
    %v2473 = vsel %vm2447, %v2468, %v2470
    %v2474 = vsel %vm2447, %v2470, %v2472
    %v2477 = vmul.f32 %v2460, %v2473
    %v2478 = vmul.f32 %v2464, %v2474
    %v2479 = vadd.f32 %v2259, %v2477
    %v2480 = vadd.f32 %v2260, %v2478
    %s2481 = scalar_lea.vmem [#allocation6], 83
    %v2482 = vld [vmem:[%s2481] ss:$8 sm:$0x3]
    %s2483 = scalar_lea.vmem [#allocation8], 83
    %v2484 = vld [vmem:[%s2483] ss:$8 sm:$0x3]
    %v2486 = vlaneseq
    %v2487 = vshrl.u32 %v2486, 7
    %v2488 = vsub.s32 0, %v2487
    %v2489 = vrot.slane %v2482, %v2488
    %v2490 = vlaneseq
    %v2491 = vshrl.u32 %v2490, 7
    %v2492 = vsub.s32 1, %v2491
    %v2493 = vrot.slane %v2482, %v2492
    %2496 = vrot.lane.b32.xlu0 %v123, 31
    %v2497 = vpop.permute.xlu0 %2496
    %2498 = vrot.lane.b32.xlu0 %v141, 31
    %v2499 = vpop.permute.xlu0 %2498
    %2500 = vrot.lane.b32.xlu0 %v124, 31
    %v2501 = vpop.permute.xlu0 %2500
    %vm2502 = vcmask 252928
    %v2503 = vsel %vm2502, %v2497, %v2499
    %v2504 = vsel %vm2502, %v2499, %v2501
    %v2507 = vmul.f32 %v2489, %v2503
    %v2508 = vmul.f32 %v2493, %v2504
    %v2509 = vadd.f32 %v2289, %v2507
    %v2510 = vadd.f32 %v2290, %v2508
    %v2512 = vlaneseq
    %v2513 = vshrl.u32 %v2512, 7
    %v2514 = vsub.s32 0, %v2513
    %v2515 = vrot.slane %v2484, %v2514
    %v2516 = vlaneseq
    %v2517 = vshrl.u32 %v2516, 7
    %v2518 = vsub.s32 1, %v2517
    %v2519 = vrot.slane %v2484, %v2518
    %2522 = vrot.lane.b32.xlu0 %v160, 31
    %v2523 = vpop.permute.xlu0 %2522
    %2524 = vrot.lane.b32.xlu0 %v161, 31
    %v2525 = vpop.permute.xlu0 %2524
    %2526 = vrot.lane.b32.xlu0 %v211, 31
    %v2527 = vpop.permute.xlu0 %2526
    %v2528 = vsel %vm2502, %v2523, %v2525
    %v2529 = vsel %vm2502, %v2525, %v2527
    %v2532 = vmul.f32 %v2515, %v2528
    %v2533 = vmul.f32 %v2519, %v2529
    %v2534 = vadd.f32 %v2314, %v2532
    %v2535 = vadd.f32 %v2315, %v2533
    %s2536 = scalar_lea.vmem [#allocation6], 84
    %v2537 = vld [vmem:[%s2536] ss:$8 sm:$0x3]
    %s2538 = scalar_lea.vmem [#allocation8], 84
    %v2539 = vld [vmem:[%s2538] ss:$8 sm:$0x3]
    %v2541 = vlaneseq
    %v2542 = vshrl.u32 %v2541, 7
    %v2543 = vsub.s32 0, %v2542
    %v2544 = vrot.slane %v2537, %v2543
    %v2545 = vlaneseq
    %v2546 = vshrl.u32 %v2545, 7
    %v2547 = vsub.s32 1, %v2546
    %v2548 = vrot.slane %v2537, %v2547
    %2551 = vrot.lane.b32.xlu0 %v123, 30
    %v2552 = vpop.permute.xlu0 %2551
    %2553 = vrot.lane.b32.xlu0 %v141, 30
    %v2554 = vpop.permute.xlu0 %2553
    %2555 = vrot.lane.b32.xlu0 %v124, 30
    %v2556 = vpop.permute.xlu0 %2555
    %vm2557 = vcmask 244736
    %v2558 = vsel %vm2557, %v2552, %v2554
    %v2559 = vsel %vm2557, %v2554, %v2556
    %v2562 = vmul.f32 %v2544, %v2558
    %v2563 = vmul.f32 %v2548, %v2559
    %v2564 = vadd.f32 %v2344, %v2562
    %v2565 = vadd.f32 %v2345, %v2563
    %v2567 = vlaneseq
    %v2568 = vshrl.u32 %v2567, 7
    %v2569 = vsub.s32 0, %v2568
    %v2570 = vrot.slane %v2539, %v2569
    %v2571 = vlaneseq
    %v2572 = vshrl.u32 %v2571, 7
    %v2573 = vsub.s32 1, %v2572
    %v2574 = vrot.slane %v2539, %v2573
    %2577 = vrot.lane.b32.xlu0 %v160, 30
    %v2578 = vpop.permute.xlu0 %2577
    %2579 = vrot.lane.b32.xlu0 %v161, 30
    %v2580 = vpop.permute.xlu0 %2579
    %2581 = vrot.lane.b32.xlu0 %v211, 30
    %v2582 = vpop.permute.xlu0 %2581
    %v2583 = vsel %vm2557, %v2578, %v2580
    %v2584 = vsel %vm2557, %v2580, %v2582
    %v2587 = vmul.f32 %v2570, %v2583
    %v2588 = vmul.f32 %v2574, %v2584
    %v2589 = vadd.f32 %v2369, %v2587
    %v2590 = vadd.f32 %v2370, %v2588
    %s2591 = scalar_lea.vmem [#allocation6], 85
    %v2592 = vld [vmem:[%s2591] ss:$8 sm:$0x3]
    %s2593 = scalar_lea.vmem [#allocation8], 85
    %v2594 = vld [vmem:[%s2593] ss:$8 sm:$0x3]
    %v2596 = vlaneseq
    %v2597 = vshrl.u32 %v2596, 7
    %v2598 = vsub.s32 0, %v2597
    %v2599 = vrot.slane %v2592, %v2598
    %v2600 = vlaneseq
    %v2601 = vshrl.u32 %v2600, 7
    %v2602 = vsub.s32 1, %v2601
    %v2603 = vrot.slane %v2592, %v2602
    %2606 = vrot.lane.b32.xlu0 %v123, 29
    %v2607 = vpop.permute.xlu0 %2606
    %2608 = vrot.lane.b32.xlu0 %v141, 29
    %v2609 = vpop.permute.xlu0 %2608
    %2610 = vrot.lane.b32.xlu0 %v124, 29
    %v2611 = vpop.permute.xlu0 %2610
    %vm2612 = vcmask 236544
    %v2613 = vsel %vm2612, %v2607, %v2609
    %v2614 = vsel %vm2612, %v2609, %v2611
    %v2617 = vmul.f32 %v2599, %v2613
    %v2618 = vmul.f32 %v2603, %v2614
    %v2619 = vadd.f32 %v2399, %v2617
    %v2620 = vadd.f32 %v2400, %v2618
    %v2622 = vlaneseq
    %v2623 = vshrl.u32 %v2622, 7
    %v2624 = vsub.s32 0, %v2623
    %v2625 = vrot.slane %v2594, %v2624
    %v2626 = vlaneseq
    %v2627 = vshrl.u32 %v2626, 7
    %v2628 = vsub.s32 1, %v2627
    %v2629 = vrot.slane %v2594, %v2628
    %2632 = vrot.lane.b32.xlu0 %v160, 29
    %v2633 = vpop.permute.xlu0 %2632
    %2634 = vrot.lane.b32.xlu0 %v161, 29
    %v2635 = vpop.permute.xlu0 %2634
    %2636 = vrot.lane.b32.xlu0 %v211, 29
    %v2637 = vpop.permute.xlu0 %2636
    %v2638 = vsel %vm2612, %v2633, %v2635
    %v2639 = vsel %vm2612, %v2635, %v2637
    %v2642 = vmul.f32 %v2625, %v2638
    %v2643 = vmul.f32 %v2629, %v2639
    %v2644 = vadd.f32 %v2424, %v2642
    %v2645 = vadd.f32 %v2425, %v2643
    %s2646 = scalar_lea.vmem [#allocation6], 86
    %v2647 = vld [vmem:[%s2646] ss:$8 sm:$0x3]
    %s2648 = scalar_lea.vmem [#allocation8], 86
    %v2649 = vld [vmem:[%s2648] ss:$8 sm:$0x3]
    %v2651 = vlaneseq
    %v2652 = vshrl.u32 %v2651, 7
    %v2653 = vsub.s32 0, %v2652
    %v2654 = vrot.slane %v2647, %v2653
    %v2655 = vlaneseq
    %v2656 = vshrl.u32 %v2655, 7
    %v2657 = vsub.s32 1, %v2656
    %v2658 = vrot.slane %v2647, %v2657
    %2661 = vrot.lane.b32.xlu0 %v123, 28
    %v2662 = vpop.permute.xlu0 %2661
    %2663 = vrot.lane.b32.xlu0 %v141, 28
    %v2664 = vpop.permute.xlu0 %2663
    %2665 = vrot.lane.b32.xlu0 %v124, 28
    %v2666 = vpop.permute.xlu0 %2665
    %vm2667 = vcmask 228352
    %v2668 = vsel %vm2667, %v2662, %v2664
    %v2669 = vsel %vm2667, %v2664, %v2666
    %v2672 = vmul.f32 %v2654, %v2668
    %v2673 = vmul.f32 %v2658, %v2669
    %v2674 = vadd.f32 %v2454, %v2672
    %v2675 = vadd.f32 %v2455, %v2673
    %v2677 = vlaneseq
    %v2678 = vshrl.u32 %v2677, 7
    %v2679 = vsub.s32 0, %v2678
    %v2680 = vrot.slane %v2649, %v2679
    %v2681 = vlaneseq
    %v2682 = vshrl.u32 %v2681, 7
    %v2683 = vsub.s32 1, %v2682
    %v2684 = vrot.slane %v2649, %v2683
    %2687 = vrot.lane.b32.xlu0 %v160, 28
    %v2688 = vpop.permute.xlu0 %2687
    %2689 = vrot.lane.b32.xlu0 %v161, 28
    %v2690 = vpop.permute.xlu0 %2689
    %2691 = vrot.lane.b32.xlu0 %v211, 28
    %v2692 = vpop.permute.xlu0 %2691
    %v2693 = vsel %vm2667, %v2688, %v2690
    %v2694 = vsel %vm2667, %v2690, %v2692
    %v2697 = vmul.f32 %v2680, %v2693
    %v2698 = vmul.f32 %v2684, %v2694
    %v2699 = vadd.f32 %v2479, %v2697
    %v2700 = vadd.f32 %v2480, %v2698
    %s2701 = scalar_lea.vmem [#allocation6], 87
    %v2702 = vld [vmem:[%s2701] ss:$8 sm:$0x3]
    %s2703 = scalar_lea.vmem [#allocation8], 87
    %v2704 = vld [vmem:[%s2703] ss:$8 sm:$0x3]
    %v2706 = vlaneseq
    %v2707 = vshrl.u32 %v2706, 7
    %v2708 = vsub.s32 0, %v2707
    %v2709 = vrot.slane %v2702, %v2708
    %v2710 = vlaneseq
    %v2711 = vshrl.u32 %v2710, 7
    %v2712 = vsub.s32 1, %v2711
    %v2713 = vrot.slane %v2702, %v2712
    %2716 = vrot.lane.b32.xlu0 %v123, 27
    %v2717 = vpop.permute.xlu0 %2716
    %2718 = vrot.lane.b32.xlu0 %v141, 27
    %v2719 = vpop.permute.xlu0 %2718
    %2720 = vrot.lane.b32.xlu0 %v124, 27
    %v2721 = vpop.permute.xlu0 %2720
    %vm2722 = vcmask 220160
    %v2723 = vsel %vm2722, %v2717, %v2719
    %v2724 = vsel %vm2722, %v2719, %v2721
    %v2727 = vmul.f32 %v2709, %v2723
    %v2728 = vmul.f32 %v2713, %v2724
    %v2729 = vadd.f32 %v2509, %v2727
    %v2730 = vadd.f32 %v2510, %v2728
    %v2732 = vlaneseq
    %v2733 = vshrl.u32 %v2732, 7
    %v2734 = vsub.s32 0, %v2733
    %v2735 = vrot.slane %v2704, %v2734
    %v2736 = vlaneseq
    %v2737 = vshrl.u32 %v2736, 7
    %v2738 = vsub.s32 1, %v2737
    %v2739 = vrot.slane %v2704, %v2738
    %2742 = vrot.lane.b32.xlu0 %v160, 27
    %v2743 = vpop.permute.xlu0 %2742
    %2744 = vrot.lane.b32.xlu0 %v161, 27
    %v2745 = vpop.permute.xlu0 %2744
    %2746 = vrot.lane.b32.xlu0 %v211, 27
    %v2747 = vpop.permute.xlu0 %2746
    %v2748 = vsel %vm2722, %v2743, %v2745
    %v2749 = vsel %vm2722, %v2745, %v2747
    %v2752 = vmul.f32 %v2735, %v2748
    %v2753 = vmul.f32 %v2739, %v2749
    %v2754 = vadd.f32 %v2534, %v2752
    %v2755 = vadd.f32 %v2535, %v2753
    %s2756 = scalar_lea.vmem [#allocation6], 96
    %v2757 = vld [vmem:[%s2756] ss:$8 sm:$0x3]
    %s2758 = scalar_lea.vmem [#allocation8], 96
    %v2759 = vld [vmem:[%s2758] ss:$8 sm:$0x3]
    %v2761 = vlaneseq
    %v2762 = vshrl.u32 %v2761, 7
    %v2763 = vsub.s32 0, %v2762
    %v2764 = vrot.slane %v2757, %v2763
    %v2765 = vlaneseq
    %v2766 = vshrl.u32 %v2765, 7
    %v2767 = vsub.s32 1, %v2766
    %v2768 = vrot.slane %v2757, %v2767
    %2771 = vrot.lane.b32.xlu0 %v123, 26
    %v2772 = vpop.permute.xlu0 %2771
    %2773 = vrot.lane.b32.xlu0 %v141, 26
    %v2774 = vpop.permute.xlu0 %2773
    %2775 = vrot.lane.b32.xlu0 %v124, 26
    %v2776 = vpop.permute.xlu0 %2775
    %vm2777 = vcmask 211968
    %v2778 = vsel %vm2777, %v2772, %v2774
    %v2779 = vsel %vm2777, %v2774, %v2776
    %v2782 = vmul.f32 %v2764, %v2778
    %v2783 = vmul.f32 %v2768, %v2779
    %v2784 = vadd.f32 %v2564, %v2782
    %v2785 = vadd.f32 %v2565, %v2783
    %v2787 = vlaneseq
    %v2788 = vshrl.u32 %v2787, 7
    %v2789 = vsub.s32 0, %v2788
    %v2790 = vrot.slane %v2759, %v2789
    %v2791 = vlaneseq
    %v2792 = vshrl.u32 %v2791, 7
    %v2793 = vsub.s32 1, %v2792
    %v2794 = vrot.slane %v2759, %v2793
    %2797 = vrot.lane.b32.xlu0 %v160, 26
    %v2798 = vpop.permute.xlu0 %2797
    %2799 = vrot.lane.b32.xlu0 %v161, 26
    %v2800 = vpop.permute.xlu0 %2799
    %2801 = vrot.lane.b32.xlu0 %v211, 26
    %v2802 = vpop.permute.xlu0 %2801
    %v2803 = vsel %vm2777, %v2798, %v2800
    %v2804 = vsel %vm2777, %v2800, %v2802
    %v2807 = vmul.f32 %v2790, %v2803
    %v2808 = vmul.f32 %v2794, %v2804
    %v2809 = vadd.f32 %v2589, %v2807
    %v2810 = vadd.f32 %v2590, %v2808
    %v2811 = vadd.f32 %v2784, %v2809
    %v2812 = vadd.f32 %v2785, %v2810
    %v2813 = vadd.f32 %v2811, %v2619
    %v2814 = vadd.f32 %v2812, %v2620
    %v2815 = vadd.f32 %v2813, %v2644
    %v2816 = vadd.f32 %v2814, %v2645
    %v2817 = vadd.f32 %v2815, %v2674
    %v2818 = vadd.f32 %v2816, %v2675
    %v2819 = vadd.f32 %v2817, %v2699
    %v2820 = vadd.f32 %v2818, %v2700
    %v2821 = vadd.f32 %v2819, %v2729
    %v2822 = vadd.f32 %v2820, %v2730
    %v2823 = vadd.f32 %v2821, %v2754
    %v2824 = vadd.f32 %v2822, %v2755
    %v2825 = vxor.u32 %v2823, 2147483648
    %v2826 = vxor.u32 %v2824, 2147483648
    %v2827 = vmul.f32 %v2825, 1.442695
    %v2828 = vpow.pop %v2827
    %v2829 = vmul.f32 %v2826, 1.442695
    %v2830 = vpow.pop %v2829
    %v2831 = vadd.f32 %v2828, 1.0
    %v2832 = vadd.f32 %v2830, 1.0
    %v2833 = vrcp.pop %v2831
    %v2834 = vmul.f32 1.0, %v2833
    %v2835 = vrcp.pop %v2832
    %v2836 = vmul.f32 1.0, %v2835
    %v2839 = vcombine.low %v2834, %v2836
    %v2841 = vunpack.c.l.s4 1983009808
    %v2842 = vunpack.c.0.s8 %v2841
    %v2843 = vlaneseq
    %v2844 = vshrl.u32 %v2843, 7
    %v2845 = vsub.s32 %v2842, %v2844
    %v2846 = vrot.slane %v2839, %v2845
    %2848 = vst [vmem:[#allocation9] sm:$0xf] %v2846
    // Predicated region
    $region26: #{tpu_custom_call.1} parent=1 // pred_check
      _
    $region27: #{tpu_custom_call.1} parent=1 // pred_check_branch
      %2850 = sbr.rel (0) target = $region29
    $region28: #{tpu_custom_call.1} parent=1 // pred_region
      %s2852 = ssub.s32 64, 64
      %2853 = vsyncadd [#allocation5], %s2852
      %s2855 = sshll.u32 [#allocation9], 4
      %s2856 = int_to_ptr.vmem [resolvable:$true] %s2855
      %2858 = dma.vmem_to_hbm [thread:$0]  %s2856, 64, %s3, [#allocation5]
    $region29: #{tpu_custom_call.1} parent=1 // pred_fallthru
      _
    // Predicated region
    $region30: #{tpu_custom_call.1} parent=1 // pred_check
      _
    $region31: #{tpu_custom_call.1} parent=1 // pred_check_branch
      %2860 = sbr.rel (0) target = $region33
    $region32: #{tpu_custom_call.1} parent=1 // pred_region
      %2861 = dma.done [#allocation5], 64
    $region33: #{tpu_custom_call.1} parent=1 // pred_fallthru
      _
    %2862 = vsyncpa [#allocation4], 1
    %2863 = vsyncpa [#allocation7], 1
    %2864 = vsyncpa [#allocation5], 1

</llo_original>
